<compile_context>
chip_gen: v6e
topology: v6e:2x2x1
jax: 0.10.0
libtpu: 0.0.40
codegen_flags: <defaults>
</compile_context>

<pallas_src>
import functools

import jax
import jax.numpy as jnp
from jax.experimental import pallas as pl
from jax.experimental.pallas import tpu as pltpu

# Logical (PyTorch) dims.
D_IN, D_H1, D_H2, D_OUT = 1008, 1000, 500, 144
# Lane-padded output dims (multiples of 128). x / w1-rows stay at 1008.
D_H1_P, D_H2_P, D_OUT_P = 1024, 512, 256


def _round_up(x, m):
    return (x + m - 1) // m * m


@functools.lru_cache(maxsize=None)
def _vmem_capacity_bytes():
    try:
        return int(pltpu.get_tpu_info().vmem_capacity_bytes)
    except Exception:
        return 64 << 20  # conservative: assume v7x-sized VMEM


def mlp_kernel(x_ref, w1_ref, b1_ref, w2_ref, b2_ref, w3_ref, b3_ref, o_ref):
    # fc1 + ReLU: bf16 MXU matmul, f32 accumulate, f32 bias/ReLU on the VPU,
    # single cast to bf16 feeding the next dot (no VMEM scratch round-trip).
    h1 = jnp.dot(x_ref[...], w1_ref[...], preferred_element_type=jnp.float32)
    h1 = jnp.maximum(h1 + b1_ref[...], 0.0).astype(jnp.bfloat16)

    # fc2 + ReLU
    h2 = jnp.dot(h1, w2_ref[...], preferred_element_type=jnp.float32)
    h2 = jnp.maximum(h2 + b2_ref[...], 0.0).astype(jnp.bfloat16)

    # fc3 (no activation on the output, matching forward()).
    out = jnp.dot(h2, w3_ref[...], preferred_element_type=jnp.float32)
    o_ref[...] = (out + b3_ref[...]).astype(o_ref.dtype)


def prepare_params(w1, b1, w2, b2, w3, b3):
    """One-time prep: transpose to (in,out), zero-pad to lane multiples, weights->bf16.

    Inputs are in PyTorch layout: w (out_features, in_features), b (out_features,).
    w1 keeps its 1008 input rows so x needs no feature padding. Zero padding is
    numerically exact through bias+ReLU; padded output columns are sliced off in
    mlp_forward.
    """
    def prep_w(w, out_p):
        wt = w.T.astype(jnp.bfloat16)                      # (in, out)
        return jnp.pad(wt, ((0, 0), (0, out_p - wt.shape[1])))

    def prep_b(b, out_p):
        return jnp.pad(b.astype(jnp.float32), (0, out_p - b.shape[0]))[None, :]

    w1p = prep_w(w1, D_H1_P)                                            # (1008, 1024)
    w2p = jnp.pad(prep_w(w2, D_H2_P), ((0, D_H1_P - D_H1), (0, 0)))     # (1024, 512)
    w3p = jnp.pad(prep_w(w3, D_OUT_P), ((0, D_H2_P - D_H2), (0, 0)))    # (512, 256)
    return (w1p, prep_b(b1, D_H1_P),
            w2p, prep_b(b2, D_H2_P),
            w3p, prep_b(b3, D_OUT_P))


@functools.partial(jax.jit, static_argnames=("tb",))
def mlp_forward(x, params, *, tb=512):
    """x: (B, 1008) float; params: output of prepare_params(). Returns (B, 144) f32."""
    w1, b1, w2, b2, w3, b3 = params
    B = x.shape[0]

    # Batch tiling: TB is a multiple of 8 sublanes; when B allows, force >=2 grid
    # steps so the "parallel" grid axis can be sharded across v7x's two TensorCores.
    tb = _round_up(max(int(tb), 8), 8)
    B8 = _round_up(B, 8)
    n_steps = max(2, pl.cdiv(B8, tb)) if B8 >= 16 else 1
    TB = _round_up(pl.cdiv(B8, n_steps), 8)
    Bp = TB * n_steps

    # bf16 input; pad only the batch dim (and only when needed) -- no f32 pad pass.
    xb = x.astype(jnp.bfloat16)
    if Bp != B:
        xb = jnp.pad(xb, ((0, Bp - B), (0, 0)))

    def batch_spec(d):
        return pl.BlockSpec((TB, d), lambda i: (i, 0))

    def resident_spec(r, c):
        # Constant block index -> fetched from HBM once, stays resident in VMEM.
        return pl.BlockSpec((r, c), lambda i: (0, 0))

    # VMEM budget: weights/biases counted at 2 pipeline buffers each (the default
    # pipeline double-buffers every input spec), bf16 x / f32 out double-buffered,
    # plus headroom for the in-flight f32/bf16 h1/h2 temporaries.
    vmem_bytes = (
        2 * 2 * (D_IN * D_H1_P + D_H1_P * D_H2_P + D_H2_P * D_OUT_P)   # bf16 weights x2 bufs
        + 2 * 4 * (D_H1_P + D_H2_P + D_OUT_P)                          # f32 biases  x2 bufs
        + 2 * TB * D_IN * 2                                            # bf16 x, double-buffered
        + 2 * TB * D_OUT_P * 4                                         # f32 out, double-buffered
        + TB * (D_H1_P + D_H2_P) * 6                                   # f32+bf16 h1/h2 temporaries
        + (8 << 20)                                                    # slack
    )
    vmem_limit = int(min(max(vmem_bytes, 32 << 20), _vmem_capacity_bytes() * 3 // 4))

    out = pl.pallas_call(
        mlp_kernel,
        out_shape=jax.ShapeDtypeStruct((Bp, D_OUT_P), jnp.float32),
        grid=(Bp // TB,),
        in_specs=[
            batch_spec(D_IN),
            resident_spec(D_IN, D_H1_P), resident_spec(1, D_H1_P),
            resident_spec(D_H1_P, D_H2_P), resident_spec(1, D_H2_P),
            resident_spec(D_H2_P, D_OUT_P), resident_spec(1, D_OUT_P),
        ],
        out_specs=batch_spec(D_OUT_P),
        compiler_params=pltpu.CompilerParams(
            dimension_semantics=("parallel",),
            vmem_limit_bytes=vmem_limit,
        ),
    )(xb, w1, b1, w2, b2, w3, b3)

    # TODO(synk): let the consumer read the padded (Bp, 256) slab / fuse this slice
    # into the next op to avoid the extra copy.
    return out[:B, :D_OUT]


def init_params(key):
    """Deterministic init mimicking nn.Linear's default U(-1/sqrt(fan_in), 1/sqrt(fan_in))."""
    ks = jax.random.split(key, 6)

    def lin(kw, kb, fan_in, fan_out):
        bound = 1.0 / jnp.sqrt(float(fan_in))
        w = jax.random.uniform(kw, (fan_out, fan_in), jnp.float32, -bound, bound)
        b = jax.random.uniform(kb, (fan_out,), jnp.float32, -bound, bound)
        return w, b

    w1, b1 = lin(ks[0], ks[1], D_IN, D_H1)
    w2, b2 = lin(ks[2], ks[3], D_H1, D_H2)
    w3, b3 = lin(ks[4], ks[5], D_H2, D_OUT)
    return w1, b1, w2, b2, w3, b3


if __name__ == "__main__":
    key = jax.random.PRNGKey(0)
    k_x, k_p = jax.random.split(key)

    B = 2
    x = jax.random.normal(k_x, (B, D_IN), jnp.float32)
    w1, b1, w2, b2, w3, b3 = init_params(k_p)

    # One-time parameter preparation (transpose + pad + bf16 cast).
    params = prepare_params(w1, b1, w2, b2, w3, b3)

    out = mlp_forward(x, params)
    out = jax.block_until_ready(out)

    # Reference check in plain f32 JAX (same math as the PyTorch forward).
    h1 = jnp.maximum(x @ w1.T + b1, 0.0)
    h2 = jnp.maximum(h1 @ w2.T + b2, 0.0)
    ref = h2 @ w3.T + b3
    assert out.shape == (B, D_OUT)
    # bf16 MXU inputs with f32 accumulation -> loosen tolerance vs full-f32 reference.
    assert jnp.allclose(out, ref, atol=5e-2, rtol=5e-2), float(jnp.max(jnp.abs(out - ref)))

    print("KERNEL_OK")
</pallas_src>

<mosaic_0001>
module attributes {stable_mosaic.version = 11 : i64} {
  func.func @mlp_kernel(%arg0: i32, %arg1: memref<8x1008xbf16, #tpu.memory_space<vmem>>, %arg2: memref<1008x1024xbf16, #tpu.memory_space<vmem>>, %arg3: memref<1x1024xf32, #tpu.memory_space<vmem>>, %arg4: memref<1024x512xbf16, #tpu.memory_space<vmem>>, %arg5: memref<1x512xf32, #tpu.memory_space<vmem>>, %arg6: memref<512x256xbf16, #tpu.memory_space<vmem>>, %arg7: memref<1x256xf32, #tpu.memory_space<vmem>>, %arg8: memref<8x256xf32, #tpu.memory_space<vmem>>) attributes {dimension_semantics = [#tpu.dimension_semantics<parallel>], iteration_bounds = array<i64: 1>, scalar_prefetch = 0 : i64, scratch_operands = 0 : i64, tpu.core_type = #tpu.core_type<tc>, window_params = [{transform_indices = @transform_0, window_bounds = array<i64: 8, 1008>}, {pipeline_mode = #tpu.pipeline_mode<synchronous>, transform_indices = @transform_1, window_bounds = array<i64: 1008, 1024>}, {pipeline_mode = #tpu.pipeline_mode<synchronous>, transform_indices = @transform_2, window_bounds = array<i64: 1, 1024>}, {pipeline_mode = #tpu.pipeline_mode<synchronous>, transform_indices = @transform_3, window_bounds = array<i64: 1024, 512>}, {pipeline_mode = #tpu.pipeline_mode<synchronous>, transform_indices = @transform_4, window_bounds = array<i64: 1, 512>}, {pipeline_mode = #tpu.pipeline_mode<synchronous>, transform_indices = @transform_5, window_bounds = array<i64: 512, 256>}, {pipeline_mode = #tpu.pipeline_mode<synchronous>, transform_indices = @transform_6, window_bounds = array<i64: 1, 256>}, {transform_indices = @transform_7, window_bounds = array<i64: 8, 256>}]} {
    %c0 = arith.constant 0 : index
    %c0_0 = arith.constant 0 : index
    %0 = vector.load %arg1[%c0, %c0_0] : memref<8x1008xbf16, #tpu.memory_space<vmem>>, vector<8x1008xbf16>
    %c0_1 = arith.constant 0 : index
    %c0_2 = arith.constant 0 : index
    %1 = vector.load %arg2[%c0_1, %c0_2] : memref<1008x1024xbf16, #tpu.memory_space<vmem>>, vector<1008x1024xbf16>
    %cst = arith.constant dense<0.000000e+00> : vector<8x1024xf32>
    %2 = tpu.matmul %0, %1, %cst {dimension_numbers = #tpu.dot_dimension_numbers<[1], [0], [0], [1], [0, 0, 1, 1], [], []>} : vector<8x1008xbf16>, vector<1008x1024xbf16>, vector<8x1024xf32> -> vector<8x1024xf32>
    %c0_3 = arith.constant 0 : index
    %c0_4 = arith.constant 0 : index
    %3 = vector.load %arg3[%c0_3, %c0_4] : memref<1x1024xf32, #tpu.memory_space<vmem>>, vector<1x1024xf32>
    %4 = vector.broadcast %3 : vector<1x1024xf32> to vector<8x1024xf32>
    %5 = arith.addf %2, %4 : vector<8x1024xf32>
    %cst_5 = arith.constant 0.000000e+00 : f32
    %6 = vector.broadcast %cst_5 : f32 to vector<8x1024xf32>
    %7 = arith.maximumf %5, %6 : vector<8x1024xf32>
    %8 = arith.truncf %7 : vector<8x1024xf32> to vector<8x1024xbf16>
    %c0_6 = arith.constant 0 : index
    %c0_7 = arith.constant 0 : index
    %9 = vector.load %arg4[%c0_6, %c0_7] : memref<1024x512xbf16, #tpu.memory_space<vmem>>, vector<1024x512xbf16>
    %cst_8 = arith.constant dense<0.000000e+00> : vector<8x512xf32>
    %10 = tpu.matmul %8, %9, %cst_8 {dimension_numbers = #tpu.dot_dimension_numbers<[1], [0], [0], [1], [0, 0, 1, 1], [], []>} : vector<8x1024xbf16>, vector<1024x512xbf16>, vector<8x512xf32> -> vector<8x512xf32>
    %c0_9 = arith.constant 0 : index
    %c0_10 = arith.constant 0 : index
    %11 = vector.load %arg5[%c0_9, %c0_10] : memref<1x512xf32, #tpu.memory_space<vmem>>, vector<1x512xf32>
    %12 = vector.broadcast %11 : vector<1x512xf32> to vector<8x512xf32>
    %13 = arith.addf %10, %12 : vector<8x512xf32>
    %cst_11 = arith.constant 0.000000e+00 : f32
    %14 = vector.broadcast %cst_11 : f32 to vector<8x512xf32>
    %15 = arith.maximumf %13, %14 : vector<8x512xf32>
    %16 = arith.truncf %15 : vector<8x512xf32> to vector<8x512xbf16>
    %c0_12 = arith.constant 0 : index
    %c0_13 = arith.constant 0 : index
    %17 = vector.load %arg6[%c0_12, %c0_13] : memref<512x256xbf16, #tpu.memory_space<vmem>>, vector<512x256xbf16>
    %cst_14 = arith.constant dense<0.000000e+00> : vector<8x256xf32>
    %18 = tpu.matmul %16, %17, %cst_14 {dimension_numbers = #tpu.dot_dimension_numbers<[1], [0], [0], [1], [0, 0, 1, 1], [], []>} : vector<8x512xbf16>, vector<512x256xbf16>, vector<8x256xf32> -> vector<8x256xf32>
    %c0_15 = arith.constant 0 : index
    %c0_16 = arith.constant 0 : index
    %19 = vector.load %arg7[%c0_15, %c0_16] : memref<1x256xf32, #tpu.memory_space<vmem>>, vector<1x256xf32>
    %20 = vector.broadcast %19 : vector<1x256xf32> to vector<8x256xf32>
    %21 = arith.addf %18, %20 : vector<8x256xf32>
    %c0_17 = arith.constant 0 : index
    %c0_18 = arith.constant 0 : index
    %22 = vector.load %arg8[%c0_17, %c0_18] : memref<8x256xf32, #tpu.memory_space<vmem>>, vector<8x256xf32>
    tpu.vector_store %arg8[%c0_17, %c0_18], %21 {strides = array<i32>} : memref<8x256xf32, #tpu.memory_space<vmem>>, vector<8x256xf32>,
    return
  }
  func.func @transform_0(%arg0: i32) -> (i32, i32) {
    %c0_i32 = arith.constant 0 : i32
    %c0_i32_0 = arith.constant 0 : i32
    return %arg0, %c0_i32 : i32, i32
  }
  func.func @transform_1(%arg0: i32) -> (i32, i32) {
    %c0_i32 = arith.constant 0 : i32
    %c0_i32_0 = arith.constant 0 : i32
    %c0_i32_1 = arith.constant 0 : i32
    return %c0_i32, %c0_i32_0 : i32, i32
  }
  func.func @transform_2(%arg0: i32) -> (i32, i32) {
    %c0_i32 = arith.constant 0 : i32
    %c0_i32_0 = arith.constant 0 : i32
    %c0_i32_1 = arith.constant 0 : i32
    return %c0_i32, %c0_i32_0 : i32, i32
  }
  func.func @transform_3(%arg0: i32) -> (i32, i32) {
    %c0_i32 = arith.constant 0 : i32
    %c0_i32_0 = arith.constant 0 : i32
    %c0_i32_1 = arith.constant 0 : i32
    return %c0_i32, %c0_i32_0 : i32, i32
  }
  func.func @transform_4(%arg0: i32) -> (i32, i32) {
    %c0_i32 = arith.constant 0 : i32
    %c0_i32_0 = arith.constant 0 : i32
    %c0_i32_1 = arith.constant 0 : i32
    return %c0_i32, %c0_i32_0 : i32, i32
  }
  func.func @transform_5(%arg0: i32) -> (i32, i32) {
    %c0_i32 = arith.constant 0 : i32
    %c0_i32_0 = arith.constant 0 : i32
    %c0_i32_1 = arith.constant 0 : i32
    return %c0_i32, %c0_i32_0 : i32, i32
  }
  func.func @transform_6(%arg0: i32) -> (i32, i32) {
    %c0_i32 = arith.constant 0 : i32
    %c0_i32_0 = arith.constant 0 : i32
    %c0_i32_1 = arith.constant 0 : i32
    return %c0_i32, %c0_i32_0 : i32, i32
  }
  func.func @transform_7(%arg0: i32) -> (i32, i32) {
    %c0_i32 = arith.constant 0 : i32
    %c0_i32_0 = arith.constant 0 : i32
    return %arg0, %c0_i32 : i32, i32
  }
}

</mosaic_0001>

<llo_original>
// kernel: mlp_forward.1
$region0: #{mlp_forward.1}
  #allocation0 [shape = 'u32[]', space=smem, size = 0x4, offset = 0x4, fixed_abs, tag = 'smem constant byte address 0x4 - core index']
  #allocation1 [shape = 'u32[144,128]{1,0:T(1,128)}', space=vmem, size = 0x12000, scoped, tag = 'internal scratch']
  %s0 = inlined_call_operand.vmem [shape: bf16[8,1008], index: 0, kind: input, shape index: {}]
  %s1 = inlined_call_operand.hbm [shape: bf16[1008,1024], index: 1, kind: input, shape index: {}]
  %s2 = inlined_call_operand.hbm [shape: f32[1,1024], index: 2, kind: input, shape index: {}]
  %s3 = inlined_call_operand.hbm [shape: bf16[1024,512], index: 3, kind: input, shape index: {}]
  %s4 = inlined_call_operand.hbm [shape: f32[1,512], index: 4, kind: input, shape index: {}]
  %s5 = inlined_call_operand.hbm [shape: bf16[512,256], index: 5, kind: input, shape index: {}]
  %s6 = inlined_call_operand.hbm [shape: f32[1,256], index: 6, kind: input, shape index: {}]
  %s7 = inlined_call_operand.vmem [shape: f32[8,256], index: 7, kind: output, shape index: {}]
  %s8 = sld [smem:[#allocation0]]
  $region62: #{mlp_forward.1} parent=0
    _
  %s10 = ssub.s32 1, %s8
  %s11 = scalar_select 0, %s10, %s8
  $region1: #{mlp_forward.1} parent=0
    #allocation2 [shape = 'u8[2064384]{0}', space=vmem, size = 0x1f8000, scoped, tag = 'input window, operand 1, single buffered']
    #allocation3 [shape = 's32[1]{0}', space=sflag, size = 0x4, scoped, tag = 'scoped memory for mlp_forward.1']
    #allocation4 [shape = 'u8[4096]{0}', space=vmem, size = 0x1000, scoped, tag = 'input window, operand 2, single buffered']
    #allocation5 [shape = 's32[1]{0}', space=sflag, size = 0x4, scoped, tag = 'scoped memory for mlp_forward.1']
    #allocation6 [shape = 'u8[1048576]{0}', space=vmem, size = 0x100000, scoped, tag = 'input window, operand 3, single buffered']
    #allocation7 [shape = 'u8[2048]{0}', space=vmem, size = 0x800, scoped, tag = 'input window, operand 4, single buffered']
    #allocation8 [shape = 's32[1]{0}', space=sflag, size = 0x4, scoped, tag = 'scoped memory for mlp_forward.1']
    #allocation9 [shape = 'u8[262144]{0}', space=vmem, size = 0x40000, scoped, tag = 'input window, operand 5, single buffered']
    #allocation10 [shape = 'u8[1024]{0}', space=vmem, size = 0x400, scoped, tag = 'input window, operand 6, single buffered']
    #allocation11 [shape = 's32[1]{0}', space=sflag, size = 0x4, scoped, tag = 'scoped memory for mlp_forward.1']
    %12 = vsyncpa [#allocation3], 0
    %13 = vsyncpa [#allocation5], 0
    %14 = vsyncpa [#allocation8], 0
    %15 = vsyncpa [#allocation11], 0
    // Predicated region
    $region2: #{mlp_forward.1} parent=1 // pred_check
      _
    $region3: #{mlp_forward.1} parent=1 // pred_check_branch
      %17 = sbr.rel (0) target = $region5
    $region4: #{mlp_forward.1} parent=1 // pred_region
      _
    $region5: #{mlp_forward.1} parent=1 // pred_fallthru
      _
    // Predicated region
    $region6: #{mlp_forward.1} parent=1 // pred_check
      _
    $region7: #{mlp_forward.1} parent=1 // pred_check_branch
      %19 = sbr.rel (0) target = $region9
    $region8: #{mlp_forward.1} parent=1 // pred_region
      %s21 = ssub.s32 64512, 64512
      %22 = vsyncadd [#allocation3], %s21
      %s23 = sshll.u32 [#allocation2], 4
      %s24 = int_to_ptr.vmem [resolvable:$true] %s23
      %29 = dma.hbm_to_vmem [thread:$0]  %s1, 64512, %s24, [#allocation3], 512, 512, 32
    $region9: #{mlp_forward.1} parent=1 // pred_fallthru
      _
    // Predicated region
    $region10: #{mlp_forward.1} parent=1 // pred_check
      _
    $region11: #{mlp_forward.1} parent=1 // pred_check_branch
      %31 = sbr.rel (0) target = $region13
    $region12: #{mlp_forward.1} parent=1 // pred_region
      %s33 = ssub.s32 128, 128
      %34 = vsyncadd [#allocation5], %s33
      %s36 = sshll.u32 [#allocation4], 4
      %s37 = int_to_ptr.vmem [resolvable:$true] %s36
      %39 = dma.hbm_to_vmem [thread:$0]  %s2, 128, %s37, [#allocation5]
    $region13: #{mlp_forward.1} parent=1 // pred_fallthru
      _
    // Predicated region
    $region14: #{mlp_forward.1} parent=1 // pred_check
      _
    $region15: #{mlp_forward.1} parent=1 // pred_check_branch
      %41 = sbr.rel (0) target = $region17
    $region16: #{mlp_forward.1} parent=1 // pred_region
      %s43 = ssub.s32 32768, 32768
      %44 = vsyncadd [#allocation5], %s43
      %s45 = sshll.u32 [#allocation6], 4
      %s46 = int_to_ptr.vmem [resolvable:$true] %s45
      %51 = dma.hbm_to_vmem [thread:$0]  %s3, 32768, %s46, [#allocation5], 256, 256, 16
    $region17: #{mlp_forward.1} parent=1 // pred_fallthru
      _
    // Predicated region
    $region18: #{mlp_forward.1} parent=1 // pred_check
      _
    $region19: #{mlp_forward.1} parent=1 // pred_check_branch
      %53 = sbr.rel (0) target = $region21
    $region20: #{mlp_forward.1} parent=1 // pred_region
      %s55 = ssub.s32 64, 64
      %56 = vsyncadd [#allocation8], %s55
      %s58 = sshll.u32 [#allocation7], 4
      %s59 = int_to_ptr.vmem [resolvable:$true] %s58
      %61 = dma.hbm_to_vmem [thread:$0]  %s4, 64, %s59, [#allocation8]
    $region21: #{mlp_forward.1} parent=1 // pred_fallthru
      _
    // Predicated region
    $region22: #{mlp_forward.1} parent=1 // pred_check
      _
    $region23: #{mlp_forward.1} parent=1 // pred_check_branch
      %63 = sbr.rel (0) target = $region25
    $region24: #{mlp_forward.1} parent=1 // pred_region
      %s65 = ssub.s32 8192, 8192
      %66 = vsyncadd [#allocation8], %s65
      %s67 = sshll.u32 [#allocation9], 4
      %s68 = int_to_ptr.vmem [resolvable:$true] %s67
      %73 = dma.hbm_to_vmem [thread:$0]  %s5, 8192, %s68, [#allocation8], 128, 128, 8
    $region25: #{mlp_forward.1} parent=1 // pred_fallthru
      _
    // Predicated region
    $region26: #{mlp_forward.1} parent=1 // pred_check
      _
    $region27: #{mlp_forward.1} parent=1 // pred_check_branch
      %75 = sbr.rel (0) target = $region29
    $region28: #{mlp_forward.1} parent=1 // pred_region
      %s77 = ssub.s32 32, 32
      %78 = vsyncadd [#allocation11], %s77
      %s80 = sshll.u32 [#allocation10], 4
      %s81 = int_to_ptr.vmem [resolvable:$true] %s80
      %83 = dma.hbm_to_vmem [thread:$0]  %s6, 32, %s81, [#allocation11]
    $region29: #{mlp_forward.1} parent=1 // pred_fallthru
      _
    // Predicated region
    $region30: #{mlp_forward.1} parent=1 // pred_check
      _
    $region31: #{mlp_forward.1} parent=1 // pred_check_branch
      %85 = sbr.rel (0) target = $region33
    $region32: #{mlp_forward.1} parent=1 // pred_region
      %86 = dma.done [#allocation3], 64512
    $region33: #{mlp_forward.1} parent=1 // pred_fallthru
      _
    // Predicated region
    $region34: #{mlp_forward.1} parent=1 // pred_check
      _
    $region35: #{mlp_forward.1} parent=1 // pred_check_branch
      %88 = sbr.rel (0) target = $region37
    $region36: #{mlp_forward.1} parent=1 // pred_region
      %89 = dma.done [#allocation5], 128
    $region37: #{mlp_forward.1} parent=1 // pred_fallthru
      _
    // Predicated region
    $region38: #{mlp_forward.1} parent=1 // pred_check
      _
    $region39: #{mlp_forward.1} parent=1 // pred_check_branch
      %91 = sbr.rel (0) target = $region41
    $region40: #{mlp_forward.1} parent=1 // pred_region
      %92 = dma.done [#allocation5], 32768
    $region41: #{mlp_forward.1} parent=1 // pred_fallthru
      _
    // Predicated region
    $region42: #{mlp_forward.1} parent=1 // pred_check
      _
    $region43: #{mlp_forward.1} parent=1 // pred_check_branch
      %94 = sbr.rel (0) target = $region45
    $region44: #{mlp_forward.1} parent=1 // pred_region
      %95 = dma.done [#allocation8], 64
    $region45: #{mlp_forward.1} parent=1 // pred_fallthru
      _
    // Predicated region
    $region46: #{mlp_forward.1} parent=1 // pred_check
      _
    $region47: #{mlp_forward.1} parent=1 // pred_check_branch
      %97 = sbr.rel (0) target = $region49
    $region48: #{mlp_forward.1} parent=1 // pred_region
      %98 = dma.done [#allocation8], 8192
    $region49: #{mlp_forward.1} parent=1 // pred_fallthru
      _
    // Predicated region
    $region50: #{mlp_forward.1} parent=1 // pred_check
      _
    $region51: #{mlp_forward.1} parent=1 // pred_check_branch
      %100 = sbr.rel (0) target = $region53
    $region52: #{mlp_forward.1} parent=1 // pred_region
      %101 = dma.done [#allocation11], 32
    $region53: #{mlp_forward.1} parent=1 // pred_fallthru
      _
    %v103 = vld [vmem:[%s0] sm:$0xff]
    %v104 = vld [vmem:[%s0 + $0x8] sm:$0xff]
    %v105 = vld [vmem:[%s0 + $0x10] sm:$0xff]
    %v106 = vld [vmem:[%s0 + $0x18] sm:$0xff]
    %v107 = vld [vmem:[#allocation2] sm:$0xff]
    %v108 = vld [vmem:[#allocation2 + $0x8] sm:$0xff]
    %v109 = vld [vmem:[#allocation2 + $0x10] sm:$0xff]
    %v110 = vld [vmem:[#allocation2 + $0x18] sm:$0xff]
    %v111 = vld [vmem:[#allocation2 + $0x20] sm:$0xff]
    %v112 = vld [vmem:[#allocation2 + $0x28] sm:$0xff]
    %v113 = vld [vmem:[#allocation2 + $0x30] sm:$0xff]
    %v114 = vld [vmem:[#allocation2 + $0x38] sm:$0xff]
    %v115 = vld [vmem:[#allocation2 + $0x40] sm:$0xff]
    %v116 = vld [vmem:[#allocation2 + $0x48] sm:$0xff]
    %v117 = vld [vmem:[#allocation2 + $0x50] sm:$0xff]
    %v118 = vld [vmem:[#allocation2 + $0x58] sm:$0xff]
    %v119 = vld [vmem:[#allocation2 + $0x60] sm:$0xff]
    %v120 = vld [vmem:[#allocation2 + $0x68] sm:$0xff]
    %v121 = vld [vmem:[#allocation2 + $0x70] sm:$0xff]
    %v122 = vld [vmem:[#allocation2 + $0x78] sm:$0xff]
    %v123 = vld [vmem:[#allocation2 + $0x80] sm:$0xff]
    %v124 = vld [vmem:[#allocation2 + $0x88] sm:$0xff]
    %v125 = vld [vmem:[#allocation2 + $0x90] sm:$0xff]
    %v126 = vld [vmem:[#allocation2 + $0x98] sm:$0xff]
    %v127 = vld [vmem:[#allocation2 + $0xa0] sm:$0xff]
    %v128 = vld [vmem:[#allocation2 + $0xa8] sm:$0xff]
    %v129 = vld [vmem:[#allocation2 + $0xb0] sm:$0xff]
    %v130 = vld [vmem:[#allocation2 + $0xb8] sm:$0xff]
    %v131 = vld [vmem:[#allocation2 + $0xc0] sm:$0xff]
    %v132 = vld [vmem:[#allocation2 + $0xc8] sm:$0xff]
    %v133 = vld [vmem:[#allocation2 + $0xd0] sm:$0xff]
    %v134 = vld [vmem:[#allocation2 + $0xd8] sm:$0xff]
    %v135 = vld [vmem:[#allocation2 + $0xe0] sm:$0xff]
    %v136 = vld [vmem:[#allocation2 + $0xe8] sm:$0xff]
    %v137 = vld [vmem:[#allocation2 + $0xf0] sm:$0xff]
    %v138 = vld [vmem:[#allocation2 + $0xf8] sm:$0xff]
    %v139 = vld [vmem:[#allocation2 + $0x100] sm:$0xff]
    %v140 = vld [vmem:[#allocation2 + $0x108] sm:$0xff]
    %v141 = vld [vmem:[#allocation2 + $0x110] sm:$0xff]
    %v142 = vld [vmem:[#allocation2 + $0x118] sm:$0xff]
    %v143 = vld [vmem:[#allocation2 + $0x120] sm:$0xff]
    %v144 = vld [vmem:[#allocation2 + $0x128] sm:$0xff]
    %v145 = vld [vmem:[#allocation2 + $0x130] sm:$0xff]
    %v146 = vld [vmem:[#allocation2 + $0x138] sm:$0xff]
    %v147 = vld [vmem:[#allocation2 + $0x140] sm:$0xff]
    %v148 = vld [vmem:[#allocation2 + $0x148] sm:$0xff]
    %v149 = vld [vmem:[#allocation2 + $0x150] sm:$0xff]
    %v150 = vld [vmem:[#allocation2 + $0x158] sm:$0xff]
    %v151 = vld [vmem:[#allocation2 + $0x160] sm:$0xff]
    %v152 = vld [vmem:[#allocation2 + $0x168] sm:$0xff]
    %v153 = vld [vmem:[#allocation2 + $0x170] sm:$0xff]
    %v154 = vld [vmem:[#allocation2 + $0x178] sm:$0xff]
    %v155 = vld [vmem:[#allocation2 + $0x180] sm:$0xff]
    %v156 = vld [vmem:[#allocation2 + $0x188] sm:$0xff]
    %v157 = vld [vmem:[#allocation2 + $0x190] sm:$0xff]
    %v158 = vld [vmem:[#allocation2 + $0x198] sm:$0xff]
    %v159 = vld [vmem:[#allocation2 + $0x1a0] sm:$0xff]
    %v160 = vld [vmem:[#allocation2 + $0x1a8] sm:$0xff]
    %v161 = vld [vmem:[#allocation2 + $0x1b0] sm:$0xff]
    %v162 = vld [vmem:[#allocation2 + $0x1b8] sm:$0xff]
    %v163 = vld [vmem:[#allocation2 + $0x1c0] sm:$0xff]
    %v164 = vld [vmem:[#allocation2 + $0x1c8] sm:$0xff]
    %v165 = vld [vmem:[#allocation2 + $0x1d0] sm:$0xff]
    %v166 = vld [vmem:[#allocation2 + $0x1d8] sm:$0xff]
    %v167 = vld [vmem:[#allocation2 + $0x1e0] sm:$0xff]
    %v168 = vld [vmem:[#allocation2 + $0x1e8] sm:$0xff]
    %v169 = vld [vmem:[#allocation2 + $0x1f0] sm:$0xff]
    %v170 = vld [vmem:[#allocation2 + $0x1f8] sm:$0xff]
    %v171 = vld [vmem:[#allocation2 + $0x200] sm:$0xff]
    %v172 = vld [vmem:[#allocation2 + $0x208] sm:$0xff]
    %v173 = vld [vmem:[#allocation2 + $0x210] sm:$0xff]
    %v174 = vld [vmem:[#allocation2 + $0x218] sm:$0xff]
    %v175 = vld [vmem:[#allocation2 + $0x220] sm:$0xff]
    %v176 = vld [vmem:[#allocation2 + $0x228] sm:$0xff]
    %v177 = vld [vmem:[#allocation2 + $0x230] sm:$0xff]
    %v178 = vld [vmem:[#allocation2 + $0x238] sm:$0xff]
    %v179 = vld [vmem:[#allocation2 + $0x240] sm:$0xff]
    %v180 = vld [vmem:[#allocation2 + $0x248] sm:$0xff]
    %v181 = vld [vmem:[#allocation2 + $0x250] sm:$0xff]
    %v182 = vld [vmem:[#allocation2 + $0x258] sm:$0xff]
    %v183 = vld [vmem:[#allocation2 + $0x260] sm:$0xff]
    %v184 = vld [vmem:[#allocation2 + $0x268] sm:$0xff]
    %v185 = vld [vmem:[#allocation2 + $0x270] sm:$0xff]
    %v186 = vld [vmem:[#allocation2 + $0x278] sm:$0xff]
    %v187 = vld [vmem:[#allocation2 + $0x280] sm:$0xff]
    %v188 = vld [vmem:[#allocation2 + $0x288] sm:$0xff]
    %v189 = vld [vmem:[#allocation2 + $0x290] sm:$0xff]
    %v190 = vld [vmem:[#allocation2 + $0x298] sm:$0xff]
    %v191 = vld [vmem:[#allocation2 + $0x2a0] sm:$0xff]
    %v192 = vld [vmem:[#allocation2 + $0x2a8] sm:$0xff]
    %v193 = vld [vmem:[#allocation2 + $0x2b0] sm:$0xff]
    %v194 = vld [vmem:[#allocation2 + $0x2b8] sm:$0xff]
    %v195 = vld [vmem:[#allocation2 + $0x2c0] sm:$0xff]
    %v196 = vld [vmem:[#allocation2 + $0x2c8] sm:$0xff]
    %v197 = vld [vmem:[#allocation2 + $0x2d0] sm:$0xff]
    %v198 = vld [vmem:[#allocation2 + $0x2d8] sm:$0xff]
    %v199 = vld [vmem:[#allocation2 + $0x2e0] sm:$0xff]
    %v200 = vld [vmem:[#allocation2 + $0x2e8] sm:$0xff]
    %v201 = vld [vmem:[#allocation2 + $0x2f0] sm:$0xff]
    %v202 = vld [vmem:[#allocation2 + $0x2f8] sm:$0xff]
    %v203 = vld [vmem:[#allocation2 + $0x300] sm:$0xff]
    %v204 = vld [vmem:[#allocation2 + $0x308] sm:$0xff]
    %v205 = vld [vmem:[#allocation2 + $0x310] sm:$0xff]
    %v206 = vld [vmem:[#allocation2 + $0x318] sm:$0xff]
    %v207 = vld [vmem:[#allocation2 + $0x320] sm:$0xff]
    %v208 = vld [vmem:[#allocation2 + $0x328] sm:$0xff]
    %v209 = vld [vmem:[#allocation2 + $0x330] sm:$0xff]
    %v210 = vld [vmem:[#allocation2 + $0x338] sm:$0xff]
    %v211 = vld [vmem:[#allocation2 + $0x340] sm:$0xff]
    %v212 = vld [vmem:[#allocation2 + $0x348] sm:$0xff]
    %v213 = vld [vmem:[#allocation2 + $0x350] sm:$0xff]
    %v214 = vld [vmem:[#allocation2 + $0x358] sm:$0xff]
    %v215 = vld [vmem:[#allocation2 + $0x360] sm:$0xff]
    %v216 = vld [vmem:[#allocation2 + $0x368] sm:$0xff]
    %v217 = vld [vmem:[#allocation2 + $0x370] sm:$0xff]
    %v218 = vld [vmem:[#allocation2 + $0x378] sm:$0xff]
    %v219 = vld [vmem:[#allocation2 + $0x380] sm:$0xff]
    %v220 = vld [vmem:[#allocation2 + $0x388] sm:$0xff]
    %v221 = vld [vmem:[#allocation2 + $0x390] sm:$0xff]
    %v222 = vld [vmem:[#allocation2 + $0x398] sm:$0xff]
    %v223 = vld [vmem:[#allocation2 + $0x3a0] sm:$0xff]
    %v224 = vld [vmem:[#allocation2 + $0x3a8] sm:$0xff]
    %v225 = vld [vmem:[#allocation2 + $0x3b0] sm:$0xff]
    %v226 = vld [vmem:[#allocation2 + $0x3b8] sm:$0xff]
    %v227 = vld [vmem:[#allocation2 + $0x3c0] sm:$0xff]
    %v228 = vld [vmem:[#allocation2 + $0x3c8] sm:$0xff]
    %v229 = vld [vmem:[#allocation2 + $0x3d0] sm:$0xff]
    %v230 = vld [vmem:[#allocation2 + $0x3d8] sm:$0xff]
    %v231 = vld [vmem:[#allocation2 + $0x3e0] sm:$0xff]
    %v232 = vld [vmem:[#allocation2 + $0x3e8] sm:$0xff]
    %v233 = vld [vmem:[#allocation2 + $0x3f0] sm:$0xff]
    %v234 = vld [vmem:[#allocation2 + $0x3f8] sm:$0xff]
    %v235 = vld [vmem:[#allocation2 + $0x400] sm:$0xff]
    %v236 = vld [vmem:[#allocation2 + $0x408] sm:$0xff]
    %v237 = vld [vmem:[#allocation2 + $0x410] sm:$0xff]
    %v238 = vld [vmem:[#allocation2 + $0x418] sm:$0xff]
    %v239 = vld [vmem:[#allocation2 + $0x420] sm:$0xff]
    %v240 = vld [vmem:[#allocation2 + $0x428] sm:$0xff]
    %v241 = vld [vmem:[#allocation2 + $0x430] sm:$0xff]
    %v242 = vld [vmem:[#allocation2 + $0x438] sm:$0xff]
    %v243 = vld [vmem:[#allocation2 + $0x440] sm:$0xff]
    %v244 = vld [vmem:[#allocation2 + $0x448] sm:$0xff]
    %v245 = vld [vmem:[#allocation2 + $0x450] sm:$0xff]
    %v246 = vld [vmem:[#allocation2 + $0x458] sm:$0xff]
    %v247 = vld [vmem:[#allocation2 + $0x460] sm:$0xff]
    %v248 = vld [vmem:[#allocation2 + $0x468] sm:$0xff]
    %v249 = vld [vmem:[#allocation2 + $0x470] sm:$0xff]
    %v250 = vld [vmem:[#allocation2 + $0x478] sm:$0xff]
    %v251 = vld [vmem:[#allocation2 + $0x480] sm:$0xff]
    %v252 = vld [vmem:[#allocation2 + $0x488] sm:$0xff]
    %v253 = vld [vmem:[#allocation2 + $0x490] sm:$0xff]
    %v254 = vld [vmem:[#allocation2 + $0x498] sm:$0xff]
    %v255 = vld [vmem:[#allocation2 + $0x4a0] sm:$0xff]
    %v256 = vld [vmem:[#allocation2 + $0x4a8] sm:$0xff]
    %v257 = vld [vmem:[#allocation2 + $0x4b0] sm:$0xff]
    %v258 = vld [vmem:[#allocation2 + $0x4b8] sm:$0xff]
    %v259 = vld [vmem:[#allocation2 + $0x4c0] sm:$0xff]
    %v260 = vld [vmem:[#allocation2 + $0x4c8] sm:$0xff]
    %v261 = vld [vmem:[#allocation2 + $0x4d0] sm:$0xff]
    %v262 = vld [vmem:[#allocation2 + $0x4d8] sm:$0xff]
    %v263 = vld [vmem:[#allocation2 + $0x4e0] sm:$0xff]
    %v264 = vld [vmem:[#allocation2 + $0x4e8] sm:$0xff]
    %v265 = vld [vmem:[#allocation2 + $0x4f0] sm:$0xff]
    %v266 = vld [vmem:[#allocation2 + $0x4f8] sm:$0xff]
    %v267 = vld [vmem:[#allocation2 + $0x500] sm:$0xff]
    %v268 = vld [vmem:[#allocation2 + $0x508] sm:$0xff]
    %v269 = vld [vmem:[#allocation2 + $0x510] sm:$0xff]
    %v270 = vld [vmem:[#allocation2 + $0x518] sm:$0xff]
    %v271 = vld [vmem:[#allocation2 + $0x520] sm:$0xff]
    %v272 = vld [vmem:[#allocation2 + $0x528] sm:$0xff]
    %v273 = vld [vmem:[#allocation2 + $0x530] sm:$0xff]
    %v274 = vld [vmem:[#allocation2 + $0x538] sm:$0xff]
    %v275 = vld [vmem:[#allocation2 + $0x540] sm:$0xff]
    %v276 = vld [vmem:[#allocation2 + $0x548] sm:$0xff]
    %v277 = vld [vmem:[#allocation2 + $0x550] sm:$0xff]
    %v278 = vld [vmem:[#allocation2 + $0x558] sm:$0xff]
    %v279 = vld [vmem:[#allocation2 + $0x560] sm:$0xff]
    %v280 = vld [vmem:[#allocation2 + $0x568] sm:$0xff]
    %v281 = vld [vmem:[#allocation2 + $0x570] sm:$0xff]
    %v282 = vld [vmem:[#allocation2 + $0x578] sm:$0xff]
    %v283 = vld [vmem:[#allocation2 + $0x580] sm:$0xff]
    %v284 = vld [vmem:[#allocation2 + $0x588] sm:$0xff]
    %v285 = vld [vmem:[#allocation2 + $0x590] sm:$0xff]
    %v286 = vld [vmem:[#allocation2 + $0x598] sm:$0xff]
    %v287 = vld [vmem:[#allocation2 + $0x5a0] sm:$0xff]
    %v288 = vld [vmem:[#allocation2 + $0x5a8] sm:$0xff]
    %v289 = vld [vmem:[#allocation2 + $0x5b0] sm:$0xff]
    %v290 = vld [vmem:[#allocation2 + $0x5b8] sm:$0xff]
    %v291 = vld [vmem:[#allocation2 + $0x5c0] sm:$0xff]
    %v292 = vld [vmem:[#allocation2 + $0x5c8] sm:$0xff]
    %v293 = vld [vmem:[#allocation2 + $0x5d0] sm:$0xff]
    %v294 = vld [vmem:[#allocation2 + $0x5d8] sm:$0xff]
    %v295 = vld [vmem:[#allocation2 + $0x5e0] sm:$0xff]
    %v296 = vld [vmem:[#allocation2 + $0x5e8] sm:$0xff]
    %v297 = vld [vmem:[#allocation2 + $0x5f0] sm:$0xff]
    %v298 = vld [vmem:[#allocation2 + $0x5f8] sm:$0xff]
    %v299 = vld [vmem:[#allocation2 + $0x600] sm:$0xff]
    %v300 = vld [vmem:[#allocation2 + $0x608] sm:$0xff]
    %v301 = vld [vmem:[#allocation2 + $0x610] sm:$0xff]
    %v302 = vld [vmem:[#allocation2 + $0x618] sm:$0xff]
    %v303 = vld [vmem:[#allocation2 + $0x620] sm:$0xff]
    %v304 = vld [vmem:[#allocation2 + $0x628] sm:$0xff]
    %v305 = vld [vmem:[#allocation2 + $0x630] sm:$0xff]
    %v306 = vld [vmem:[#allocation2 + $0x638] sm:$0xff]
    %v307 = vld [vmem:[#allocation2 + $0x640] sm:$0xff]
    %v308 = vld [vmem:[#allocation2 + $0x648] sm:$0xff]
    %v309 = vld [vmem:[#allocation2 + $0x650] sm:$0xff]
    %v310 = vld [vmem:[#allocation2 + $0x658] sm:$0xff]
    %v311 = vld [vmem:[#allocation2 + $0x660] sm:$0xff]
    %v312 = vld [vmem:[#allocation2 + $0x668] sm:$0xff]
    %v313 = vld [vmem:[#allocation2 + $0x670] sm:$0xff]
    %v314 = vld [vmem:[#allocation2 + $0x678] sm:$0xff]
    %v315 = vld [vmem:[#allocation2 + $0x680] sm:$0xff]
    %v316 = vld [vmem:[#allocation2 + $0x688] sm:$0xff]
    %v317 = vld [vmem:[#allocation2 + $0x690] sm:$0xff]
    %v318 = vld [vmem:[#allocation2 + $0x698] sm:$0xff]
    %v319 = vld [vmem:[#allocation2 + $0x6a0] sm:$0xff]
    %v320 = vld [vmem:[#allocation2 + $0x6a8] sm:$0xff]
    %v321 = vld [vmem:[#allocation2 + $0x6b0] sm:$0xff]
    %v322 = vld [vmem:[#allocation2 + $0x6b8] sm:$0xff]
    %v323 = vld [vmem:[#allocation2 + $0x6c0] sm:$0xff]
    %v324 = vld [vmem:[#allocation2 + $0x6c8] sm:$0xff]
    %v325 = vld [vmem:[#allocation2 + $0x6d0] sm:$0xff]
    %v326 = vld [vmem:[#allocation2 + $0x6d8] sm:$0xff]
    %v327 = vld [vmem:[#allocation2 + $0x6e0] sm:$0xff]
    %v328 = vld [vmem:[#allocation2 + $0x6e8] sm:$0xff]
    %v329 = vld [vmem:[#allocation2 + $0x6f0] sm:$0xff]
    %v330 = vld [vmem:[#allocation2 + $0x6f8] sm:$0xff]
    %v331 = vld [vmem:[#allocation2 + $0x700] sm:$0xff]
    %v332 = vld [vmem:[#allocation2 + $0x708] sm:$0xff]
    %v333 = vld [vmem:[#allocation2 + $0x710] sm:$0xff]
    %v334 = vld [vmem:[#allocation2 + $0x718] sm:$0xff]
    %v335 = vld [vmem:[#allocation2 + $0x720] sm:$0xff]
    %v336 = vld [vmem:[#allocation2 + $0x728] sm:$0xff]
    %v337 = vld [vmem:[#allocation2 + $0x730] sm:$0xff]
    %v338 = vld [vmem:[#allocation2 + $0x738] sm:$0xff]
    %v339 = vld [vmem:[#allocation2 + $0x740] sm:$0xff]
    %v340 = vld [vmem:[#allocation2 + $0x748] sm:$0xff]
    %v341 = vld [vmem:[#allocation2 + $0x750] sm:$0xff]
    %v342 = vld [vmem:[#allocation2 + $0x758] sm:$0xff]
    %v343 = vld [vmem:[#allocation2 + $0x760] sm:$0xff]
    %v344 = vld [vmem:[#allocation2 + $0x768] sm:$0xff]
    %v345 = vld [vmem:[#allocation2 + $0x770] sm:$0xff]
    %v346 = vld [vmem:[#allocation2 + $0x778] sm:$0xff]
    %v347 = vld [vmem:[#allocation2 + $0x780] sm:$0xff]
    %v348 = vld [vmem:[#allocation2 + $0x788] sm:$0xff]
    %v349 = vld [vmem:[#allocation2 + $0x790] sm:$0xff]
    %v350 = vld [vmem:[#allocation2 + $0x798] sm:$0xff]
    %v351 = vld [vmem:[#allocation2 + $0x7a0] sm:$0xff]
    %v352 = vld [vmem:[#allocation2 + $0x7a8] sm:$0xff]
    %v353 = vld [vmem:[#allocation2 + $0x7b0] sm:$0xff]
    %v354 = vld [vmem:[#allocation2 + $0x7b8] sm:$0xff]
    %v355 = vld [vmem:[#allocation2 + $0x7c0] sm:$0xff]
    %v356 = vld [vmem:[#allocation2 + $0x7c8] sm:$0xff]
    %v357 = vld [vmem:[#allocation2 + $0x7d0] sm:$0xff]
    %v358 = vld [vmem:[#allocation2 + $0x7d8] sm:$0xff]
    %v359 = vld [vmem:[#allocation2 + $0x7e0] sm:$0xff]
    %v360 = vld [vmem:[#allocation2 + $0x7e8] sm:$0xff]
    %v361 = vld [vmem:[#allocation2 + $0x7f0] sm:$0xff]
    %v362 = vld [vmem:[#allocation2 + $0x7f8] sm:$0xff]
    %v363 = vld [vmem:[#allocation2 + $0x800] sm:$0xff]
    %v364 = vld [vmem:[#allocation2 + $0x808] sm:$0xff]
    %v365 = vld [vmem:[#allocation2 + $0x810] sm:$0xff]
    %v366 = vld [vmem:[#allocation2 + $0x818] sm:$0xff]
    %v367 = vld [vmem:[#allocation2 + $0x820] sm:$0xff]
    %v368 = vld [vmem:[#allocation2 + $0x828] sm:$0xff]
    %v369 = vld [vmem:[#allocation2 + $0x830] sm:$0xff]
    %v370 = vld [vmem:[#allocation2 + $0x838] sm:$0xff]
    %v371 = vld [vmem:[#allocation2 + $0x840] sm:$0xff]
    %v372 = vld [vmem:[#allocation2 + $0x848] sm:$0xff]
    %v373 = vld [vmem:[#allocation2 + $0x850] sm:$0xff]
    %v374 = vld [vmem:[#allocation2 + $0x858] sm:$0xff]
    %v375 = vld [vmem:[#allocation2 + $0x860] sm:$0xff]
    %v376 = vld [vmem:[#allocation2 + $0x868] sm:$0xff]
    %v377 = vld [vmem:[#allocation2 + $0x870] sm:$0xff]
    %v378 = vld [vmem:[#allocation2 + $0x878] sm:$0xff]
    %v379 = vld [vmem:[#allocation2 + $0x880] sm:$0xff]
    %v380 = vld [vmem:[#allocation2 + $0x888] sm:$0xff]
    %v381 = vld [vmem:[#allocation2 + $0x890] sm:$0xff]
    %v382 = vld [vmem:[#allocation2 + $0x898] sm:$0xff]
    %v383 = vld [vmem:[#allocation2 + $0x8a0] sm:$0xff]
    %v384 = vld [vmem:[#allocation2 + $0x8a8] sm:$0xff]
    %v385 = vld [vmem:[#allocation2 + $0x8b0] sm:$0xff]
    %v386 = vld [vmem:[#allocation2 + $0x8b8] sm:$0xff]
    %v387 = vld [vmem:[#allocation2 + $0x8c0] sm:$0xff]
    %v388 = vld [vmem:[#allocation2 + $0x8c8] sm:$0xff]
    %v389 = vld [vmem:[#allocation2 + $0x8d0] sm:$0xff]
    %v390 = vld [vmem:[#allocation2 + $0x8d8] sm:$0xff]
    %v391 = vld [vmem:[#allocation2 + $0x8e0] sm:$0xff]
    %v392 = vld [vmem:[#allocation2 + $0x8e8] sm:$0xff]
    %v393 = vld [vmem:[#allocation2 + $0x8f0] sm:$0xff]
    %v394 = vld [vmem:[#allocation2 + $0x8f8] sm:$0xff]
    %v395 = vld [vmem:[#allocation2 + $0x900] sm:$0xff]
    %v396 = vld [vmem:[#allocation2 + $0x908] sm:$0xff]
    %v397 = vld [vmem:[#allocation2 + $0x910] sm:$0xff]
    %v398 = vld [vmem:[#allocation2 + $0x918] sm:$0xff]
    %v399 = vld [vmem:[#allocation2 + $0x920] sm:$0xff]
    %v400 = vld [vmem:[#allocation2 + $0x928] sm:$0xff]
    %v401 = vld [vmem:[#allocation2 + $0x930] sm:$0xff]
    %v402 = vld [vmem:[#allocation2 + $0x938] sm:$0xff]
    %v403 = vld [vmem:[#allocation2 + $0x940] sm:$0xff]
    %v404 = vld [vmem:[#allocation2 + $0x948] sm:$0xff]
    %v405 = vld [vmem:[#allocation2 + $0x950] sm:$0xff]
    %v406 = vld [vmem:[#allocation2 + $0x958] sm:$0xff]
    %v407 = vld [vmem:[#allocation2 + $0x960] sm:$0xff]
    %v408 = vld [vmem:[#allocation2 + $0x968] sm:$0xff]
    %v409 = vld [vmem:[#allocation2 + $0x970] sm:$0xff]
    %v410 = vld [vmem:[#allocation2 + $0x978] sm:$0xff]
    %v411 = vld [vmem:[#allocation2 + $0x980] sm:$0xff]
    %v412 = vld [vmem:[#allocation2 + $0x988] sm:$0xff]
    %v413 = vld [vmem:[#allocation2 + $0x990] sm:$0xff]
    %v414 = vld [vmem:[#allocation2 + $0x998] sm:$0xff]
    %v415 = vld [vmem:[#allocation2 + $0x9a0] sm:$0xff]
    %v416 = vld [vmem:[#allocation2 + $0x9a8] sm:$0xff]
    %v417 = vld [vmem:[#allocation2 + $0x9b0] sm:$0xff]
    %v418 = vld [vmem:[#allocation2 + $0x9b8] sm:$0xff]
    %v419 = vld [vmem:[#allocation2 + $0x9c0] sm:$0xff]
    %v420 = vld [vmem:[#allocation2 + $0x9c8] sm:$0xff]
    %v421 = vld [vmem:[#allocation2 + $0x9d0] sm:$0xff]
    %v422 = vld [vmem:[#allocation2 + $0x9d8] sm:$0xff]
    %v423 = vld [vmem:[#allocation2 + $0x9e0] sm:$0xff]
    %v424 = vld [vmem:[#allocation2 + $0x9e8] sm:$0xff]
    %v425 = vld [vmem:[#allocation2 + $0x9f0] sm:$0xff]
    %v426 = vld [vmem:[#allocation2 + $0x9f8] sm:$0xff]
    %v427 = vld [vmem:[#allocation2 + $0xa00] sm:$0xff]
    %v428 = vld [vmem:[#allocation2 + $0xa08] sm:$0xff]
    %v429 = vld [vmem:[#allocation2 + $0xa10] sm:$0xff]
    %v430 = vld [vmem:[#allocation2 + $0xa18] sm:$0xff]
    %v431 = vld [vmem:[#allocation2 + $0xa20] sm:$0xff]
    %v432 = vld [vmem:[#allocation2 + $0xa28] sm:$0xff]
    %v433 = vld [vmem:[#allocation2 + $0xa30] sm:$0xff]
    %v434 = vld [vmem:[#allocation2 + $0xa38] sm:$0xff]
    %v435 = vld [vmem:[#allocation2 + $0xa40] sm:$0xff]
    %v436 = vld [vmem:[#allocation2 + $0xa48] sm:$0xff]
    %v437 = vld [vmem:[#allocation2 + $0xa50] sm:$0xff]
    %v438 = vld [vmem:[#allocation2 + $0xa58] sm:$0xff]
    %v439 = vld [vmem:[#allocation2 + $0xa60] sm:$0xff]
    %v440 = vld [vmem:[#allocation2 + $0xa68] sm:$0xff]
    %v441 = vld [vmem:[#allocation2 + $0xa70] sm:$0xff]
    %v442 = vld [vmem:[#allocation2 + $0xa78] sm:$0xff]
    %v443 = vld [vmem:[#allocation2 + $0xa80] sm:$0xff]
    %v444 = vld [vmem:[#allocation2 + $0xa88] sm:$0xff]
    %v445 = vld [vmem:[#allocation2 + $0xa90] sm:$0xff]
    %v446 = vld [vmem:[#allocation2 + $0xa98] sm:$0xff]
    %v447 = vld [vmem:[#allocation2 + $0xaa0] sm:$0xff]
    %v448 = vld [vmem:[#allocation2 + $0xaa8] sm:$0xff]
    %v449 = vld [vmem:[#allocation2 + $0xab0] sm:$0xff]
    %v450 = vld [vmem:[#allocation2 + $0xab8] sm:$0xff]
    %v451 = vld [vmem:[#allocation2 + $0xac0] sm:$0xff]
    %v452 = vld [vmem:[#allocation2 + $0xac8] sm:$0xff]
    %v453 = vld [vmem:[#allocation2 + $0xad0] sm:$0xff]
    %v454 = vld [vmem:[#allocation2 + $0xad8] sm:$0xff]
    %v455 = vld [vmem:[#allocation2 + $0xae0] sm:$0xff]
    %v456 = vld [vmem:[#allocation2 + $0xae8] sm:$0xff]
    %v457 = vld [vmem:[#allocation2 + $0xaf0] sm:$0xff]
    %v458 = vld [vmem:[#allocation2 + $0xaf8] sm:$0xff]
    %v459 = vld [vmem:[#allocation2 + $0xb00] sm:$0xff]
    %v460 = vld [vmem:[#allocation2 + $0xb08] sm:$0xff]
    %v461 = vld [vmem:[#allocation2 + $0xb10] sm:$0xff]
    %v462 = vld [vmem:[#allocation2 + $0xb18] sm:$0xff]
    %v463 = vld [vmem:[#allocation2 + $0xb20] sm:$0xff]
    %v464 = vld [vmem:[#allocation2 + $0xb28] sm:$0xff]
    %v465 = vld [vmem:[#allocation2 + $0xb30] sm:$0xff]
    %v466 = vld [vmem:[#allocation2 + $0xb38] sm:$0xff]
    %v467 = vld [vmem:[#allocation2 + $0xb40] sm:$0xff]
    %v468 = vld [vmem:[#allocation2 + $0xb48] sm:$0xff]
    %v469 = vld [vmem:[#allocation2 + $0xb50] sm:$0xff]
    %v470 = vld [vmem:[#allocation2 + $0xb58] sm:$0xff]
    %v471 = vld [vmem:[#allocation2 + $0xb60] sm:$0xff]
    %v472 = vld [vmem:[#allocation2 + $0xb68] sm:$0xff]
    %v473 = vld [vmem:[#allocation2 + $0xb70] sm:$0xff]
    %v474 = vld [vmem:[#allocation2 + $0xb78] sm:$0xff]
    %v475 = vld [vmem:[#allocation2 + $0xb80] sm:$0xff]
    %v476 = vld [vmem:[#allocation2 + $0xb88] sm:$0xff]
    %v477 = vld [vmem:[#allocation2 + $0xb90] sm:$0xff]
    %v478 = vld [vmem:[#allocation2 + $0xb98] sm:$0xff]
    %v479 = vld [vmem:[#allocation2 + $0xba0] sm:$0xff]
    %v480 = vld [vmem:[#allocation2 + $0xba8] sm:$0xff]
    %v481 = vld [vmem:[#allocation2 + $0xbb0] sm:$0xff]
    %v482 = vld [vmem:[#allocation2 + $0xbb8] sm:$0xff]
    %v483 = vld [vmem:[#allocation2 + $0xbc0] sm:$0xff]
    %v484 = vld [vmem:[#allocation2 + $0xbc8] sm:$0xff]
    %v485 = vld [vmem:[#allocation2 + $0xbd0] sm:$0xff]
    %v486 = vld [vmem:[#allocation2 + $0xbd8] sm:$0xff]
    %v487 = vld [vmem:[#allocation2 + $0xbe0] sm:$0xff]
    %v488 = vld [vmem:[#allocation2 + $0xbe8] sm:$0xff]
    %v489 = vld [vmem:[#allocation2 + $0xbf0] sm:$0xff]
    %v490 = vld [vmem:[#allocation2 + $0xbf8] sm:$0xff]
    %v491 = vld [vmem:[#allocation2 + $0xc00] sm:$0xff]
    %v492 = vld [vmem:[#allocation2 + $0xc08] sm:$0xff]
    %v493 = vld [vmem:[#allocation2 + $0xc10] sm:$0xff]
    %v494 = vld [vmem:[#allocation2 + $0xc18] sm:$0xff]
    %v495 = vld [vmem:[#allocation2 + $0xc20] sm:$0xff]
    %v496 = vld [vmem:[#allocation2 + $0xc28] sm:$0xff]
    %v497 = vld [vmem:[#allocation2 + $0xc30] sm:$0xff]
    %v498 = vld [vmem:[#allocation2 + $0xc38] sm:$0xff]
    %v499 = vld [vmem:[#allocation2 + $0xc40] sm:$0xff]
    %v500 = vld [vmem:[#allocation2 + $0xc48] sm:$0xff]
    %v501 = vld [vmem:[#allocation2 + $0xc50] sm:$0xff]
    %v502 = vld [vmem:[#allocation2 + $0xc58] sm:$0xff]
    %v503 = vld [vmem:[#allocation2 + $0xc60] sm:$0xff]
    %v504 = vld [vmem:[#allocation2 + $0xc68] sm:$0xff]
    %v505 = vld [vmem:[#allocation2 + $0xc70] sm:$0xff]
    %v506 = vld [vmem:[#allocation2 + $0xc78] sm:$0xff]
    %v507 = vld [vmem:[#allocation2 + $0xc80] sm:$0xff]
    %v508 = vld [vmem:[#allocation2 + $0xc88] sm:$0xff]
    %v509 = vld [vmem:[#allocation2 + $0xc90] sm:$0xff]
    %v510 = vld [vmem:[#allocation2 + $0xc98] sm:$0xff]
    %v511 = vld [vmem:[#allocation2 + $0xca0] sm:$0xff]
    %v512 = vld [vmem:[#allocation2 + $0xca8] sm:$0xff]
    %v513 = vld [vmem:[#allocation2 + $0xcb0] sm:$0xff]
    %v514 = vld [vmem:[#allocation2 + $0xcb8] sm:$0xff]
    %v515 = vld [vmem:[#allocation2 + $0xcc0] sm:$0xff]
    %v516 = vld [vmem:[#allocation2 + $0xcc8] sm:$0xff]
    %v517 = vld [vmem:[#allocation2 + $0xcd0] sm:$0xff]
    %v518 = vld [vmem:[#allocation2 + $0xcd8] sm:$0xff]
    %v519 = vld [vmem:[#allocation2 + $0xce0] sm:$0xff]
    %v520 = vld [vmem:[#allocation2 + $0xce8] sm:$0xff]
    %v521 = vld [vmem:[#allocation2 + $0xcf0] sm:$0xff]
    %v522 = vld [vmem:[#allocation2 + $0xcf8] sm:$0xff]
    %v523 = vld [vmem:[#allocation2 + $0xd00] sm:$0xff]
    %v524 = vld [vmem:[#allocation2 + $0xd08] sm:$0xff]
    %v525 = vld [vmem:[#allocation2 + $0xd10] sm:$0xff]
    %v526 = vld [vmem:[#allocation2 + $0xd18] sm:$0xff]
    %v527 = vld [vmem:[#allocation2 + $0xd20] sm:$0xff]
    %v528 = vld [vmem:[#allocation2 + $0xd28] sm:$0xff]
    %v529 = vld [vmem:[#allocation2 + $0xd30] sm:$0xff]
    %v530 = vld [vmem:[#allocation2 + $0xd38] sm:$0xff]
    %v531 = vld [vmem:[#allocation2 + $0xd40] sm:$0xff]
    %v532 = vld [vmem:[#allocation2 + $0xd48] sm:$0xff]
    %v533 = vld [vmem:[#allocation2 + $0xd50] sm:$0xff]
    %v534 = vld [vmem:[#allocation2 + $0xd58] sm:$0xff]
    %v535 = vld [vmem:[#allocation2 + $0xd60] sm:$0xff]
    %v536 = vld [vmem:[#allocation2 + $0xd68] sm:$0xff]
    %v537 = vld [vmem:[#allocation2 + $0xd70] sm:$0xff]
    %v538 = vld [vmem:[#allocation2 + $0xd78] sm:$0xff]
    %v539 = vld [vmem:[#allocation2 + $0xd80] sm:$0xff]
    %v540 = vld [vmem:[#allocation2 + $0xd88] sm:$0xff]
    %v541 = vld [vmem:[#allocation2 + $0xd90] sm:$0xff]
    %v542 = vld [vmem:[#allocation2 + $0xd98] sm:$0xff]
    %v543 = vld [vmem:[#allocation2 + $0xda0] sm:$0xff]
    %v544 = vld [vmem:[#allocation2 + $0xda8] sm:$0xff]
    %v545 = vld [vmem:[#allocation2 + $0xdb0] sm:$0xff]
    %v546 = vld [vmem:[#allocation2 + $0xdb8] sm:$0xff]
    %v547 = vld [vmem:[#allocation2 + $0xdc0] sm:$0xff]
    %v548 = vld [vmem:[#allocation2 + $0xdc8] sm:$0xff]
    %v549 = vld [vmem:[#allocation2 + $0xdd0] sm:$0xff]
    %v550 = vld [vmem:[#allocation2 + $0xdd8] sm:$0xff]
    %v551 = vld [vmem:[#allocation2 + $0xde0] sm:$0xff]
    %v552 = vld [vmem:[#allocation2 + $0xde8] sm:$0xff]
    %v553 = vld [vmem:[#allocation2 + $0xdf0] sm:$0xff]
    %v554 = vld [vmem:[#allocation2 + $0xdf8] sm:$0xff]
    %v555 = vld [vmem:[#allocation2 + $0xe00] sm:$0xff]
    %v556 = vld [vmem:[#allocation2 + $0xe08] sm:$0xff]
    %v557 = vld [vmem:[#allocation2 + $0xe10] sm:$0xff]
    %v558 = vld [vmem:[#allocation2 + $0xe18] sm:$0xff]
    %v559 = vld [vmem:[#allocation2 + $0xe20] sm:$0xff]
    %v560 = vld [vmem:[#allocation2 + $0xe28] sm:$0xff]
    %v561 = vld [vmem:[#allocation2 + $0xe30] sm:$0xff]
    %v562 = vld [vmem:[#allocation2 + $0xe38] sm:$0xff]
    %v563 = vld [vmem:[#allocation2 + $0xe40] sm:$0xff]
    %v564 = vld [vmem:[#allocation2 + $0xe48] sm:$0xff]
    %v565 = vld [vmem:[#allocation2 + $0xe50] sm:$0xff]
    %v566 = vld [vmem:[#allocation2 + $0xe58] sm:$0xff]
    %v567 = vld [vmem:[#allocation2 + $0xe60] sm:$0xff]
    %v568 = vld [vmem:[#allocation2 + $0xe68] sm:$0xff]
    %v569 = vld [vmem:[#allocation2 + $0xe70] sm:$0xff]
    %v570 = vld [vmem:[#allocation2 + $0xe78] sm:$0xff]
    %v571 = vld [vmem:[#allocation2 + $0xe80] sm:$0xff]
    %v572 = vld [vmem:[#allocation2 + $0xe88] sm:$0xff]
    %v573 = vld [vmem:[#allocation2 + $0xe90] sm:$0xff]
    %v574 = vld [vmem:[#allocation2 + $0xe98] sm:$0xff]
    %v575 = vld [vmem:[#allocation2 + $0xea0] sm:$0xff]
    %v576 = vld [vmem:[#allocation2 + $0xea8] sm:$0xff]
    %v577 = vld [vmem:[#allocation2 + $0xeb0] sm:$0xff]
    %v578 = vld [vmem:[#allocation2 + $0xeb8] sm:$0xff]
    %v579 = vld [vmem:[#allocation2 + $0xec0] sm:$0xff]
    %v580 = vld [vmem:[#allocation2 + $0xec8] sm:$0xff]
    %v581 = vld [vmem:[#allocation2 + $0xed0] sm:$0xff]
    %v582 = vld [vmem:[#allocation2 + $0xed8] sm:$0xff]
    %v583 = vld [vmem:[#allocation2 + $0xee0] sm:$0xff]
    %v584 = vld [vmem:[#allocation2 + $0xee8] sm:$0xff]
    %v585 = vld [vmem:[#allocation2 + $0xef0] sm:$0xff]
    %v586 = vld [vmem:[#allocation2 + $0xef8] sm:$0xff]
    %v587 = vld [vmem:[#allocation2 + $0xf00] sm:$0xff]
    %v588 = vld [vmem:[#allocation2 + $0xf08] sm:$0xff]
    %v589 = vld [vmem:[#allocation2 + $0xf10] sm:$0xff]
    %v590 = vld [vmem:[#allocation2 + $0xf18] sm:$0xff]
    %v591 = vld [vmem:[#allocation2 + $0xf20] sm:$0xff]
    %v592 = vld [vmem:[#allocation2 + $0xf28] sm:$0xff]
    %v593 = vld [vmem:[#allocation2 + $0xf30] sm:$0xff]
    %v594 = vld [vmem:[#allocation2 + $0xf38] sm:$0xff]
    %v595 = vld [vmem:[#allocation2 + $0xf40] sm:$0xff]
    %v596 = vld [vmem:[#allocation2 + $0xf48] sm:$0xff]
    %v597 = vld [vmem:[#allocation2 + $0xf50] sm:$0xff]
    %v598 = vld [vmem:[#allocation2 + $0xf58] sm:$0xff]
    %v599 = vld [vmem:[#allocation2 + $0xf60] sm:$0xff]
    %v600 = vld [vmem:[#allocation2 + $0xf68] sm:$0xff]
    %v601 = vld [vmem:[#allocation2 + $0xf70] sm:$0xff]
    %v602 = vld [vmem:[#allocation2 + $0xf78] sm:$0xff]
    %v603 = vld [vmem:[#allocation2 + $0xf80] sm:$0xff]
    %v604 = vld [vmem:[#allocation2 + $0xf88] sm:$0xff]
    %v605 = vld [vmem:[#allocation2 + $0xf90] sm:$0xff]
    %v606 = vld [vmem:[#allocation2 + $0xf98] sm:$0xff]
    %v607 = vld [vmem:[#allocation2 + $0xfa0] sm:$0xff]
    %v608 = vld [vmem:[#allocation2 + $0xfa8] sm:$0xff]
    %v609 = vld [vmem:[#allocation2 + $0xfb0] sm:$0xff]
    %v610 = vld [vmem:[#allocation2 + $0xfb8] sm:$0xff]
    %v611 = vld [vmem:[#allocation4] sm:$0xff]
    %v613 = vlaneseq
    %v614 = vshrl.u32 %v613, 7
    %v615 = vsub.s32 0, %v614
    %v616 = vrot.slane %v611, %v615
    %v617 = vlaneseq
    %v618 = vshrl.u32 %v617, 7
    %v619 = vsub.s32 1, %v618
    %v620 = vrot.slane %v611, %v619
    %v621 = vlaneseq
    %v622 = vshrl.u32 %v621, 7
    %v623 = vsub.s32 2, %v622
    %v624 = vrot.slane %v611, %v623
    %v625 = vlaneseq
    %v626 = vshrl.u32 %v625, 7
    %v627 = vsub.s32 3, %v626
    %v628 = vrot.slane %v611, %v627
    %v629 = vlaneseq
    %v630 = vshrl.u32 %v629, 7
    %v631 = vsub.s32 4, %v630
    %v632 = vrot.slane %v611, %v631
    %v633 = vlaneseq
    %v634 = vshrl.u32 %v633, 7
    %v635 = vsub.s32 5, %v634
    %v636 = vrot.slane %v611, %v635
    %v637 = vlaneseq
    %v638 = vshrl.u32 %v637, 7
    %v639 = vsub.s32 6, %v638
    %v640 = vrot.slane %v611, %v639
    %v641 = vlaneseq
    %v642 = vshrl.u32 %v641, 7
    %v643 = vsub.s32 7, %v642
    %v644 = vrot.slane %v611, %v643
    %v657 = vunpack.c.l.b16 %v103
    %v658 = vunpack.c.h.b16 %v103
    %v659 = vunpack.c.l.b16 %v104
    %v660 = vunpack.c.h.b16 %v104
    %v661 = vunpack.c.l.b16 %v105
    %v662 = vunpack.c.h.b16 %v105
    %v663 = vunpack.c.l.b16 %v106
    %v664 = vunpack.c.h.b16 %v106
    %v665 = vpack.c.b16 %v657, %v657
    %v666 = vpack.c.b16 %v658, %v658
    %v667 = vpack.c.b16 %v659, %v659
    %v668 = vpack.c.b16 %v660, %v660
    %v669 = vpack.c.b16 %v661, %v661
    %v670 = vpack.c.b16 %v662, %v662
    %v671 = vpack.c.b16 %v663, %v663
    %v672 = vpack.c.b16 %v664, %v664
    %v1184 = vunpack.c.l.b16 %v107
    %v1185 = vunpack.c.h.b16 %v107
    %v1186 = vunpack.c.l.b16 %v108
    %v1187 = vunpack.c.h.b16 %v108
    %v1188 = vunpack.c.l.b16 %v109
    %v1189 = vunpack.c.h.b16 %v109
    %v1190 = vunpack.c.l.b16 %v110
    %v1191 = vunpack.c.h.b16 %v110
    %v1192 = vunpack.c.l.b16 %v111
    %v1193 = vunpack.c.h.b16 %v111
    %v1194 = vunpack.c.l.b16 %v112
    %v1195 = vunpack.c.h.b16 %v112
    %v1196 = vunpack.c.l.b16 %v113
    %v1197 = vunpack.c.h.b16 %v113
    %v1198 = vunpack.c.l.b16 %v114
    %v1199 = vunpack.c.h.b16 %v114
    %v1200 = vunpack.c.l.b16 %v115
    %v1201 = vunpack.c.h.b16 %v115
    %v1202 = vunpack.c.l.b16 %v116
    %v1203 = vunpack.c.h.b16 %v116
    %v1204 = vunpack.c.l.b16 %v117
    %v1205 = vunpack.c.h.b16 %v117
    %v1206 = vunpack.c.l.b16 %v118
    %v1207 = vunpack.c.h.b16 %v118
    %v1208 = vunpack.c.l.b16 %v119
    %v1209 = vunpack.c.h.b16 %v119
    %v1210 = vunpack.c.l.b16 %v120
    %v1211 = vunpack.c.h.b16 %v120
    %v1212 = vunpack.c.l.b16 %v121
    %v1213 = vunpack.c.h.b16 %v121
    %v1214 = vunpack.c.l.b16 %v122
    %v1215 = vunpack.c.h.b16 %v122
    %v1216 = vunpack.c.l.b16 %v123
    %v1217 = vunpack.c.h.b16 %v123
    %v1218 = vunpack.c.l.b16 %v124
    %v1219 = vunpack.c.h.b16 %v124
    %v1220 = vunpack.c.l.b16 %v125
    %v1221 = vunpack.c.h.b16 %v125
    %v1222 = vunpack.c.l.b16 %v126
    %v1223 = vunpack.c.h.b16 %v126
    %v1224 = vunpack.c.l.b16 %v127
    %v1225 = vunpack.c.h.b16 %v127
    %v1226 = vunpack.c.l.b16 %v128
    %v1227 = vunpack.c.h.b16 %v128
    %v1228 = vunpack.c.l.b16 %v129
    %v1229 = vunpack.c.h.b16 %v129
    %v1230 = vunpack.c.l.b16 %v130
    %v1231 = vunpack.c.h.b16 %v130
    %v1232 = vunpack.c.l.b16 %v131
    %v1233 = vunpack.c.h.b16 %v131
    %v1234 = vunpack.c.l.b16 %v132
    %v1235 = vunpack.c.h.b16 %v132
    %v1236 = vunpack.c.l.b16 %v133
    %v1237 = vunpack.c.h.b16 %v133
    %v1238 = vunpack.c.l.b16 %v134
    %v1239 = vunpack.c.h.b16 %v134
    %v1240 = vunpack.c.l.b16 %v135
    %v1241 = vunpack.c.h.b16 %v135
    %v1242 = vunpack.c.l.b16 %v136
    %v1243 = vunpack.c.h.b16 %v136
    %v1244 = vunpack.c.l.b16 %v137
    %v1245 = vunpack.c.h.b16 %v137
    %v1246 = vunpack.c.l.b16 %v138
    %v1247 = vunpack.c.h.b16 %v138
    %v1248 = vunpack.c.l.b16 %v139
    %v1249 = vunpack.c.h.b16 %v139
    %v1250 = vunpack.c.l.b16 %v140
    %v1251 = vunpack.c.h.b16 %v140
    %v1252 = vunpack.c.l.b16 %v141
    %v1253 = vunpack.c.h.b16 %v141
    %v1254 = vunpack.c.l.b16 %v142
    %v1255 = vunpack.c.h.b16 %v142
    %v1256 = vunpack.c.l.b16 %v143
    %v1257 = vunpack.c.h.b16 %v143
    %v1258 = vunpack.c.l.b16 %v144
    %v1259 = vunpack.c.h.b16 %v144
    %v1260 = vunpack.c.l.b16 %v145
    %v1261 = vunpack.c.h.b16 %v145
    %v1262 = vunpack.c.l.b16 %v146
    %v1263 = vunpack.c.h.b16 %v146
    %v1264 = vunpack.c.l.b16 %v147
    %v1265 = vunpack.c.h.b16 %v147
    %v1266 = vunpack.c.l.b16 %v148
    %v1267 = vunpack.c.h.b16 %v148
    %v1268 = vunpack.c.l.b16 %v149
    %v1269 = vunpack.c.h.b16 %v149
    %v1270 = vunpack.c.l.b16 %v150
    %v1271 = vunpack.c.h.b16 %v150
    %v1272 = vunpack.c.l.b16 %v151
    %v1273 = vunpack.c.h.b16 %v151
    %v1274 = vunpack.c.l.b16 %v152
    %v1275 = vunpack.c.h.b16 %v152
    %v1276 = vunpack.c.l.b16 %v153
    %v1277 = vunpack.c.h.b16 %v153
    %v1278 = vunpack.c.l.b16 %v154
    %v1279 = vunpack.c.h.b16 %v154
    %v1280 = vunpack.c.l.b16 %v155
    %v1281 = vunpack.c.h.b16 %v155
    %v1282 = vunpack.c.l.b16 %v156
    %v1283 = vunpack.c.h.b16 %v156
    %v1284 = vunpack.c.l.b16 %v157
    %v1285 = vunpack.c.h.b16 %v157
    %v1286 = vunpack.c.l.b16 %v158
    %v1287 = vunpack.c.h.b16 %v158
    %v1288 = vunpack.c.l.b16 %v159
    %v1289 = vunpack.c.h.b16 %v159
    %v1290 = vunpack.c.l.b16 %v160
    %v1291 = vunpack.c.h.b16 %v160
    %v1292 = vunpack.c.l.b16 %v161
    %v1293 = vunpack.c.h.b16 %v161
    %v1294 = vunpack.c.l.b16 %v162
    %v1295 = vunpack.c.h.b16 %v162
    %v1296 = vunpack.c.l.b16 %v163
    %v1297 = vunpack.c.h.b16 %v163
    %v1298 = vunpack.c.l.b16 %v164
    %v1299 = vunpack.c.h.b16 %v164
    %v1300 = vunpack.c.l.b16 %v165
    %v1301 = vunpack.c.h.b16 %v165
    %v1302 = vunpack.c.l.b16 %v166
    %v1303 = vunpack.c.h.b16 %v166
    %v1304 = vunpack.c.l.b16 %v167
    %v1305 = vunpack.c.h.b16 %v167
    %v1306 = vunpack.c.l.b16 %v168
    %v1307 = vunpack.c.h.b16 %v168
    %v1308 = vunpack.c.l.b16 %v169
    %v1309 = vunpack.c.h.b16 %v169
    %v1310 = vunpack.c.l.b16 %v170
    %v1311 = vunpack.c.h.b16 %v170
    %v1312 = vunpack.c.l.b16 %v171
    %v1313 = vunpack.c.h.b16 %v171
    %v1314 = vunpack.c.l.b16 %v172
    %v1315 = vunpack.c.h.b16 %v172
    %v1316 = vunpack.c.l.b16 %v173
    %v1317 = vunpack.c.h.b16 %v173
    %v1318 = vunpack.c.l.b16 %v174
    %v1319 = vunpack.c.h.b16 %v174
    %v1320 = vunpack.c.l.b16 %v175
    %v1321 = vunpack.c.h.b16 %v175
    %v1322 = vunpack.c.l.b16 %v176
    %v1323 = vunpack.c.h.b16 %v176
    %v1324 = vunpack.c.l.b16 %v177
    %v1325 = vunpack.c.h.b16 %v177
    %v1326 = vunpack.c.l.b16 %v178
    %v1327 = vunpack.c.h.b16 %v178
    %v1328 = vunpack.c.l.b16 %v179
    %v1329 = vunpack.c.h.b16 %v179
    %v1330 = vunpack.c.l.b16 %v180
    %v1331 = vunpack.c.h.b16 %v180
    %v1332 = vunpack.c.l.b16 %v181
    %v1333 = vunpack.c.h.b16 %v181
    %v1334 = vunpack.c.l.b16 %v182
    %v1335 = vunpack.c.h.b16 %v182
    %v1336 = vunpack.c.l.b16 %v183
    %v1337 = vunpack.c.h.b16 %v183
    %v1338 = vunpack.c.l.b16 %v184
    %v1339 = vunpack.c.h.b16 %v184
    %v1340 = vunpack.c.l.b16 %v185
    %v1341 = vunpack.c.h.b16 %v185
    %v1342 = vunpack.c.l.b16 %v186
    %v1343 = vunpack.c.h.b16 %v186
    %v1344 = vunpack.c.l.b16 %v187
    %v1345 = vunpack.c.h.b16 %v187
    %v1346 = vunpack.c.l.b16 %v188
    %v1347 = vunpack.c.h.b16 %v188
    %v1348 = vunpack.c.l.b16 %v189
    %v1349 = vunpack.c.h.b16 %v189
    %v1350 = vunpack.c.l.b16 %v190
    %v1351 = vunpack.c.h.b16 %v190
    %v1352 = vunpack.c.l.b16 %v191
    %v1353 = vunpack.c.h.b16 %v191
    %v1354 = vunpack.c.l.b16 %v192
    %v1355 = vunpack.c.h.b16 %v192
    %v1356 = vunpack.c.l.b16 %v193
    %v1357 = vunpack.c.h.b16 %v193
    %v1358 = vunpack.c.l.b16 %v194
    %v1359 = vunpack.c.h.b16 %v194
    %v1360 = vunpack.c.l.b16 %v195
    %v1361 = vunpack.c.h.b16 %v195
    %v1362 = vunpack.c.l.b16 %v196
    %v1363 = vunpack.c.h.b16 %v196
    %v1364 = vunpack.c.l.b16 %v197
    %v1365 = vunpack.c.h.b16 %v197
    %v1366 = vunpack.c.l.b16 %v198
    %v1367 = vunpack.c.h.b16 %v198
    %v1368 = vunpack.c.l.b16 %v199
    %v1369 = vunpack.c.h.b16 %v199
    %v1370 = vunpack.c.l.b16 %v200
    %v1371 = vunpack.c.h.b16 %v200
    %v1372 = vunpack.c.l.b16 %v201
    %v1373 = vunpack.c.h.b16 %v201
    %v1374 = vunpack.c.l.b16 %v202
    %v1375 = vunpack.c.h.b16 %v202
    %v1376 = vunpack.c.l.b16 %v203
    %v1377 = vunpack.c.h.b16 %v203
    %v1378 = vunpack.c.l.b16 %v204
    %v1379 = vunpack.c.h.b16 %v204
    %v1380 = vunpack.c.l.b16 %v205
    %v1381 = vunpack.c.h.b16 %v205
    %v1382 = vunpack.c.l.b16 %v206
    %v1383 = vunpack.c.h.b16 %v206
    %v1384 = vunpack.c.l.b16 %v207
    %v1385 = vunpack.c.h.b16 %v207
    %v1386 = vunpack.c.l.b16 %v208
    %v1387 = vunpack.c.h.b16 %v208
    %v1388 = vunpack.c.l.b16 %v209
    %v1389 = vunpack.c.h.b16 %v209
    %v1390 = vunpack.c.l.b16 %v210
    %v1391 = vunpack.c.h.b16 %v210
    %v1392 = vunpack.c.l.b16 %v211
    %v1393 = vunpack.c.h.b16 %v211
    %v1394 = vunpack.c.l.b16 %v212
    %v1395 = vunpack.c.h.b16 %v212
    %v1396 = vunpack.c.l.b16 %v213
    %v1397 = vunpack.c.h.b16 %v213
    %v1398 = vunpack.c.l.b16 %v214
    %v1399 = vunpack.c.h.b16 %v214
    %v1400 = vunpack.c.l.b16 %v215
    %v1401 = vunpack.c.h.b16 %v215
    %v1402 = vunpack.c.l.b16 %v216
    %v1403 = vunpack.c.h.b16 %v216
    %v1404 = vunpack.c.l.b16 %v217
    %v1405 = vunpack.c.h.b16 %v217
    %v1406 = vunpack.c.l.b16 %v218
    %v1407 = vunpack.c.h.b16 %v218
    %v1408 = vunpack.c.l.b16 %v219
    %v1409 = vunpack.c.h.b16 %v219
    %v1410 = vunpack.c.l.b16 %v220
    %v1411 = vunpack.c.h.b16 %v220
    %v1412 = vunpack.c.l.b16 %v221
    %v1413 = vunpack.c.h.b16 %v221
    %v1414 = vunpack.c.l.b16 %v222
    %v1415 = vunpack.c.h.b16 %v222
    %v1416 = vunpack.c.l.b16 %v223
    %v1417 = vunpack.c.h.b16 %v223
    %v1418 = vunpack.c.l.b16 %v224
    %v1419 = vunpack.c.h.b16 %v224
    %v1420 = vunpack.c.l.b16 %v225
    %v1421 = vunpack.c.h.b16 %v225
    %v1422 = vunpack.c.l.b16 %v226
    %v1423 = vunpack.c.h.b16 %v226
    %v1424 = vunpack.c.l.b16 %v227
    %v1425 = vunpack.c.h.b16 %v227
    %v1426 = vunpack.c.l.b16 %v228
    %v1427 = vunpack.c.h.b16 %v228
    %v1428 = vunpack.c.l.b16 %v229
    %v1429 = vunpack.c.h.b16 %v229
    %v1430 = vunpack.c.l.b16 %v230
    %v1431 = vunpack.c.h.b16 %v230
    %v1432 = vunpack.c.l.b16 %v231
    %v1433 = vunpack.c.h.b16 %v231
    %v1434 = vunpack.c.l.b16 %v232
    %v1435 = vunpack.c.h.b16 %v232
    %v1436 = vunpack.c.l.b16 %v233
    %v1437 = vunpack.c.h.b16 %v233
    %v1438 = vunpack.c.l.b16 %v234
    %v1439 = vunpack.c.h.b16 %v234
    %v1440 = vunpack.c.l.b16 %v235
    %v1441 = vunpack.c.h.b16 %v235
    %v1442 = vunpack.c.l.b16 %v236
    %v1443 = vunpack.c.h.b16 %v236
    %v1444 = vunpack.c.l.b16 %v237
    %v1445 = vunpack.c.h.b16 %v237
    %v1446 = vunpack.c.l.b16 %v238
    %v1447 = vunpack.c.h.b16 %v238
    %v1448 = vunpack.c.l.b16 %v239
    %v1449 = vunpack.c.h.b16 %v239
    %v1450 = vunpack.c.l.b16 %v240
    %v1451 = vunpack.c.h.b16 %v240
    %v1452 = vunpack.c.l.b16 %v241
    %v1453 = vunpack.c.h.b16 %v241
    %v1454 = vunpack.c.l.b16 %v242
    %v1455 = vunpack.c.h.b16 %v242
    %v1456 = vunpack.c.l.b16 %v243
    %v1457 = vunpack.c.h.b16 %v243
    %v1458 = vunpack.c.l.b16 %v244
    %v1459 = vunpack.c.h.b16 %v244
    %v1460 = vunpack.c.l.b16 %v245
    %v1461 = vunpack.c.h.b16 %v245
    %v1462 = vunpack.c.l.b16 %v246
    %v1463 = vunpack.c.h.b16 %v246
    %v1464 = vunpack.c.l.b16 %v247
    %v1465 = vunpack.c.h.b16 %v247
    %v1466 = vunpack.c.l.b16 %v248
    %v1467 = vunpack.c.h.b16 %v248
    %v1468 = vunpack.c.l.b16 %v249
    %v1469 = vunpack.c.h.b16 %v249
    %v1470 = vunpack.c.l.b16 %v250
    %v1471 = vunpack.c.h.b16 %v250
    %v1472 = vunpack.c.l.b16 %v251
    %v1473 = vunpack.c.h.b16 %v251
    %v1474 = vunpack.c.l.b16 %v252
    %v1475 = vunpack.c.h.b16 %v252
    %v1476 = vunpack.c.l.b16 %v253
    %v1477 = vunpack.c.h.b16 %v253
    %v1478 = vunpack.c.l.b16 %v254
    %v1479 = vunpack.c.h.b16 %v254
    %v1480 = vunpack.c.l.b16 %v255
    %v1481 = vunpack.c.h.b16 %v255
    %v1482 = vunpack.c.l.b16 %v256
    %v1483 = vunpack.c.h.b16 %v256
    %v1484 = vunpack.c.l.b16 %v257
    %v1485 = vunpack.c.h.b16 %v257
    %v1486 = vunpack.c.l.b16 %v258
    %v1487 = vunpack.c.h.b16 %v258
    %v1488 = vunpack.c.l.b16 %v259
    %v1489 = vunpack.c.h.b16 %v259
    %v1490 = vunpack.c.l.b16 %v260
    %v1491 = vunpack.c.h.b16 %v260
    %v1492 = vunpack.c.l.b16 %v261
    %v1493 = vunpack.c.h.b16 %v261
    %v1494 = vunpack.c.l.b16 %v262
    %v1495 = vunpack.c.h.b16 %v262
    %v1496 = vunpack.c.l.b16 %v263
    %v1497 = vunpack.c.h.b16 %v263
    %v1498 = vunpack.c.l.b16 %v264
    %v1499 = vunpack.c.h.b16 %v264
    %v1500 = vunpack.c.l.b16 %v265
    %v1501 = vunpack.c.h.b16 %v265
    %v1502 = vunpack.c.l.b16 %v266
    %v1503 = vunpack.c.h.b16 %v266
    %v1504 = vunpack.c.l.b16 %v267
    %v1505 = vunpack.c.h.b16 %v267
    %v1506 = vunpack.c.l.b16 %v268
    %v1507 = vunpack.c.h.b16 %v268
    %v1508 = vunpack.c.l.b16 %v269
    %v1509 = vunpack.c.h.b16 %v269
    %v1510 = vunpack.c.l.b16 %v270
    %v1511 = vunpack.c.h.b16 %v270
    %v1512 = vunpack.c.l.b16 %v271
    %v1513 = vunpack.c.h.b16 %v271
    %v1514 = vunpack.c.l.b16 %v272
    %v1515 = vunpack.c.h.b16 %v272
    %v1516 = vunpack.c.l.b16 %v273
    %v1517 = vunpack.c.h.b16 %v273
    %v1518 = vunpack.c.l.b16 %v274
    %v1519 = vunpack.c.h.b16 %v274
    %v1520 = vunpack.c.l.b16 %v275
    %v1521 = vunpack.c.h.b16 %v275
    %v1522 = vunpack.c.l.b16 %v276
    %v1523 = vunpack.c.h.b16 %v276
    %v1524 = vunpack.c.l.b16 %v277
    %v1525 = vunpack.c.h.b16 %v277
    %v1526 = vunpack.c.l.b16 %v278
    %v1527 = vunpack.c.h.b16 %v278
    %v1528 = vunpack.c.l.b16 %v279
    %v1529 = vunpack.c.h.b16 %v279
    %v1530 = vunpack.c.l.b16 %v280
    %v1531 = vunpack.c.h.b16 %v280
    %v1532 = vunpack.c.l.b16 %v281
    %v1533 = vunpack.c.h.b16 %v281
    %v1534 = vunpack.c.l.b16 %v282
    %v1535 = vunpack.c.h.b16 %v282
    %v1536 = vunpack.c.l.b16 %v283
    %v1537 = vunpack.c.h.b16 %v283
    %v1538 = vunpack.c.l.b16 %v284
    %v1539 = vunpack.c.h.b16 %v284
    %v1540 = vunpack.c.l.b16 %v285
    %v1541 = vunpack.c.h.b16 %v285
    %v1542 = vunpack.c.l.b16 %v286
    %v1543 = vunpack.c.h.b16 %v286
    %v1544 = vunpack.c.l.b16 %v287
    %v1545 = vunpack.c.h.b16 %v287
    %v1546 = vunpack.c.l.b16 %v288
    %v1547 = vunpack.c.h.b16 %v288
    %v1548 = vunpack.c.l.b16 %v289
    %v1549 = vunpack.c.h.b16 %v289
    %v1550 = vunpack.c.l.b16 %v290
    %v1551 = vunpack.c.h.b16 %v290
    %v1552 = vunpack.c.l.b16 %v291
    %v1553 = vunpack.c.h.b16 %v291
    %v1554 = vunpack.c.l.b16 %v292
    %v1555 = vunpack.c.h.b16 %v292
    %v1556 = vunpack.c.l.b16 %v293
    %v1557 = vunpack.c.h.b16 %v293
    %v1558 = vunpack.c.l.b16 %v294
    %v1559 = vunpack.c.h.b16 %v294
    %v1560 = vunpack.c.l.b16 %v295
    %v1561 = vunpack.c.h.b16 %v295
    %v1562 = vunpack.c.l.b16 %v296
    %v1563 = vunpack.c.h.b16 %v296
    %v1564 = vunpack.c.l.b16 %v297
    %v1565 = vunpack.c.h.b16 %v297
    %v1566 = vunpack.c.l.b16 %v298
    %v1567 = vunpack.c.h.b16 %v298
    %v1568 = vunpack.c.l.b16 %v299
    %v1569 = vunpack.c.h.b16 %v299
    %v1570 = vunpack.c.l.b16 %v300
    %v1571 = vunpack.c.h.b16 %v300
    %v1572 = vunpack.c.l.b16 %v301
    %v1573 = vunpack.c.h.b16 %v301
    %v1574 = vunpack.c.l.b16 %v302
    %v1575 = vunpack.c.h.b16 %v302
    %v1576 = vunpack.c.l.b16 %v303
    %v1577 = vunpack.c.h.b16 %v303
    %v1578 = vunpack.c.l.b16 %v304
    %v1579 = vunpack.c.h.b16 %v304
    %v1580 = vunpack.c.l.b16 %v305
    %v1581 = vunpack.c.h.b16 %v305
    %v1582 = vunpack.c.l.b16 %v306
    %v1583 = vunpack.c.h.b16 %v306
    %v1584 = vunpack.c.l.b16 %v307
    %v1585 = vunpack.c.h.b16 %v307
    %v1586 = vunpack.c.l.b16 %v308
    %v1587 = vunpack.c.h.b16 %v308
    %v1588 = vunpack.c.l.b16 %v309
    %v1589 = vunpack.c.h.b16 %v309
    %v1590 = vunpack.c.l.b16 %v310
    %v1591 = vunpack.c.h.b16 %v310
    %v1592 = vunpack.c.l.b16 %v311
    %v1593 = vunpack.c.h.b16 %v311
    %v1594 = vunpack.c.l.b16 %v312
    %v1595 = vunpack.c.h.b16 %v312
    %v1596 = vunpack.c.l.b16 %v313
    %v1597 = vunpack.c.h.b16 %v313
    %v1598 = vunpack.c.l.b16 %v314
    %v1599 = vunpack.c.h.b16 %v314
    %v1600 = vunpack.c.l.b16 %v315
    %v1601 = vunpack.c.h.b16 %v315
    %v1602 = vunpack.c.l.b16 %v316
    %v1603 = vunpack.c.h.b16 %v316
    %v1604 = vunpack.c.l.b16 %v317
    %v1605 = vunpack.c.h.b16 %v317
    %v1606 = vunpack.c.l.b16 %v318
    %v1607 = vunpack.c.h.b16 %v318
    %v1608 = vunpack.c.l.b16 %v319
    %v1609 = vunpack.c.h.b16 %v319
    %v1610 = vunpack.c.l.b16 %v320
    %v1611 = vunpack.c.h.b16 %v320
    %v1612 = vunpack.c.l.b16 %v321
    %v1613 = vunpack.c.h.b16 %v321
    %v1614 = vunpack.c.l.b16 %v322
    %v1615 = vunpack.c.h.b16 %v322
    %v1616 = vunpack.c.l.b16 %v323
    %v1617 = vunpack.c.h.b16 %v323
    %v1618 = vunpack.c.l.b16 %v324
    %v1619 = vunpack.c.h.b16 %v324
    %v1620 = vunpack.c.l.b16 %v325
    %v1621 = vunpack.c.h.b16 %v325
    %v1622 = vunpack.c.l.b16 %v326
    %v1623 = vunpack.c.h.b16 %v326
    %v1624 = vunpack.c.l.b16 %v327
    %v1625 = vunpack.c.h.b16 %v327
    %v1626 = vunpack.c.l.b16 %v328
    %v1627 = vunpack.c.h.b16 %v328
    %v1628 = vunpack.c.l.b16 %v329
    %v1629 = vunpack.c.h.b16 %v329
    %v1630 = vunpack.c.l.b16 %v330
    %v1631 = vunpack.c.h.b16 %v330
    %v1632 = vunpack.c.l.b16 %v331
    %v1633 = vunpack.c.h.b16 %v331
    %v1634 = vunpack.c.l.b16 %v332
    %v1635 = vunpack.c.h.b16 %v332
    %v1636 = vunpack.c.l.b16 %v333
    %v1637 = vunpack.c.h.b16 %v333
    %v1638 = vunpack.c.l.b16 %v334
    %v1639 = vunpack.c.h.b16 %v334
    %v1640 = vunpack.c.l.b16 %v335
    %v1641 = vunpack.c.h.b16 %v335
    %v1642 = vunpack.c.l.b16 %v336
    %v1643 = vunpack.c.h.b16 %v336
    %v1644 = vunpack.c.l.b16 %v337
    %v1645 = vunpack.c.h.b16 %v337
    %v1646 = vunpack.c.l.b16 %v338
    %v1647 = vunpack.c.h.b16 %v338
    %v1648 = vunpack.c.l.b16 %v339
    %v1649 = vunpack.c.h.b16 %v339
    %v1650 = vunpack.c.l.b16 %v340
    %v1651 = vunpack.c.h.b16 %v340
    %v1652 = vunpack.c.l.b16 %v341
    %v1653 = vunpack.c.h.b16 %v341
    %v1654 = vunpack.c.l.b16 %v342
    %v1655 = vunpack.c.h.b16 %v342
    %v1656 = vunpack.c.l.b16 %v343
    %v1657 = vunpack.c.h.b16 %v343
    %v1658 = vunpack.c.l.b16 %v344
    %v1659 = vunpack.c.h.b16 %v344
    %v1660 = vunpack.c.l.b16 %v345
    %v1661 = vunpack.c.h.b16 %v345
    %v1662 = vunpack.c.l.b16 %v346
    %v1663 = vunpack.c.h.b16 %v346
    %v1664 = vunpack.c.l.b16 %v347
    %v1665 = vunpack.c.h.b16 %v347
    %v1666 = vunpack.c.l.b16 %v348
    %v1667 = vunpack.c.h.b16 %v348
    %v1668 = vunpack.c.l.b16 %v349
    %v1669 = vunpack.c.h.b16 %v349
    %v1670 = vunpack.c.l.b16 %v350
    %v1671 = vunpack.c.h.b16 %v350
    %v1672 = vunpack.c.l.b16 %v351
    %v1673 = vunpack.c.h.b16 %v351
    %v1674 = vunpack.c.l.b16 %v352
    %v1675 = vunpack.c.h.b16 %v352
    %v1676 = vunpack.c.l.b16 %v353
    %v1677 = vunpack.c.h.b16 %v353
    %v1678 = vunpack.c.l.b16 %v354
    %v1679 = vunpack.c.h.b16 %v354
    %v1680 = vunpack.c.l.b16 %v355
    %v1681 = vunpack.c.h.b16 %v355
    %v1682 = vunpack.c.l.b16 %v356
    %v1683 = vunpack.c.h.b16 %v356
    %v1684 = vunpack.c.l.b16 %v357
    %v1685 = vunpack.c.h.b16 %v357
    %v1686 = vunpack.c.l.b16 %v358
    %v1687 = vunpack.c.h.b16 %v358
    %v1688 = vunpack.c.l.b16 %v359
    %v1689 = vunpack.c.h.b16 %v359
    %v1690 = vunpack.c.l.b16 %v360
    %v1691 = vunpack.c.h.b16 %v360
    %v1692 = vunpack.c.l.b16 %v361
    %v1693 = vunpack.c.h.b16 %v361
    %v1694 = vunpack.c.l.b16 %v362
    %v1695 = vunpack.c.h.b16 %v362
    %v1696 = vunpack.c.l.b16 %v363
    %v1697 = vunpack.c.h.b16 %v363
    %v1698 = vunpack.c.l.b16 %v364
    %v1699 = vunpack.c.h.b16 %v364
    %v1700 = vunpack.c.l.b16 %v365
    %v1701 = vunpack.c.h.b16 %v365
    %v1702 = vunpack.c.l.b16 %v366
    %v1703 = vunpack.c.h.b16 %v366
    %v1704 = vunpack.c.l.b16 %v367
    %v1705 = vunpack.c.h.b16 %v367
    %v1706 = vunpack.c.l.b16 %v368
    %v1707 = vunpack.c.h.b16 %v368
    %v1708 = vunpack.c.l.b16 %v369
    %v1709 = vunpack.c.h.b16 %v369
    %v1710 = vunpack.c.l.b16 %v370
    %v1711 = vunpack.c.h.b16 %v370
    %v1712 = vunpack.c.l.b16 %v371
    %v1713 = vunpack.c.h.b16 %v371
    %v1714 = vunpack.c.l.b16 %v372
    %v1715 = vunpack.c.h.b16 %v372
    %v1716 = vunpack.c.l.b16 %v373
    %v1717 = vunpack.c.h.b16 %v373
    %v1718 = vunpack.c.l.b16 %v374
    %v1719 = vunpack.c.h.b16 %v374
    %v1720 = vunpack.c.l.b16 %v375
    %v1721 = vunpack.c.h.b16 %v375
    %v1722 = vunpack.c.l.b16 %v376
    %v1723 = vunpack.c.h.b16 %v376
    %v1724 = vunpack.c.l.b16 %v377
    %v1725 = vunpack.c.h.b16 %v377
    %v1726 = vunpack.c.l.b16 %v378
    %v1727 = vunpack.c.h.b16 %v378
    %v1728 = vunpack.c.l.b16 %v379
    %v1729 = vunpack.c.h.b16 %v379
    %v1730 = vunpack.c.l.b16 %v380
    %v1731 = vunpack.c.h.b16 %v380
    %v1732 = vunpack.c.l.b16 %v381
    %v1733 = vunpack.c.h.b16 %v381
    %v1734 = vunpack.c.l.b16 %v382
    %v1735 = vunpack.c.h.b16 %v382
    %v1736 = vunpack.c.l.b16 %v383
    %v1737 = vunpack.c.h.b16 %v383
    %v1738 = vunpack.c.l.b16 %v384
    %v1739 = vunpack.c.h.b16 %v384
    %v1740 = vunpack.c.l.b16 %v385
    %v1741 = vunpack.c.h.b16 %v385
    %v1742 = vunpack.c.l.b16 %v386
    %v1743 = vunpack.c.h.b16 %v386
    %v1744 = vunpack.c.l.b16 %v387
    %v1745 = vunpack.c.h.b16 %v387
    %v1746 = vunpack.c.l.b16 %v388
    %v1747 = vunpack.c.h.b16 %v388
    %v1748 = vunpack.c.l.b16 %v389
    %v1749 = vunpack.c.h.b16 %v389
    %v1750 = vunpack.c.l.b16 %v390
    %v1751 = vunpack.c.h.b16 %v390
    %v1752 = vunpack.c.l.b16 %v391
    %v1753 = vunpack.c.h.b16 %v391
    %v1754 = vunpack.c.l.b16 %v392
    %v1755 = vunpack.c.h.b16 %v392
    %v1756 = vunpack.c.l.b16 %v393
    %v1757 = vunpack.c.h.b16 %v393
    %v1758 = vunpack.c.l.b16 %v394
    %v1759 = vunpack.c.h.b16 %v394
    %v1760 = vunpack.c.l.b16 %v395
    %v1761 = vunpack.c.h.b16 %v395
    %v1762 = vunpack.c.l.b16 %v396
    %v1763 = vunpack.c.h.b16 %v396
    %v1764 = vunpack.c.l.b16 %v397
    %v1765 = vunpack.c.h.b16 %v397
    %v1766 = vunpack.c.l.b16 %v398
    %v1767 = vunpack.c.h.b16 %v398
    %v1768 = vunpack.c.l.b16 %v399
    %v1769 = vunpack.c.h.b16 %v399
    %v1770 = vunpack.c.l.b16 %v400
    %v1771 = vunpack.c.h.b16 %v400
    %v1772 = vunpack.c.l.b16 %v401
    %v1773 = vunpack.c.h.b16 %v401
    %v1774 = vunpack.c.l.b16 %v402
    %v1775 = vunpack.c.h.b16 %v402
    %v1776 = vunpack.c.l.b16 %v403
    %v1777 = vunpack.c.h.b16 %v403
    %v1778 = vunpack.c.l.b16 %v404
    %v1779 = vunpack.c.h.b16 %v404
    %v1780 = vunpack.c.l.b16 %v405
    %v1781 = vunpack.c.h.b16 %v405
    %v1782 = vunpack.c.l.b16 %v406
    %v1783 = vunpack.c.h.b16 %v406
    %v1784 = vunpack.c.l.b16 %v407
    %v1785 = vunpack.c.h.b16 %v407
    %v1786 = vunpack.c.l.b16 %v408
    %v1787 = vunpack.c.h.b16 %v408
    %v1788 = vunpack.c.l.b16 %v409
    %v1789 = vunpack.c.h.b16 %v409
    %v1790 = vunpack.c.l.b16 %v410
    %v1791 = vunpack.c.h.b16 %v410
    %v1792 = vunpack.c.l.b16 %v411
    %v1793 = vunpack.c.h.b16 %v411
    %v1794 = vunpack.c.l.b16 %v412
    %v1795 = vunpack.c.h.b16 %v412
    %v1796 = vunpack.c.l.b16 %v413
    %v1797 = vunpack.c.h.b16 %v413
    %v1798 = vunpack.c.l.b16 %v414
    %v1799 = vunpack.c.h.b16 %v414
    %v1800 = vunpack.c.l.b16 %v415
    %v1801 = vunpack.c.h.b16 %v415
    %v1802 = vunpack.c.l.b16 %v416
    %v1803 = vunpack.c.h.b16 %v416
    %v1804 = vunpack.c.l.b16 %v417
    %v1805 = vunpack.c.h.b16 %v417
    %v1806 = vunpack.c.l.b16 %v418
    %v1807 = vunpack.c.h.b16 %v418
    %v1808 = vunpack.c.l.b16 %v419
    %v1809 = vunpack.c.h.b16 %v419
    %v1810 = vunpack.c.l.b16 %v420
    %v1811 = vunpack.c.h.b16 %v420
    %v1812 = vunpack.c.l.b16 %v421
    %v1813 = vunpack.c.h.b16 %v421
    %v1814 = vunpack.c.l.b16 %v422
    %v1815 = vunpack.c.h.b16 %v422
    %v1816 = vunpack.c.l.b16 %v423
    %v1817 = vunpack.c.h.b16 %v423
    %v1818 = vunpack.c.l.b16 %v424
    %v1819 = vunpack.c.h.b16 %v424
    %v1820 = vunpack.c.l.b16 %v425
    %v1821 = vunpack.c.h.b16 %v425
    %v1822 = vunpack.c.l.b16 %v426
    %v1823 = vunpack.c.h.b16 %v426
    %v1824 = vunpack.c.l.b16 %v427
    %v1825 = vunpack.c.h.b16 %v427
    %v1826 = vunpack.c.l.b16 %v428
    %v1827 = vunpack.c.h.b16 %v428
    %v1828 = vunpack.c.l.b16 %v429
    %v1829 = vunpack.c.h.b16 %v429
    %v1830 = vunpack.c.l.b16 %v430
    %v1831 = vunpack.c.h.b16 %v430
    %v1832 = vunpack.c.l.b16 %v431
    %v1833 = vunpack.c.h.b16 %v431
    %v1834 = vunpack.c.l.b16 %v432
    %v1835 = vunpack.c.h.b16 %v432
    %v1836 = vunpack.c.l.b16 %v433
    %v1837 = vunpack.c.h.b16 %v433
    %v1838 = vunpack.c.l.b16 %v434
    %v1839 = vunpack.c.h.b16 %v434
    %v1840 = vunpack.c.l.b16 %v435
    %v1841 = vunpack.c.h.b16 %v435
    %v1842 = vunpack.c.l.b16 %v436
    %v1843 = vunpack.c.h.b16 %v436
    %v1844 = vunpack.c.l.b16 %v437
    %v1845 = vunpack.c.h.b16 %v437
    %v1846 = vunpack.c.l.b16 %v438
    %v1847 = vunpack.c.h.b16 %v438
    %v1848 = vunpack.c.l.b16 %v439
    %v1849 = vunpack.c.h.b16 %v439
    %v1850 = vunpack.c.l.b16 %v440
    %v1851 = vunpack.c.h.b16 %v440
    %v1852 = vunpack.c.l.b16 %v441
    %v1853 = vunpack.c.h.b16 %v441
    %v1854 = vunpack.c.l.b16 %v442
    %v1855 = vunpack.c.h.b16 %v442
    %v1856 = vunpack.c.l.b16 %v443
    %v1857 = vunpack.c.h.b16 %v443
    %v1858 = vunpack.c.l.b16 %v444
    %v1859 = vunpack.c.h.b16 %v444
    %v1860 = vunpack.c.l.b16 %v445
    %v1861 = vunpack.c.h.b16 %v445
    %v1862 = vunpack.c.l.b16 %v446
    %v1863 = vunpack.c.h.b16 %v446
    %v1864 = vunpack.c.l.b16 %v447
    %v1865 = vunpack.c.h.b16 %v447
    %v1866 = vunpack.c.l.b16 %v448
    %v1867 = vunpack.c.h.b16 %v448
    %v1868 = vunpack.c.l.b16 %v449
    %v1869 = vunpack.c.h.b16 %v449
    %v1870 = vunpack.c.l.b16 %v450
    %v1871 = vunpack.c.h.b16 %v450
    %v1872 = vunpack.c.l.b16 %v451
    %v1873 = vunpack.c.h.b16 %v451
    %v1874 = vunpack.c.l.b16 %v452
    %v1875 = vunpack.c.h.b16 %v452
    %v1876 = vunpack.c.l.b16 %v453
    %v1877 = vunpack.c.h.b16 %v453
    %v1878 = vunpack.c.l.b16 %v454
    %v1879 = vunpack.c.h.b16 %v454
    %v1880 = vunpack.c.l.b16 %v455
    %v1881 = vunpack.c.h.b16 %v455
    %v1882 = vunpack.c.l.b16 %v456
    %v1883 = vunpack.c.h.b16 %v456
    %v1884 = vunpack.c.l.b16 %v457
    %v1885 = vunpack.c.h.b16 %v457
    %v1886 = vunpack.c.l.b16 %v458
    %v1887 = vunpack.c.h.b16 %v458
    %v1888 = vunpack.c.l.b16 %v459
    %v1889 = vunpack.c.h.b16 %v459
    %v1890 = vunpack.c.l.b16 %v460
    %v1891 = vunpack.c.h.b16 %v460
    %v1892 = vunpack.c.l.b16 %v461
    %v1893 = vunpack.c.h.b16 %v461
    %v1894 = vunpack.c.l.b16 %v462
    %v1895 = vunpack.c.h.b16 %v462
    %v1896 = vunpack.c.l.b16 %v463
    %v1897 = vunpack.c.h.b16 %v463
    %v1898 = vunpack.c.l.b16 %v464
    %v1899 = vunpack.c.h.b16 %v464
    %v1900 = vunpack.c.l.b16 %v465
    %v1901 = vunpack.c.h.b16 %v465
    %v1902 = vunpack.c.l.b16 %v466
    %v1903 = vunpack.c.h.b16 %v466
    %v1904 = vunpack.c.l.b16 %v467
    %v1905 = vunpack.c.h.b16 %v467
    %v1906 = vunpack.c.l.b16 %v468
    %v1907 = vunpack.c.h.b16 %v468
    %v1908 = vunpack.c.l.b16 %v469
    %v1909 = vunpack.c.h.b16 %v469
    %v1910 = vunpack.c.l.b16 %v470
    %v1911 = vunpack.c.h.b16 %v470
    %v1912 = vunpack.c.l.b16 %v471
    %v1913 = vunpack.c.h.b16 %v471
    %v1914 = vunpack.c.l.b16 %v472
    %v1915 = vunpack.c.h.b16 %v472
    %v1916 = vunpack.c.l.b16 %v473
    %v1917 = vunpack.c.h.b16 %v473
    %v1918 = vunpack.c.l.b16 %v474
    %v1919 = vunpack.c.h.b16 %v474
    %v1920 = vunpack.c.l.b16 %v475
    %v1921 = vunpack.c.h.b16 %v475
    %v1922 = vunpack.c.l.b16 %v476
    %v1923 = vunpack.c.h.b16 %v476
    %v1924 = vunpack.c.l.b16 %v477
    %v1925 = vunpack.c.h.b16 %v477
    %v1926 = vunpack.c.l.b16 %v478
    %v1927 = vunpack.c.h.b16 %v478
    %v1928 = vunpack.c.l.b16 %v479
    %v1929 = vunpack.c.h.b16 %v479
    %v1930 = vunpack.c.l.b16 %v480
    %v1931 = vunpack.c.h.b16 %v480
    %v1932 = vunpack.c.l.b16 %v481
    %v1933 = vunpack.c.h.b16 %v481
    %v1934 = vunpack.c.l.b16 %v482
    %v1935 = vunpack.c.h.b16 %v482
    %v1936 = vunpack.c.l.b16 %v483
    %v1937 = vunpack.c.h.b16 %v483
    %v1938 = vunpack.c.l.b16 %v484
    %v1939 = vunpack.c.h.b16 %v484
    %v1940 = vunpack.c.l.b16 %v485
    %v1941 = vunpack.c.h.b16 %v485
    %v1942 = vunpack.c.l.b16 %v486
    %v1943 = vunpack.c.h.b16 %v486
    %v1944 = vunpack.c.l.b16 %v487
    %v1945 = vunpack.c.h.b16 %v487
    %v1946 = vunpack.c.l.b16 %v488
    %v1947 = vunpack.c.h.b16 %v488
    %v1948 = vunpack.c.l.b16 %v489
    %v1949 = vunpack.c.h.b16 %v489
    %v1950 = vunpack.c.l.b16 %v490
    %v1951 = vunpack.c.h.b16 %v490
    %v1952 = vunpack.c.l.b16 %v491
    %v1953 = vunpack.c.h.b16 %v491
    %v1954 = vunpack.c.l.b16 %v492
    %v1955 = vunpack.c.h.b16 %v492
    %v1956 = vunpack.c.l.b16 %v493
    %v1957 = vunpack.c.h.b16 %v493
    %v1958 = vunpack.c.l.b16 %v494
    %v1959 = vunpack.c.h.b16 %v494
    %v1960 = vunpack.c.l.b16 %v495
    %v1961 = vunpack.c.h.b16 %v495
    %v1962 = vunpack.c.l.b16 %v496
    %v1963 = vunpack.c.h.b16 %v496
    %v1964 = vunpack.c.l.b16 %v497
    %v1965 = vunpack.c.h.b16 %v497
    %v1966 = vunpack.c.l.b16 %v498
    %v1967 = vunpack.c.h.b16 %v498
    %v1968 = vunpack.c.l.b16 %v499
    %v1969 = vunpack.c.h.b16 %v499
    %v1970 = vunpack.c.l.b16 %v500
    %v1971 = vunpack.c.h.b16 %v500
    %v1972 = vunpack.c.l.b16 %v501
    %v1973 = vunpack.c.h.b16 %v501
    %v1974 = vunpack.c.l.b16 %v502
    %v1975 = vunpack.c.h.b16 %v502
    %v1976 = vunpack.c.l.b16 %v503
    %v1977 = vunpack.c.h.b16 %v503
    %v1978 = vunpack.c.l.b16 %v504
    %v1979 = vunpack.c.h.b16 %v504
    %v1980 = vunpack.c.l.b16 %v505
    %v1981 = vunpack.c.h.b16 %v505
    %v1982 = vunpack.c.l.b16 %v506
    %v1983 = vunpack.c.h.b16 %v506
    %v1984 = vunpack.c.l.b16 %v507
    %v1985 = vunpack.c.h.b16 %v507
    %v1986 = vunpack.c.l.b16 %v508
    %v1987 = vunpack.c.h.b16 %v508
    %v1988 = vunpack.c.l.b16 %v509
    %v1989 = vunpack.c.h.b16 %v509
    %v1990 = vunpack.c.l.b16 %v510
    %v1991 = vunpack.c.h.b16 %v510
    %v1992 = vunpack.c.l.b16 %v511
    %v1993 = vunpack.c.h.b16 %v511
    %v1994 = vunpack.c.l.b16 %v512
    %v1995 = vunpack.c.h.b16 %v512
    %v1996 = vunpack.c.l.b16 %v513
    %v1997 = vunpack.c.h.b16 %v513
    %v1998 = vunpack.c.l.b16 %v514
    %v1999 = vunpack.c.h.b16 %v514
    %v2000 = vunpack.c.l.b16 %v515
    %v2001 = vunpack.c.h.b16 %v515
    %v2002 = vunpack.c.l.b16 %v516
    %v2003 = vunpack.c.h.b16 %v516
    %v2004 = vunpack.c.l.b16 %v517
    %v2005 = vunpack.c.h.b16 %v517
    %v2006 = vunpack.c.l.b16 %v518
    %v2007 = vunpack.c.h.b16 %v518
    %v2008 = vunpack.c.l.b16 %v519
    %v2009 = vunpack.c.h.b16 %v519
    %v2010 = vunpack.c.l.b16 %v520
    %v2011 = vunpack.c.h.b16 %v520
    %v2012 = vunpack.c.l.b16 %v521
    %v2013 = vunpack.c.h.b16 %v521
    %v2014 = vunpack.c.l.b16 %v522
    %v2015 = vunpack.c.h.b16 %v522
    %v2016 = vunpack.c.l.b16 %v523
    %v2017 = vunpack.c.h.b16 %v523
    %v2018 = vunpack.c.l.b16 %v524
    %v2019 = vunpack.c.h.b16 %v524
    %v2020 = vunpack.c.l.b16 %v525
    %v2021 = vunpack.c.h.b16 %v525
    %v2022 = vunpack.c.l.b16 %v526
    %v2023 = vunpack.c.h.b16 %v526
    %v2024 = vunpack.c.l.b16 %v527
    %v2025 = vunpack.c.h.b16 %v527
    %v2026 = vunpack.c.l.b16 %v528
    %v2027 = vunpack.c.h.b16 %v528
    %v2028 = vunpack.c.l.b16 %v529
    %v2029 = vunpack.c.h.b16 %v529
    %v2030 = vunpack.c.l.b16 %v530
    %v2031 = vunpack.c.h.b16 %v530
    %v2032 = vunpack.c.l.b16 %v531
    %v2033 = vunpack.c.h.b16 %v531
    %v2034 = vunpack.c.l.b16 %v532
    %v2035 = vunpack.c.h.b16 %v532
    %v2036 = vunpack.c.l.b16 %v533
    %v2037 = vunpack.c.h.b16 %v533
    %v2038 = vunpack.c.l.b16 %v534
    %v2039 = vunpack.c.h.b16 %v534
    %v2040 = vunpack.c.l.b16 %v535
    %v2041 = vunpack.c.h.b16 %v535
    %v2042 = vunpack.c.l.b16 %v536
    %v2043 = vunpack.c.h.b16 %v536
    %v2044 = vunpack.c.l.b16 %v537
    %v2045 = vunpack.c.h.b16 %v537
    %v2046 = vunpack.c.l.b16 %v538
    %v2047 = vunpack.c.h.b16 %v538
    %v2048 = vunpack.c.l.b16 %v539
    %v2049 = vunpack.c.h.b16 %v539
    %v2050 = vunpack.c.l.b16 %v540
    %v2051 = vunpack.c.h.b16 %v540
    %v2052 = vunpack.c.l.b16 %v541
    %v2053 = vunpack.c.h.b16 %v541
    %v2054 = vunpack.c.l.b16 %v542
    %v2055 = vunpack.c.h.b16 %v542
    %v2056 = vunpack.c.l.b16 %v543
    %v2057 = vunpack.c.h.b16 %v543
    %v2058 = vunpack.c.l.b16 %v544
    %v2059 = vunpack.c.h.b16 %v544
    %v2060 = vunpack.c.l.b16 %v545
    %v2061 = vunpack.c.h.b16 %v545
    %v2062 = vunpack.c.l.b16 %v546
    %v2063 = vunpack.c.h.b16 %v546
    %v2064 = vunpack.c.l.b16 %v547
    %v2065 = vunpack.c.h.b16 %v547
    %v2066 = vunpack.c.l.b16 %v548
    %v2067 = vunpack.c.h.b16 %v548
    %v2068 = vunpack.c.l.b16 %v549
    %v2069 = vunpack.c.h.b16 %v549
    %v2070 = vunpack.c.l.b16 %v550
    %v2071 = vunpack.c.h.b16 %v550
    %v2072 = vunpack.c.l.b16 %v551
    %v2073 = vunpack.c.h.b16 %v551
    %v2074 = vunpack.c.l.b16 %v552
    %v2075 = vunpack.c.h.b16 %v552
    %v2076 = vunpack.c.l.b16 %v553
    %v2077 = vunpack.c.h.b16 %v553
    %v2078 = vunpack.c.l.b16 %v554
    %v2079 = vunpack.c.h.b16 %v554
    %v2080 = vunpack.c.l.b16 %v555
    %v2081 = vunpack.c.h.b16 %v555
    %v2082 = vunpack.c.l.b16 %v556
    %v2083 = vunpack.c.h.b16 %v556
    %v2084 = vunpack.c.l.b16 %v557
    %v2085 = vunpack.c.h.b16 %v557
    %v2086 = vunpack.c.l.b16 %v558
    %v2087 = vunpack.c.h.b16 %v558
    %v2088 = vunpack.c.l.b16 %v559
    %v2089 = vunpack.c.h.b16 %v559
    %v2090 = vunpack.c.l.b16 %v560
    %v2091 = vunpack.c.h.b16 %v560
    %v2092 = vunpack.c.l.b16 %v561
    %v2093 = vunpack.c.h.b16 %v561
    %v2094 = vunpack.c.l.b16 %v562
    %v2095 = vunpack.c.h.b16 %v562
    %v2096 = vunpack.c.l.b16 %v563
    %v2097 = vunpack.c.h.b16 %v563
    %v2098 = vunpack.c.l.b16 %v564
    %v2099 = vunpack.c.h.b16 %v564
    %v2100 = vunpack.c.l.b16 %v565
    %v2101 = vunpack.c.h.b16 %v565
    %v2102 = vunpack.c.l.b16 %v566
    %v2103 = vunpack.c.h.b16 %v566
    %v2104 = vunpack.c.l.b16 %v567
    %v2105 = vunpack.c.h.b16 %v567
    %v2106 = vunpack.c.l.b16 %v568
    %v2107 = vunpack.c.h.b16 %v568
    %v2108 = vunpack.c.l.b16 %v569
    %v2109 = vunpack.c.h.b16 %v569
    %v2110 = vunpack.c.l.b16 %v570
    %v2111 = vunpack.c.h.b16 %v570
    %v2112 = vunpack.c.l.b16 %v571
    %v2113 = vunpack.c.h.b16 %v571
    %v2114 = vunpack.c.l.b16 %v572
    %v2115 = vunpack.c.h.b16 %v572
    %v2116 = vunpack.c.l.b16 %v573
    %v2117 = vunpack.c.h.b16 %v573
    %v2118 = vunpack.c.l.b16 %v574
    %v2119 = vunpack.c.h.b16 %v574
    %v2120 = vunpack.c.l.b16 %v575
    %v2121 = vunpack.c.h.b16 %v575
    %v2122 = vunpack.c.l.b16 %v576
    %v2123 = vunpack.c.h.b16 %v576
    %v2124 = vunpack.c.l.b16 %v577
    %v2125 = vunpack.c.h.b16 %v577
    %v2126 = vunpack.c.l.b16 %v578
    %v2127 = vunpack.c.h.b16 %v578
    %v2128 = vunpack.c.l.b16 %v579
    %v2129 = vunpack.c.h.b16 %v579
    %v2130 = vunpack.c.l.b16 %v580
    %v2131 = vunpack.c.h.b16 %v580
    %v2132 = vunpack.c.l.b16 %v581
    %v2133 = vunpack.c.h.b16 %v581
    %v2134 = vunpack.c.l.b16 %v582
    %v2135 = vunpack.c.h.b16 %v582
    %v2136 = vunpack.c.l.b16 %v583
    %v2137 = vunpack.c.h.b16 %v583
    %v2138 = vunpack.c.l.b16 %v584
    %v2139 = vunpack.c.h.b16 %v584
    %v2140 = vunpack.c.l.b16 %v585
    %v2141 = vunpack.c.h.b16 %v585
    %v2142 = vunpack.c.l.b16 %v586
    %v2143 = vunpack.c.h.b16 %v586
    %v2144 = vunpack.c.l.b16 %v587
    %v2145 = vunpack.c.h.b16 %v587
    %v2146 = vunpack.c.l.b16 %v588
    %v2147 = vunpack.c.h.b16 %v588
    %v2148 = vunpack.c.l.b16 %v589
    %v2149 = vunpack.c.h.b16 %v589
    %v2150 = vunpack.c.l.b16 %v590
    %v2151 = vunpack.c.h.b16 %v590
    %v2152 = vunpack.c.l.b16 %v591
    %v2153 = vunpack.c.h.b16 %v591
    %v2154 = vunpack.c.l.b16 %v592
    %v2155 = vunpack.c.h.b16 %v592
    %v2156 = vunpack.c.l.b16 %v593
    %v2157 = vunpack.c.h.b16 %v593
    %v2158 = vunpack.c.l.b16 %v594
    %v2159 = vunpack.c.h.b16 %v594
    %v2160 = vunpack.c.l.b16 %v595
    %v2161 = vunpack.c.h.b16 %v595
    %v2162 = vunpack.c.l.b16 %v596
    %v2163 = vunpack.c.h.b16 %v596
    %v2164 = vunpack.c.l.b16 %v597
    %v2165 = vunpack.c.h.b16 %v597
    %v2166 = vunpack.c.l.b16 %v598
    %v2167 = vunpack.c.h.b16 %v598
    %v2168 = vunpack.c.l.b16 %v599
    %v2169 = vunpack.c.h.b16 %v599
    %v2170 = vunpack.c.l.b16 %v600
    %v2171 = vunpack.c.h.b16 %v600
    %v2172 = vunpack.c.l.b16 %v601
    %v2173 = vunpack.c.h.b16 %v601
    %v2174 = vunpack.c.l.b16 %v602
    %v2175 = vunpack.c.h.b16 %v602
    %v2176 = vunpack.c.l.b16 %v603
    %v2177 = vunpack.c.h.b16 %v603
    %v2178 = vunpack.c.l.b16 %v604
    %v2179 = vunpack.c.h.b16 %v604
    %v2180 = vunpack.c.l.b16 %v605
    %v2181 = vunpack.c.h.b16 %v605
    %v2182 = vunpack.c.l.b16 %v606
    %v2183 = vunpack.c.h.b16 %v606
    %v2184 = vunpack.c.l.b16 %v607
    %v2185 = vunpack.c.h.b16 %v607
    %v2186 = vunpack.c.l.b16 %v608
    %v2187 = vunpack.c.h.b16 %v608
    %v2188 = vunpack.c.l.b16 %v609
    %v2189 = vunpack.c.h.b16 %v609
    %v2190 = vunpack.c.l.b16 %v610
    %v2191 = vunpack.c.h.b16 %v610
    %v2192 = vpack.c.b16 %v1192, %v1184
    %v2193 = vpack.c.b16 %v1193, %v1185
    %v2194 = vpack.c.b16 %v1194, %v1186
    %v2195 = vpack.c.b16 %v1195, %v1187
    %v2196 = vpack.c.b16 %v1196, %v1188
    %v2197 = vpack.c.b16 %v1197, %v1189
    %v2198 = vpack.c.b16 %v1198, %v1190
    %v2199 = vpack.c.b16 %v1199, %v1191
    %v2200 = vpack.c.b16 %v1208, %v1200
    %v2201 = vpack.c.b16 %v1209, %v1201
    %v2202 = vpack.c.b16 %v1210, %v1202
    %v2203 = vpack.c.b16 %v1211, %v1203
    %v2204 = vpack.c.b16 %v1212, %v1204
    %v2205 = vpack.c.b16 %v1213, %v1205
    %v2206 = vpack.c.b16 %v1214, %v1206
    %v2207 = vpack.c.b16 %v1215, %v1207
    %v2208 = vpack.c.b16 %v1224, %v1216
    %v2209 = vpack.c.b16 %v1225, %v1217
    %v2210 = vpack.c.b16 %v1226, %v1218
    %v2211 = vpack.c.b16 %v1227, %v1219
    %v2212 = vpack.c.b16 %v1228, %v1220
    %v2213 = vpack.c.b16 %v1229, %v1221
    %v2214 = vpack.c.b16 %v1230, %v1222
    %v2215 = vpack.c.b16 %v1231, %v1223
    %v2216 = vpack.c.b16 %v1240, %v1232
    %v2217 = vpack.c.b16 %v1241, %v1233
    %v2218 = vpack.c.b16 %v1242, %v1234
    %v2219 = vpack.c.b16 %v1243, %v1235
    %v2220 = vpack.c.b16 %v1244, %v1236
    %v2221 = vpack.c.b16 %v1245, %v1237
    %v2222 = vpack.c.b16 %v1246, %v1238
    %v2223 = vpack.c.b16 %v1247, %v1239
    %v2224 = vpack.c.b16 %v1256, %v1248
    %v2225 = vpack.c.b16 %v1257, %v1249
    %v2226 = vpack.c.b16 %v1258, %v1250
    %v2227 = vpack.c.b16 %v1259, %v1251
    %v2228 = vpack.c.b16 %v1260, %v1252
    %v2229 = vpack.c.b16 %v1261, %v1253
    %v2230 = vpack.c.b16 %v1262, %v1254
    %v2231 = vpack.c.b16 %v1263, %v1255
    %v2232 = vpack.c.b16 %v1272, %v1264
    %v2233 = vpack.c.b16 %v1273, %v1265
    %v2234 = vpack.c.b16 %v1274, %v1266
    %v2235 = vpack.c.b16 %v1275, %v1267
    %v2236 = vpack.c.b16 %v1276, %v1268
    %v2237 = vpack.c.b16 %v1277, %v1269
    %v2238 = vpack.c.b16 %v1278, %v1270
    %v2239 = vpack.c.b16 %v1279, %v1271
    %v2240 = vpack.c.b16 %v1288, %v1280
    %v2241 = vpack.c.b16 %v1289, %v1281
    %v2242 = vpack.c.b16 %v1290, %v1282
    %v2243 = vpack.c.b16 %v1291, %v1283
    %v2244 = vpack.c.b16 %v1292, %v1284
    %v2245 = vpack.c.b16 %v1293, %v1285
    %v2246 = vpack.c.b16 %v1294, %v1286
    %v2247 = vpack.c.b16 %v1295, %v1287
    %v2248 = vpack.c.b16 %v1304, %v1296
    %v2249 = vpack.c.b16 %v1305, %v1297
    %v2250 = vpack.c.b16 %v1306, %v1298
    %v2251 = vpack.c.b16 %v1307, %v1299
    %v2252 = vpack.c.b16 %v1308, %v1300
    %v2253 = vpack.c.b16 %v1309, %v1301
    %v2254 = vpack.c.b16 %v1310, %v1302
    %v2255 = vpack.c.b16 %v1311, %v1303
    %v2256 = vpack.c.b16 %v1320, %v1312
    %v2257 = vpack.c.b16 %v1321, %v1313
    %v2258 = vpack.c.b16 %v1322, %v1314
    %v2259 = vpack.c.b16 %v1323, %v1315
    %v2260 = vpack.c.b16 %v1324, %v1316
    %v2261 = vpack.c.b16 %v1325, %v1317
    %v2262 = vpack.c.b16 %v1326, %v1318
    %v2263 = vpack.c.b16 %v1327, %v1319
    %v2264 = vpack.c.b16 %v1336, %v1328
    %v2265 = vpack.c.b16 %v1337, %v1329
    %v2266 = vpack.c.b16 %v1338, %v1330
    %v2267 = vpack.c.b16 %v1339, %v1331
    %v2268 = vpack.c.b16 %v1340, %v1332
    %v2269 = vpack.c.b16 %v1341, %v1333
    %v2270 = vpack.c.b16 %v1342, %v1334
    %v2271 = vpack.c.b16 %v1343, %v1335
    %v2272 = vpack.c.b16 %v1352, %v1344
    %v2273 = vpack.c.b16 %v1353, %v1345
    %v2274 = vpack.c.b16 %v1354, %v1346
    %v2275 = vpack.c.b16 %v1355, %v1347
    %v2276 = vpack.c.b16 %v1356, %v1348
    %v2277 = vpack.c.b16 %v1357, %v1349
    %v2278 = vpack.c.b16 %v1358, %v1350
    %v2279 = vpack.c.b16 %v1359, %v1351
    %v2280 = vpack.c.b16 %v1368, %v1360
    %v2281 = vpack.c.b16 %v1369, %v1361
    %v2282 = vpack.c.b16 %v1370, %v1362
    %v2283 = vpack.c.b16 %v1371, %v1363
    %v2284 = vpack.c.b16 %v1372, %v1364
    %v2285 = vpack.c.b16 %v1373, %v1365
    %v2286 = vpack.c.b16 %v1374, %v1366
    %v2287 = vpack.c.b16 %v1375, %v1367
    %v2288 = vpack.c.b16 %v1384, %v1376
    %v2289 = vpack.c.b16 %v1385, %v1377
    %v2290 = vpack.c.b16 %v1386, %v1378
    %v2291 = vpack.c.b16 %v1387, %v1379
    %v2292 = vpack.c.b16 %v1388, %v1380
    %v2293 = vpack.c.b16 %v1389, %v1381
    %v2294 = vpack.c.b16 %v1390, %v1382
    %v2295 = vpack.c.b16 %v1391, %v1383
    %v2296 = vpack.c.b16 %v1400, %v1392
    %v2297 = vpack.c.b16 %v1401, %v1393
    %v2298 = vpack.c.b16 %v1402, %v1394
    %v2299 = vpack.c.b16 %v1403, %v1395
    %v2300 = vpack.c.b16 %v1404, %v1396
    %v2301 = vpack.c.b16 %v1405, %v1397
    %v2302 = vpack.c.b16 %v1406, %v1398
    %v2303 = vpack.c.b16 %v1407, %v1399
    %v2304 = vpack.c.b16 %v1416, %v1408
    %v2305 = vpack.c.b16 %v1417, %v1409
    %v2306 = vpack.c.b16 %v1418, %v1410
    %v2307 = vpack.c.b16 %v1419, %v1411
    %v2308 = vpack.c.b16 %v1420, %v1412
    %v2309 = vpack.c.b16 %v1421, %v1413
    %v2310 = vpack.c.b16 %v1422, %v1414
    %v2311 = vpack.c.b16 %v1423, %v1415
    %v2312 = vpack.c.b16 %v1432, %v1424
    %v2313 = vpack.c.b16 %v1433, %v1425
    %v2314 = vpack.c.b16 %v1434, %v1426
    %v2315 = vpack.c.b16 %v1435, %v1427
    %v2316 = vpack.c.b16 %v1436, %v1428
    %v2317 = vpack.c.b16 %v1437, %v1429
    %v2318 = vpack.c.b16 %v1438, %v1430
    %v2319 = vpack.c.b16 %v1439, %v1431
    %v2320 = vpack.c.b16 %v1448, %v1440
    %v2321 = vpack.c.b16 %v1449, %v1441
    %v2322 = vpack.c.b16 %v1450, %v1442
    %v2323 = vpack.c.b16 %v1451, %v1443
    %v2324 = vpack.c.b16 %v1452, %v1444
    %v2325 = vpack.c.b16 %v1453, %v1445
    %v2326 = vpack.c.b16 %v1454, %v1446
    %v2327 = vpack.c.b16 %v1455, %v1447
    %v2328 = vpack.c.b16 %v1464, %v1456
    %v2329 = vpack.c.b16 %v1465, %v1457
    %v2330 = vpack.c.b16 %v1466, %v1458
    %v2331 = vpack.c.b16 %v1467, %v1459
    %v2332 = vpack.c.b16 %v1468, %v1460
    %v2333 = vpack.c.b16 %v1469, %v1461
    %v2334 = vpack.c.b16 %v1470, %v1462
    %v2335 = vpack.c.b16 %v1471, %v1463
    %v2336 = vpack.c.b16 %v1480, %v1472
    %v2337 = vpack.c.b16 %v1481, %v1473
    %v2338 = vpack.c.b16 %v1482, %v1474
    %v2339 = vpack.c.b16 %v1483, %v1475
    %v2340 = vpack.c.b16 %v1484, %v1476
    %v2341 = vpack.c.b16 %v1485, %v1477
    %v2342 = vpack.c.b16 %v1486, %v1478
    %v2343 = vpack.c.b16 %v1487, %v1479
    %v2344 = vpack.c.b16 %v1496, %v1488
    %v2345 = vpack.c.b16 %v1497, %v1489
    %v2346 = vpack.c.b16 %v1498, %v1490
    %v2347 = vpack.c.b16 %v1499, %v1491
    %v2348 = vpack.c.b16 %v1500, %v1492
    %v2349 = vpack.c.b16 %v1501, %v1493
    %v2350 = vpack.c.b16 %v1502, %v1494
    %v2351 = vpack.c.b16 %v1503, %v1495
    %v2352 = vpack.c.b16 %v1512, %v1504
    %v2353 = vpack.c.b16 %v1513, %v1505
    %v2354 = vpack.c.b16 %v1514, %v1506
    %v2355 = vpack.c.b16 %v1515, %v1507
    %v2356 = vpack.c.b16 %v1516, %v1508
    %v2357 = vpack.c.b16 %v1517, %v1509
    %v2358 = vpack.c.b16 %v1518, %v1510
    %v2359 = vpack.c.b16 %v1519, %v1511
    %v2360 = vpack.c.b16 %v1528, %v1520
    %v2361 = vpack.c.b16 %v1529, %v1521
    %v2362 = vpack.c.b16 %v1530, %v1522
    %v2363 = vpack.c.b16 %v1531, %v1523
    %v2364 = vpack.c.b16 %v1532, %v1524
    %v2365 = vpack.c.b16 %v1533, %v1525
    %v2366 = vpack.c.b16 %v1534, %v1526
    %v2367 = vpack.c.b16 %v1535, %v1527
    %v2368 = vpack.c.b16 %v1544, %v1536
    %v2369 = vpack.c.b16 %v1545, %v1537
    %v2370 = vpack.c.b16 %v1546, %v1538
    %v2371 = vpack.c.b16 %v1547, %v1539
    %v2372 = vpack.c.b16 %v1548, %v1540
    %v2373 = vpack.c.b16 %v1549, %v1541
    %v2374 = vpack.c.b16 %v1550, %v1542
    %v2375 = vpack.c.b16 %v1551, %v1543
    %v2376 = vpack.c.b16 %v1560, %v1552
    %v2377 = vpack.c.b16 %v1561, %v1553
    %v2378 = vpack.c.b16 %v1562, %v1554
    %v2379 = vpack.c.b16 %v1563, %v1555
    %v2380 = vpack.c.b16 %v1564, %v1556
    %v2381 = vpack.c.b16 %v1565, %v1557
    %v2382 = vpack.c.b16 %v1566, %v1558
    %v2383 = vpack.c.b16 %v1567, %v1559
    %v2384 = vpack.c.b16 %v1576, %v1568
    %v2385 = vpack.c.b16 %v1577, %v1569
    %v2386 = vpack.c.b16 %v1578, %v1570
    %v2387 = vpack.c.b16 %v1579, %v1571
    %v2388 = vpack.c.b16 %v1580, %v1572
    %v2389 = vpack.c.b16 %v1581, %v1573
    %v2390 = vpack.c.b16 %v1582, %v1574
    %v2391 = vpack.c.b16 %v1583, %v1575
    %v2392 = vpack.c.b16 %v1592, %v1584
    %v2393 = vpack.c.b16 %v1593, %v1585
    %v2394 = vpack.c.b16 %v1594, %v1586
    %v2395 = vpack.c.b16 %v1595, %v1587
    %v2396 = vpack.c.b16 %v1596, %v1588
    %v2397 = vpack.c.b16 %v1597, %v1589
    %v2398 = vpack.c.b16 %v1598, %v1590
    %v2399 = vpack.c.b16 %v1599, %v1591
    %v2400 = vpack.c.b16 %v1608, %v1600
    %v2401 = vpack.c.b16 %v1609, %v1601
    %v2402 = vpack.c.b16 %v1610, %v1602
    %v2403 = vpack.c.b16 %v1611, %v1603
    %v2404 = vpack.c.b16 %v1612, %v1604
    %v2405 = vpack.c.b16 %v1613, %v1605
    %v2406 = vpack.c.b16 %v1614, %v1606
    %v2407 = vpack.c.b16 %v1615, %v1607
    %v2408 = vpack.c.b16 %v1624, %v1616
    %v2409 = vpack.c.b16 %v1625, %v1617
    %v2410 = vpack.c.b16 %v1626, %v1618
    %v2411 = vpack.c.b16 %v1627, %v1619
    %v2412 = vpack.c.b16 %v1628, %v1620
    %v2413 = vpack.c.b16 %v1629, %v1621
    %v2414 = vpack.c.b16 %v1630, %v1622
    %v2415 = vpack.c.b16 %v1631, %v1623
    %v2416 = vpack.c.b16 %v1640, %v1632
    %v2417 = vpack.c.b16 %v1641, %v1633
    %v2418 = vpack.c.b16 %v1642, %v1634
    %v2419 = vpack.c.b16 %v1643, %v1635
    %v2420 = vpack.c.b16 %v1644, %v1636
    %v2421 = vpack.c.b16 %v1645, %v1637
    %v2422 = vpack.c.b16 %v1646, %v1638
    %v2423 = vpack.c.b16 %v1647, %v1639
    %v2424 = vpack.c.b16 %v1656, %v1648
    %v2425 = vpack.c.b16 %v1657, %v1649
    %v2426 = vpack.c.b16 %v1658, %v1650
    %v2427 = vpack.c.b16 %v1659, %v1651
    %v2428 = vpack.c.b16 %v1660, %v1652
    %v2429 = vpack.c.b16 %v1661, %v1653
    %v2430 = vpack.c.b16 %v1662, %v1654
    %v2431 = vpack.c.b16 %v1663, %v1655
    %v2432 = vpack.c.b16 %v1672, %v1664
    %v2433 = vpack.c.b16 %v1673, %v1665
    %v2434 = vpack.c.b16 %v1674, %v1666
    %v2435 = vpack.c.b16 %v1675, %v1667
    %v2436 = vpack.c.b16 %v1676, %v1668
    %v2437 = vpack.c.b16 %v1677, %v1669
    %v2438 = vpack.c.b16 %v1678, %v1670
    %v2439 = vpack.c.b16 %v1679, %v1671
    %v2440 = vpack.c.b16 %v1688, %v1680
    %v2441 = vpack.c.b16 %v1689, %v1681
    %v2442 = vpack.c.b16 %v1690, %v1682
    %v2443 = vpack.c.b16 %v1691, %v1683
    %v2444 = vpack.c.b16 %v1692, %v1684
    %v2445 = vpack.c.b16 %v1693, %v1685
    %v2446 = vpack.c.b16 %v1694, %v1686
    %v2447 = vpack.c.b16 %v1695, %v1687
    %v2448 = vpack.c.b16 %v1704, %v1696
    %v2449 = vpack.c.b16 %v1705, %v1697
    %v2450 = vpack.c.b16 %v1706, %v1698
    %v2451 = vpack.c.b16 %v1707, %v1699
    %v2452 = vpack.c.b16 %v1708, %v1700
    %v2453 = vpack.c.b16 %v1709, %v1701
    %v2454 = vpack.c.b16 %v1710, %v1702
    %v2455 = vpack.c.b16 %v1711, %v1703
    %v2456 = vpack.c.b16 %v1720, %v1712
    %v2457 = vpack.c.b16 %v1721, %v1713
    %v2458 = vpack.c.b16 %v1722, %v1714
    %v2459 = vpack.c.b16 %v1723, %v1715
    %v2460 = vpack.c.b16 %v1724, %v1716
    %v2461 = vpack.c.b16 %v1725, %v1717
    %v2462 = vpack.c.b16 %v1726, %v1718
    %v2463 = vpack.c.b16 %v1727, %v1719
    %v2464 = vpack.c.b16 %v1736, %v1728
    %v2465 = vpack.c.b16 %v1737, %v1729
    %v2466 = vpack.c.b16 %v1738, %v1730
    %v2467 = vpack.c.b16 %v1739, %v1731
    %v2468 = vpack.c.b16 %v1740, %v1732
    %v2469 = vpack.c.b16 %v1741, %v1733
    %v2470 = vpack.c.b16 %v1742, %v1734
    %v2471 = vpack.c.b16 %v1743, %v1735
    %v2472 = vpack.c.b16 %v1752, %v1744
    %v2473 = vpack.c.b16 %v1753, %v1745
    %v2474 = vpack.c.b16 %v1754, %v1746
    %v2475 = vpack.c.b16 %v1755, %v1747
    %v2476 = vpack.c.b16 %v1756, %v1748
    %v2477 = vpack.c.b16 %v1757, %v1749
    %v2478 = vpack.c.b16 %v1758, %v1750
    %v2479 = vpack.c.b16 %v1759, %v1751
    %v2480 = vpack.c.b16 %v1768, %v1760
    %v2481 = vpack.c.b16 %v1769, %v1761
    %v2482 = vpack.c.b16 %v1770, %v1762
    %v2483 = vpack.c.b16 %v1771, %v1763
    %v2484 = vpack.c.b16 %v1772, %v1764
    %v2485 = vpack.c.b16 %v1773, %v1765
    %v2486 = vpack.c.b16 %v1774, %v1766
    %v2487 = vpack.c.b16 %v1775, %v1767
    %v2488 = vpack.c.b16 %v1784, %v1776
    %v2489 = vpack.c.b16 %v1785, %v1777
    %v2490 = vpack.c.b16 %v1786, %v1778
    %v2491 = vpack.c.b16 %v1787, %v1779
    %v2492 = vpack.c.b16 %v1788, %v1780
    %v2493 = vpack.c.b16 %v1789, %v1781
    %v2494 = vpack.c.b16 %v1790, %v1782
    %v2495 = vpack.c.b16 %v1791, %v1783
    %v2496 = vpack.c.b16 %v1800, %v1792
    %v2497 = vpack.c.b16 %v1801, %v1793
    %v2498 = vpack.c.b16 %v1802, %v1794
    %v2499 = vpack.c.b16 %v1803, %v1795
    %v2500 = vpack.c.b16 %v1804, %v1796
    %v2501 = vpack.c.b16 %v1805, %v1797
    %v2502 = vpack.c.b16 %v1806, %v1798
    %v2503 = vpack.c.b16 %v1807, %v1799
    %v2504 = vpack.c.b16 %v1816, %v1808
    %v2505 = vpack.c.b16 %v1817, %v1809
    %v2506 = vpack.c.b16 %v1818, %v1810
    %v2507 = vpack.c.b16 %v1819, %v1811
    %v2508 = vpack.c.b16 %v1820, %v1812
    %v2509 = vpack.c.b16 %v1821, %v1813
    %v2510 = vpack.c.b16 %v1822, %v1814
    %v2511 = vpack.c.b16 %v1823, %v1815
    %v2512 = vpack.c.b16 %v1832, %v1824
    %v2513 = vpack.c.b16 %v1833, %v1825
    %v2514 = vpack.c.b16 %v1834, %v1826
    %v2515 = vpack.c.b16 %v1835, %v1827
    %v2516 = vpack.c.b16 %v1836, %v1828
    %v2517 = vpack.c.b16 %v1837, %v1829
    %v2518 = vpack.c.b16 %v1838, %v1830
    %v2519 = vpack.c.b16 %v1839, %v1831
    %v2520 = vpack.c.b16 %v1848, %v1840
    %v2521 = vpack.c.b16 %v1849, %v1841
    %v2522 = vpack.c.b16 %v1850, %v1842
    %v2523 = vpack.c.b16 %v1851, %v1843
    %v2524 = vpack.c.b16 %v1852, %v1844
    %v2525 = vpack.c.b16 %v1853, %v1845
    %v2526 = vpack.c.b16 %v1854, %v1846
    %v2527 = vpack.c.b16 %v1855, %v1847
    %v2528 = vpack.c.b16 %v1864, %v1856
    %v2529 = vpack.c.b16 %v1865, %v1857
    %v2530 = vpack.c.b16 %v1866, %v1858
    %v2531 = vpack.c.b16 %v1867, %v1859
    %v2532 = vpack.c.b16 %v1868, %v1860
    %v2533 = vpack.c.b16 %v1869, %v1861
    %v2534 = vpack.c.b16 %v1870, %v1862
    %v2535 = vpack.c.b16 %v1871, %v1863
    %v2536 = vpack.c.b16 %v1880, %v1872
    %v2537 = vpack.c.b16 %v1881, %v1873
    %v2538 = vpack.c.b16 %v1882, %v1874
    %v2539 = vpack.c.b16 %v1883, %v1875
    %v2540 = vpack.c.b16 %v1884, %v1876
    %v2541 = vpack.c.b16 %v1885, %v1877
    %v2542 = vpack.c.b16 %v1886, %v1878
    %v2543 = vpack.c.b16 %v1887, %v1879
    %v2544 = vpack.c.b16 %v1896, %v1888
    %v2545 = vpack.c.b16 %v1897, %v1889
    %v2546 = vpack.c.b16 %v1898, %v1890
    %v2547 = vpack.c.b16 %v1899, %v1891
    %v2548 = vpack.c.b16 %v1900, %v1892
    %v2549 = vpack.c.b16 %v1901, %v1893
    %v2550 = vpack.c.b16 %v1902, %v1894
    %v2551 = vpack.c.b16 %v1903, %v1895
    %v2552 = vpack.c.b16 %v1912, %v1904
    %v2553 = vpack.c.b16 %v1913, %v1905
    %v2554 = vpack.c.b16 %v1914, %v1906
    %v2555 = vpack.c.b16 %v1915, %v1907
    %v2556 = vpack.c.b16 %v1916, %v1908
    %v2557 = vpack.c.b16 %v1917, %v1909
    %v2558 = vpack.c.b16 %v1918, %v1910
    %v2559 = vpack.c.b16 %v1919, %v1911
    %v2560 = vpack.c.b16 %v1928, %v1920
    %v2561 = vpack.c.b16 %v1929, %v1921
    %v2562 = vpack.c.b16 %v1930, %v1922
    %v2563 = vpack.c.b16 %v1931, %v1923
    %v2564 = vpack.c.b16 %v1932, %v1924
    %v2565 = vpack.c.b16 %v1933, %v1925
    %v2566 = vpack.c.b16 %v1934, %v1926
    %v2567 = vpack.c.b16 %v1935, %v1927
    %v2568 = vpack.c.b16 %v1944, %v1936
    %v2569 = vpack.c.b16 %v1945, %v1937
    %v2570 = vpack.c.b16 %v1946, %v1938
    %v2571 = vpack.c.b16 %v1947, %v1939
    %v2572 = vpack.c.b16 %v1948, %v1940
    %v2573 = vpack.c.b16 %v1949, %v1941
    %v2574 = vpack.c.b16 %v1950, %v1942
    %v2575 = vpack.c.b16 %v1951, %v1943
    %v2576 = vpack.c.b16 %v1960, %v1952
    %v2577 = vpack.c.b16 %v1961, %v1953
    %v2578 = vpack.c.b16 %v1962, %v1954
    %v2579 = vpack.c.b16 %v1963, %v1955
    %v2580 = vpack.c.b16 %v1964, %v1956
    %v2581 = vpack.c.b16 %v1965, %v1957
    %v2582 = vpack.c.b16 %v1966, %v1958
    %v2583 = vpack.c.b16 %v1967, %v1959
    %v2584 = vpack.c.b16 %v1976, %v1968
    %v2585 = vpack.c.b16 %v1977, %v1969
    %v2586 = vpack.c.b16 %v1978, %v1970
    %v2587 = vpack.c.b16 %v1979, %v1971
    %v2588 = vpack.c.b16 %v1980, %v1972
    %v2589 = vpack.c.b16 %v1981, %v1973
    %v2590 = vpack.c.b16 %v1982, %v1974
    %v2591 = vpack.c.b16 %v1983, %v1975
    %v2592 = vpack.c.b16 %v1992, %v1984
    %v2593 = vpack.c.b16 %v1993, %v1985
    %v2594 = vpack.c.b16 %v1994, %v1986
    %v2595 = vpack.c.b16 %v1995, %v1987
    %v2596 = vpack.c.b16 %v1996, %v1988
    %v2597 = vpack.c.b16 %v1997, %v1989
    %v2598 = vpack.c.b16 %v1998, %v1990
    %v2599 = vpack.c.b16 %v1999, %v1991
    %v2600 = vpack.c.b16 %v2008, %v2000
    %v2601 = vpack.c.b16 %v2009, %v2001
    %v2602 = vpack.c.b16 %v2010, %v2002
    %v2603 = vpack.c.b16 %v2011, %v2003
    %v2604 = vpack.c.b16 %v2012, %v2004
    %v2605 = vpack.c.b16 %v2013, %v2005
    %v2606 = vpack.c.b16 %v2014, %v2006
    %v2607 = vpack.c.b16 %v2015, %v2007
    %v2608 = vpack.c.b16 %v2024, %v2016
    %v2609 = vpack.c.b16 %v2025, %v2017
    %v2610 = vpack.c.b16 %v2026, %v2018
    %v2611 = vpack.c.b16 %v2027, %v2019
    %v2612 = vpack.c.b16 %v2028, %v2020
    %v2613 = vpack.c.b16 %v2029, %v2021
    %v2614 = vpack.c.b16 %v2030, %v2022
    %v2615 = vpack.c.b16 %v2031, %v2023
    %v2616 = vpack.c.b16 %v2040, %v2032
    %v2617 = vpack.c.b16 %v2041, %v2033
    %v2618 = vpack.c.b16 %v2042, %v2034
    %v2619 = vpack.c.b16 %v2043, %v2035
    %v2620 = vpack.c.b16 %v2044, %v2036
    %v2621 = vpack.c.b16 %v2045, %v2037
    %v2622 = vpack.c.b16 %v2046, %v2038
    %v2623 = vpack.c.b16 %v2047, %v2039
    %v2624 = vpack.c.b16 %v2056, %v2048
    %v2625 = vpack.c.b16 %v2057, %v2049
    %v2626 = vpack.c.b16 %v2058, %v2050
    %v2627 = vpack.c.b16 %v2059, %v2051
    %v2628 = vpack.c.b16 %v2060, %v2052
    %v2629 = vpack.c.b16 %v2061, %v2053
    %v2630 = vpack.c.b16 %v2062, %v2054
    %v2631 = vpack.c.b16 %v2063, %v2055
    %v2632 = vpack.c.b16 %v2072, %v2064
    %v2633 = vpack.c.b16 %v2073, %v2065
    %v2634 = vpack.c.b16 %v2074, %v2066
    %v2635 = vpack.c.b16 %v2075, %v2067
    %v2636 = vpack.c.b16 %v2076, %v2068
    %v2637 = vpack.c.b16 %v2077, %v2069
    %v2638 = vpack.c.b16 %v2078, %v2070
    %v2639 = vpack.c.b16 %v2079, %v2071
    %v2640 = vpack.c.b16 %v2088, %v2080
    %v2641 = vpack.c.b16 %v2089, %v2081
    %v2642 = vpack.c.b16 %v2090, %v2082
    %v2643 = vpack.c.b16 %v2091, %v2083
    %v2644 = vpack.c.b16 %v2092, %v2084
    %v2645 = vpack.c.b16 %v2093, %v2085
    %v2646 = vpack.c.b16 %v2094, %v2086
    %v2647 = vpack.c.b16 %v2095, %v2087
    %v2648 = vpack.c.b16 %v2104, %v2096
    %v2649 = vpack.c.b16 %v2105, %v2097
    %v2650 = vpack.c.b16 %v2106, %v2098
    %v2651 = vpack.c.b16 %v2107, %v2099
    %v2652 = vpack.c.b16 %v2108, %v2100
    %v2653 = vpack.c.b16 %v2109, %v2101
    %v2654 = vpack.c.b16 %v2110, %v2102
    %v2655 = vpack.c.b16 %v2111, %v2103
    %v2656 = vpack.c.b16 %v2120, %v2112
    %v2657 = vpack.c.b16 %v2121, %v2113
    %v2658 = vpack.c.b16 %v2122, %v2114
    %v2659 = vpack.c.b16 %v2123, %v2115
    %v2660 = vpack.c.b16 %v2124, %v2116
    %v2661 = vpack.c.b16 %v2125, %v2117
    %v2662 = vpack.c.b16 %v2126, %v2118
    %v2663 = vpack.c.b16 %v2127, %v2119
    %v2664 = vpack.c.b16 %v2136, %v2128
    %v2665 = vpack.c.b16 %v2137, %v2129
    %v2666 = vpack.c.b16 %v2138, %v2130
    %v2667 = vpack.c.b16 %v2139, %v2131
    %v2668 = vpack.c.b16 %v2140, %v2132
    %v2669 = vpack.c.b16 %v2141, %v2133
    %v2670 = vpack.c.b16 %v2142, %v2134
    %v2671 = vpack.c.b16 %v2143, %v2135
    %v2672 = vpack.c.b16 %v2152, %v2144
    %v2673 = vpack.c.b16 %v2153, %v2145
    %v2674 = vpack.c.b16 %v2154, %v2146
    %v2675 = vpack.c.b16 %v2155, %v2147
    %v2676 = vpack.c.b16 %v2156, %v2148
    %v2677 = vpack.c.b16 %v2157, %v2149
    %v2678 = vpack.c.b16 %v2158, %v2150
    %v2679 = vpack.c.b16 %v2159, %v2151
    %v2680 = vpack.c.b16 %v2168, %v2160
    %v2681 = vpack.c.b16 %v2169, %v2161
    %v2682 = vpack.c.b16 %v2170, %v2162
    %v2683 = vpack.c.b16 %v2171, %v2163
    %v2684 = vpack.c.b16 %v2172, %v2164
    %v2685 = vpack.c.b16 %v2173, %v2165
    %v2686 = vpack.c.b16 %v2174, %v2166
    %v2687 = vpack.c.b16 %v2175, %v2167
    %v2688 = vpack.c.b16 %v2184, %v2176
    %v2689 = vpack.c.b16 %v2185, %v2177
    %v2690 = vpack.c.b16 %v2186, %v2178
    %v2691 = vpack.c.b16 %v2187, %v2179
    %v2692 = vpack.c.b16 %v2188, %v2180
    %v2693 = vpack.c.b16 %v2189, %v2181
    %v2694 = vpack.c.b16 %v2190, %v2182
    %v2695 = vpack.c.b16 %v2191, %v2183
    %vm3200 = vcmask 916480
    %v3202 = vsel %vm3200, %v672, 0
    %3204 = vmatprep.subr.bf16.mxu0 %v2249
    %3205 = vmatpush1.bf16.msra.mxu0 %v2248
    %3206 = vmatprep.subr.bf16.mxu0 %v2241
    %3207 = vmatpush1.bf16.msra.mxu0 %v2240
    %3208 = vmatprep.subr.bf16.mxu0 %v2233
    %3209 = vmatpush1.bf16.msra.mxu0 %v2232
    %3210 = vmatprep.subr.bf16.mxu0 %v2225
    %3211 = vmatpush1.bf16.msra.mxu0 %v2224
    %3212 = vmatprep.subr.bf16.mxu0 %v2217
    %3213 = vmatpush1.bf16.msra.mxu0 %v2216
    %3214 = vmatprep.subr.bf16.mxu0 %v2209
    %3215 = vmatpush1.bf16.msra.mxu0 %v2208
    %3216 = vmatprep.subr.bf16.mxu0 %v2201
    %3217 = vmatpush1.bf16.msra.mxu0 %v2200
    %3218 = vmatprep.subr.bf16.mxu0 %v2193
    %3219 = vmatpush1.bf16.msra.mxu0 %v2192
    %3220 = vmatprep.subr.bf16.mxu0 %v2313
    %3221 = vmatpush2.bf16.msra.mxu0 %v2312
    %3222 = vmatprep.subr.bf16.mxu0 %v2305
    %3223 = vmatpush2.bf16.msra.mxu0 %v2304
    %3224 = vmatprep.subr.bf16.mxu0 %v2297
    %3225 = vmatpush2.bf16.msra.mxu0 %v2296
    %3226 = vmatprep.subr.bf16.mxu0 %v2289
    %3227 = vmatpush2.bf16.msra.mxu0 %v2288
    %3228 = vmatprep.subr.bf16.mxu0 %v2281
    %3229 = vmatpush2.bf16.msra.mxu0 %v2280
    %3230 = vmatprep.subr.bf16.mxu0 %v2273
    %3231 = vmatpush2.bf16.msra.mxu0 %v2272
    %3232 = vmatprep.subr.bf16.mxu0 %v2265
    %3233 = vmatpush2.bf16.msra.mxu0 %v2264
    %3234 = vmatprep.subr.bf16.mxu0 %v2257
    %3235 = vmatpush2.bf16.msra.mxu0 %v2256
    %3236 = vmatprep.mubr.bf16.mxu0 %v666
    %3237 = vmatmul.mubr.bf16.gmra.mxu0 %v665
    %v3238 = vpop.f32.mrf.mxu0
    %v3239 = vadd.f32 %v616, %v3238
    %v3240 = vpop.f32.mrf.mxu0
    %v3241 = vadd.f32 %v620, %v3240
    %v3242 = vpop.f32.mrf.mxu0
    %v3243 = vpop.f32.mrf.mxu0
    %3244 = vdwg.mxu0
    %3245 = vmatprep.subr.bf16.mxu0 %v2377
    %3246 = vmatpush1.bf16.msra.mxu0 %v2376
    %3247 = vmatprep.subr.bf16.mxu0 %v2369
    %3248 = vmatpush1.bf16.msra.mxu0 %v2368
    %3249 = vmatprep.subr.bf16.mxu0 %v2361
    %3250 = vmatpush1.bf16.msra.mxu0 %v2360
    %3251 = vmatprep.subr.bf16.mxu0 %v2353
    %3252 = vmatpush1.bf16.msra.mxu0 %v2352
    %3253 = vmatprep.subr.bf16.mxu0 %v2345
    %3254 = vmatpush1.bf16.msra.mxu0 %v2344
    %3255 = vmatprep.subr.bf16.mxu0 %v2337
    %3256 = vmatpush1.bf16.msra.mxu0 %v2336
    %3257 = vmatprep.subr.bf16.mxu0 %v2329
    %3258 = vmatpush1.bf16.msra.mxu0 %v2328
    %3259 = vmatprep.subr.bf16.mxu0 %v2321
    %3260 = vmatpush1.bf16.msra.mxu0 %v2320
    %3261 = vmatprep.subr.bf16.mxu0 %v2441
    %3262 = vmatpush2.bf16.msra.mxu0 %v2440
    %3263 = vmatprep.subr.bf16.mxu0 %v2433
    %3264 = vmatpush2.bf16.msra.mxu0 %v2432
    %3265 = vmatprep.subr.bf16.mxu0 %v2425
    %3266 = vmatpush2.bf16.msra.mxu0 %v2424
    %3267 = vmatprep.subr.bf16.mxu0 %v2417
    %3268 = vmatpush2.bf16.msra.mxu0 %v2416
    %3269 = vmatprep.subr.bf16.mxu0 %v2409
    %3270 = vmatpush2.bf16.msra.mxu0 %v2408
    %3271 = vmatprep.subr.bf16.mxu0 %v2401
    %3272 = vmatpush2.bf16.msra.mxu0 %v2400
    %3273 = vmatprep.subr.bf16.mxu0 %v2393
    %3274 = vmatpush2.bf16.msra.mxu0 %v2392
    %3275 = vmatprep.subr.bf16.mxu0 %v2385
    %3276 = vmatpush2.bf16.msra.mxu0 %v2384
    %3277 = vmatprep.mubr.bf16.mxu0 %v668
    %3278 = vmatmul.mubr.bf16.gmra.mxu0 %v667
    %v3279 = vpop.f32.mrf.mxu0
    %v3280 = vadd.f32 %v3239, %v3279
    %v3281 = vpop.f32.mrf.mxu0
    %v3282 = vadd.f32 %v3241, %v3281
    %v3283 = vpop.f32.mrf.mxu0
    %v3284 = vpop.f32.mrf.mxu0
    %3285 = vdwg.mxu0
    %3286 = vmatprep.subr.bf16.mxu0 %v2505
    %3287 = vmatpush1.bf16.msra.mxu0 %v2504
    %3288 = vmatprep.subr.bf16.mxu0 %v2497
    %3289 = vmatpush1.bf16.msra.mxu0 %v2496
    %3290 = vmatprep.subr.bf16.mxu0 %v2489
    %3291 = vmatpush1.bf16.msra.mxu0 %v2488
    %3292 = vmatprep.subr.bf16.mxu0 %v2481
    %3293 = vmatpush1.bf16.msra.mxu0 %v2480
    %3294 = vmatprep.subr.bf16.mxu0 %v2473
    %3295 = vmatpush1.bf16.msra.mxu0 %v2472
    %3296 = vmatprep.subr.bf16.mxu0 %v2465
    %3297 = vmatpush1.bf16.msra.mxu0 %v2464
    %3298 = vmatprep.subr.bf16.mxu0 %v2457
    %3299 = vmatpush1.bf16.msra.mxu0 %v2456
    %3300 = vmatprep.subr.bf16.mxu0 %v2449
    %3301 = vmatpush1.bf16.msra.mxu0 %v2448
    %3302 = vmatprep.subr.bf16.mxu0 %v2569
    %3303 = vmatpush2.bf16.msra.mxu0 %v2568
    %3304 = vmatprep.subr.bf16.mxu0 %v2561
    %3305 = vmatpush2.bf16.msra.mxu0 %v2560
    %3306 = vmatprep.subr.bf16.mxu0 %v2553
    %3307 = vmatpush2.bf16.msra.mxu0 %v2552
    %3308 = vmatprep.subr.bf16.mxu0 %v2545
    %3309 = vmatpush2.bf16.msra.mxu0 %v2544
    %3310 = vmatprep.subr.bf16.mxu0 %v2537
    %3311 = vmatpush2.bf16.msra.mxu0 %v2536
    %3312 = vmatprep.subr.bf16.mxu0 %v2529
    %3313 = vmatpush2.bf16.msra.mxu0 %v2528
    %3314 = vmatprep.subr.bf16.mxu0 %v2521
    %3315 = vmatpush2.bf16.msra.mxu0 %v2520
    %3316 = vmatprep.subr.bf16.mxu0 %v2513
    %3317 = vmatpush2.bf16.msra.mxu0 %v2512
    %3318 = vmatprep.mubr.bf16.mxu0 %v670
    %3319 = vmatmul.mubr.bf16.gmra.mxu0 %v669
    %v3320 = vpop.f32.mrf.mxu0
    %v3321 = vadd.f32 %v3280, %v3320
    %v3322 = vpop.f32.mrf.mxu0
    %v3323 = vadd.f32 %v3282, %v3322
    %v3324 = vpop.f32.mrf.mxu0
    %v3325 = vpop.f32.mrf.mxu0
    %3326 = vdwg.mxu0
    %3327 = vmatprep.subr.bf16.mxu0 %v2633
    %3328 = vmatpush1.bf16.msra.mxu0 %v2632
    %3329 = vmatprep.subr.bf16.mxu0 %v2625
    %3330 = vmatpush1.bf16.msra.mxu0 %v2624
    %3331 = vmatprep.subr.bf16.mxu0 %v2617
    %3332 = vmatpush1.bf16.msra.mxu0 %v2616
    %3333 = vmatprep.subr.bf16.mxu0 %v2609
    %3334 = vmatpush1.bf16.msra.mxu0 %v2608
    %3335 = vmatprep.subr.bf16.mxu0 %v2601
    %3336 = vmatpush1.bf16.msra.mxu0 %v2600
    %3337 = vmatprep.subr.bf16.mxu0 %v2593
    %3338 = vmatpush1.bf16.msra.mxu0 %v2592
    %3339 = vmatprep.subr.bf16.mxu0 %v2585
    %3340 = vmatpush1.bf16.msra.mxu0 %v2584
    %3341 = vmatprep.subr.bf16.mxu0 %v2577
    %3342 = vmatpush1.bf16.msra.mxu0 %v2576
    %3343 = vmatprep.subr.bf16.mxu0 0
    %3344 = vmatpush2.bf16.msra.mxu0 0
    %3345 = vmatprep.subr.bf16.mxu0 %v2689
    %3346 = vmatpush2.bf16.msra.mxu0 %v2688
    %3347 = vmatprep.subr.bf16.mxu0 %v2681
    %3348 = vmatpush2.bf16.msra.mxu0 %v2680
    %3349 = vmatprep.subr.bf16.mxu0 %v2673
    %3350 = vmatpush2.bf16.msra.mxu0 %v2672
    %3351 = vmatprep.subr.bf16.mxu0 %v2665
    %3352 = vmatpush2.bf16.msra.mxu0 %v2664
    %3353 = vmatprep.subr.bf16.mxu0 %v2657
    %3354 = vmatpush2.bf16.msra.mxu0 %v2656
    %3355 = vmatprep.subr.bf16.mxu0 %v2649
    %3356 = vmatpush2.bf16.msra.mxu0 %v2648
    %3357 = vmatprep.subr.bf16.mxu0 %v2641
    %3358 = vmatpush2.bf16.msra.mxu0 %v2640
    %3359 = vmatprep.mubr.bf16.mxu0 %v3202
    %3360 = vmatmul.mubr.bf16.gmra.mxu0 %v671
    %v3361 = vpop.f32.mrf.mxu0
    %v3362 = vadd.f32 %v3321, %v3361
    %v3363 = vpop.f32.mrf.mxu0
    %v3364 = vadd.f32 %v3323, %v3363
    %v3365 = vpop.f32.mrf.mxu0
    %v3366 = vpop.f32.mrf.mxu0
    %3367 = vdwg.mxu0
    %3368 = vmatprep.subr.bf16.mxu0 %v2251
    %3369 = vmatpush1.bf16.msra.mxu0 %v2250
    %3370 = vmatprep.subr.bf16.mxu0 %v2243
    %3371 = vmatpush1.bf16.msra.mxu0 %v2242
    %3372 = vmatprep.subr.bf16.mxu0 %v2235
    %3373 = vmatpush1.bf16.msra.mxu0 %v2234
    %3374 = vmatprep.subr.bf16.mxu0 %v2227
    %3375 = vmatpush1.bf16.msra.mxu0 %v2226
    %3376 = vmatprep.subr.bf16.mxu0 %v2219
    %3377 = vmatpush1.bf16.msra.mxu0 %v2218
    %3378 = vmatprep.subr.bf16.mxu0 %v2211
    %3379 = vmatpush1.bf16.msra.mxu0 %v2210
    %3380 = vmatprep.subr.bf16.mxu0 %v2203
    %3381 = vmatpush1.bf16.msra.mxu0 %v2202
    %3382 = vmatprep.subr.bf16.mxu0 %v2195
    %3383 = vmatpush1.bf16.msra.mxu0 %v2194
    %3384 = vmatprep.subr.bf16.mxu0 %v2315
    %3385 = vmatpush2.bf16.msra.mxu0 %v2314
    %3386 = vmatprep.subr.bf16.mxu0 %v2307
    %3387 = vmatpush2.bf16.msra.mxu0 %v2306
    %3388 = vmatprep.subr.bf16.mxu0 %v2299
    %3389 = vmatpush2.bf16.msra.mxu0 %v2298
    %3390 = vmatprep.subr.bf16.mxu0 %v2291
    %3391 = vmatpush2.bf16.msra.mxu0 %v2290
    %3392 = vmatprep.subr.bf16.mxu0 %v2283
    %3393 = vmatpush2.bf16.msra.mxu0 %v2282
    %3394 = vmatprep.subr.bf16.mxu0 %v2275
    %3395 = vmatpush2.bf16.msra.mxu0 %v2274
    %3396 = vmatprep.subr.bf16.mxu0 %v2267
    %3397 = vmatpush2.bf16.msra.mxu0 %v2266
    %3398 = vmatprep.subr.bf16.mxu0 %v2259
    %3399 = vmatpush2.bf16.msra.mxu0 %v2258
    %3400 = vmatprep.mubr.bf16.mxu0 %v666
    %3401 = vmatmul.mubr.bf16.gmra.mxu0 %v665
    %v3402 = vpop.f32.mrf.mxu0
    %v3403 = vadd.f32 %v624, %v3402
    %v3404 = vpop.f32.mrf.mxu0
    %v3405 = vadd.f32 %v628, %v3404
    %v3406 = vpop.f32.mrf.mxu0
    %v3407 = vpop.f32.mrf.mxu0
    %3408 = vdwg.mxu0
    %3409 = vmatprep.subr.bf16.mxu0 %v2379
    %3410 = vmatpush1.bf16.msra.mxu0 %v2378
    %3411 = vmatprep.subr.bf16.mxu0 %v2371
    %3412 = vmatpush1.bf16.msra.mxu0 %v2370
    %3413 = vmatprep.subr.bf16.mxu0 %v2363
    %3414 = vmatpush1.bf16.msra.mxu0 %v2362
    %3415 = vmatprep.subr.bf16.mxu0 %v2355
    %3416 = vmatpush1.bf16.msra.mxu0 %v2354
    %3417 = vmatprep.subr.bf16.mxu0 %v2347
    %3418 = vmatpush1.bf16.msra.mxu0 %v2346
    %3419 = vmatprep.subr.bf16.mxu0 %v2339
    %3420 = vmatpush1.bf16.msra.mxu0 %v2338
    %3421 = vmatprep.subr.bf16.mxu0 %v2331
    %3422 = vmatpush1.bf16.msra.mxu0 %v2330
    %3423 = vmatprep.subr.bf16.mxu0 %v2323
    %3424 = vmatpush1.bf16.msra.mxu0 %v2322
    %3425 = vmatprep.subr.bf16.mxu0 %v2443
    %3426 = vmatpush2.bf16.msra.mxu0 %v2442
    %3427 = vmatprep.subr.bf16.mxu0 %v2435
    %3428 = vmatpush2.bf16.msra.mxu0 %v2434
    %3429 = vmatprep.subr.bf16.mxu0 %v2427
    %3430 = vmatpush2.bf16.msra.mxu0 %v2426
    %3431 = vmatprep.subr.bf16.mxu0 %v2419
    %3432 = vmatpush2.bf16.msra.mxu0 %v2418
    %3433 = vmatprep.subr.bf16.mxu0 %v2411
    %3434 = vmatpush2.bf16.msra.mxu0 %v2410
    %3435 = vmatprep.subr.bf16.mxu0 %v2403
    %3436 = vmatpush2.bf16.msra.mxu0 %v2402
    %3437 = vmatprep.subr.bf16.mxu0 %v2395
    %3438 = vmatpush2.bf16.msra.mxu0 %v2394
    %3439 = vmatprep.subr.bf16.mxu0 %v2387
    %3440 = vmatpush2.bf16.msra.mxu0 %v2386
    %3441 = vmatprep.mubr.bf16.mxu0 %v668
    %3442 = vmatmul.mubr.bf16.gmra.mxu0 %v667
    %v3443 = vpop.f32.mrf.mxu0
    %v3444 = vadd.f32 %v3403, %v3443
    %v3445 = vpop.f32.mrf.mxu0
    %v3446 = vadd.f32 %v3405, %v3445
    %v3447 = vpop.f32.mrf.mxu0
    %v3448 = vpop.f32.mrf.mxu0
    %3449 = vdwg.mxu0
    %3450 = vmatprep.subr.bf16.mxu0 %v2507
    %3451 = vmatpush1.bf16.msra.mxu0 %v2506
    %3452 = vmatprep.subr.bf16.mxu0 %v2499
    %3453 = vmatpush1.bf16.msra.mxu0 %v2498
    %3454 = vmatprep.subr.bf16.mxu0 %v2491
    %3455 = vmatpush1.bf16.msra.mxu0 %v2490
    %3456 = vmatprep.subr.bf16.mxu0 %v2483
    %3457 = vmatpush1.bf16.msra.mxu0 %v2482
    %3458 = vmatprep.subr.bf16.mxu0 %v2475
    %3459 = vmatpush1.bf16.msra.mxu0 %v2474
    %3460 = vmatprep.subr.bf16.mxu0 %v2467
    %3461 = vmatpush1.bf16.msra.mxu0 %v2466
    %3462 = vmatprep.subr.bf16.mxu0 %v2459
    %3463 = vmatpush1.bf16.msra.mxu0 %v2458
    %3464 = vmatprep.subr.bf16.mxu0 %v2451
    %3465 = vmatpush1.bf16.msra.mxu0 %v2450
    %3466 = vmatprep.subr.bf16.mxu0 %v2571
    %3467 = vmatpush2.bf16.msra.mxu0 %v2570
    %3468 = vmatprep.subr.bf16.mxu0 %v2563
    %3469 = vmatpush2.bf16.msra.mxu0 %v2562
    %3470 = vmatprep.subr.bf16.mxu0 %v2555
    %3471 = vmatpush2.bf16.msra.mxu0 %v2554
    %3472 = vmatprep.subr.bf16.mxu0 %v2547
    %3473 = vmatpush2.bf16.msra.mxu0 %v2546
    %3474 = vmatprep.subr.bf16.mxu0 %v2539
    %3475 = vmatpush2.bf16.msra.mxu0 %v2538
    %3476 = vmatprep.subr.bf16.mxu0 %v2531
    %3477 = vmatpush2.bf16.msra.mxu0 %v2530
    %3478 = vmatprep.subr.bf16.mxu0 %v2523
    %3479 = vmatpush2.bf16.msra.mxu0 %v2522
    %3480 = vmatprep.subr.bf16.mxu0 %v2515
    %3481 = vmatpush2.bf16.msra.mxu0 %v2514
    %3482 = vmatprep.mubr.bf16.mxu0 %v670
    %3483 = vmatmul.mubr.bf16.gmra.mxu0 %v669
    %v3484 = vpop.f32.mrf.mxu0
    %v3485 = vadd.f32 %v3444, %v3484
    %v3486 = vpop.f32.mrf.mxu0
    %v3487 = vadd.f32 %v3446, %v3486
    %v3488 = vpop.f32.mrf.mxu0
    %v3489 = vpop.f32.mrf.mxu0
    %3490 = vdwg.mxu0
    %3491 = vmatprep.subr.bf16.mxu0 %v2635
    %3492 = vmatpush1.bf16.msra.mxu0 %v2634
    %3493 = vmatprep.subr.bf16.mxu0 %v2627
    %3494 = vmatpush1.bf16.msra.mxu0 %v2626
    %3495 = vmatprep.subr.bf16.mxu0 %v2619
    %3496 = vmatpush1.bf16.msra.mxu0 %v2618
    %3497 = vmatprep.subr.bf16.mxu0 %v2611
    %3498 = vmatpush1.bf16.msra.mxu0 %v2610
    %3499 = vmatprep.subr.bf16.mxu0 %v2603
    %3500 = vmatpush1.bf16.msra.mxu0 %v2602
    %3501 = vmatprep.subr.bf16.mxu0 %v2595
    %3502 = vmatpush1.bf16.msra.mxu0 %v2594
    %3503 = vmatprep.subr.bf16.mxu0 %v2587
    %3504 = vmatpush1.bf16.msra.mxu0 %v2586
    %3505 = vmatprep.subr.bf16.mxu0 %v2579
    %3506 = vmatpush1.bf16.msra.mxu0 %v2578
    %3507 = vmatprep.subr.bf16.mxu0 0
    %3508 = vmatpush2.bf16.msra.mxu0 0
    %3509 = vmatprep.subr.bf16.mxu0 %v2691
    %3510 = vmatpush2.bf16.msra.mxu0 %v2690
    %3511 = vmatprep.subr.bf16.mxu0 %v2683
    %3512 = vmatpush2.bf16.msra.mxu0 %v2682
    %3513 = vmatprep.subr.bf16.mxu0 %v2675
    %3514 = vmatpush2.bf16.msra.mxu0 %v2674
    %3515 = vmatprep.subr.bf16.mxu0 %v2667
    %3516 = vmatpush2.bf16.msra.mxu0 %v2666
    %3517 = vmatprep.subr.bf16.mxu0 %v2659
    %3518 = vmatpush2.bf16.msra.mxu0 %v2658
    %3519 = vmatprep.subr.bf16.mxu0 %v2651
    %3520 = vmatpush2.bf16.msra.mxu0 %v2650
    %3521 = vmatprep.subr.bf16.mxu0 %v2643
    %3522 = vmatpush2.bf16.msra.mxu0 %v2642
    %3523 = vmatprep.mubr.bf16.mxu0 %v3202
    %3524 = vmatmul.mubr.bf16.gmra.mxu0 %v671
    %v3525 = vpop.f32.mrf.mxu0
    %v3526 = vadd.f32 %v3485, %v3525
    %v3527 = vpop.f32.mrf.mxu0
    %v3528 = vadd.f32 %v3487, %v3527
    %v3529 = vpop.f32.mrf.mxu0
    %v3530 = vpop.f32.mrf.mxu0
    %3531 = vdwg.mxu0
    %3532 = vmatprep.subr.bf16.mxu0 %v2253
    %3533 = vmatpush1.bf16.msra.mxu0 %v2252
    %3534 = vmatprep.subr.bf16.mxu0 %v2245
    %3535 = vmatpush1.bf16.msra.mxu0 %v2244
    %3536 = vmatprep.subr.bf16.mxu0 %v2237
    %3537 = vmatpush1.bf16.msra.mxu0 %v2236
    %3538 = vmatprep.subr.bf16.mxu0 %v2229
    %3539 = vmatpush1.bf16.msra.mxu0 %v2228
    %3540 = vmatprep.subr.bf16.mxu0 %v2221
    %3541 = vmatpush1.bf16.msra.mxu0 %v2220
    %3542 = vmatprep.subr.bf16.mxu0 %v2213
    %3543 = vmatpush1.bf16.msra.mxu0 %v2212
    %3544 = vmatprep.subr.bf16.mxu0 %v2205
    %3545 = vmatpush1.bf16.msra.mxu0 %v2204
    %3546 = vmatprep.subr.bf16.mxu0 %v2197
    %3547 = vmatpush1.bf16.msra.mxu0 %v2196
    %3548 = vmatprep.subr.bf16.mxu0 %v2317
    %3549 = vmatpush2.bf16.msra.mxu0 %v2316
    %3550 = vmatprep.subr.bf16.mxu0 %v2309
    %3551 = vmatpush2.bf16.msra.mxu0 %v2308
    %3552 = vmatprep.subr.bf16.mxu0 %v2301
    %3553 = vmatpush2.bf16.msra.mxu0 %v2300
    %3554 = vmatprep.subr.bf16.mxu0 %v2293
    %3555 = vmatpush2.bf16.msra.mxu0 %v2292
    %3556 = vmatprep.subr.bf16.mxu0 %v2285
    %3557 = vmatpush2.bf16.msra.mxu0 %v2284
    %3558 = vmatprep.subr.bf16.mxu0 %v2277
    %3559 = vmatpush2.bf16.msra.mxu0 %v2276
    %3560 = vmatprep.subr.bf16.mxu0 %v2269
    %3561 = vmatpush2.bf16.msra.mxu0 %v2268
    %3562 = vmatprep.subr.bf16.mxu0 %v2261
    %3563 = vmatpush2.bf16.msra.mxu0 %v2260
    %3564 = vmatprep.mubr.bf16.mxu0 %v666
    %3565 = vmatmul.mubr.bf16.gmra.mxu0 %v665
    %v3566 = vpop.f32.mrf.mxu0
    %v3567 = vadd.f32 %v632, %v3566
    %v3568 = vpop.f32.mrf.mxu0
    %v3569 = vadd.f32 %v636, %v3568
    %v3570 = vpop.f32.mrf.mxu0
    %v3571 = vpop.f32.mrf.mxu0
    %3572 = vdwg.mxu0
    %3573 = vmatprep.subr.bf16.mxu0 %v2381
    %3574 = vmatpush1.bf16.msra.mxu0 %v2380
    %3575 = vmatprep.subr.bf16.mxu0 %v2373
    %3576 = vmatpush1.bf16.msra.mxu0 %v2372
    %3577 = vmatprep.subr.bf16.mxu0 %v2365
    %3578 = vmatpush1.bf16.msra.mxu0 %v2364
    %3579 = vmatprep.subr.bf16.mxu0 %v2357
    %3580 = vmatpush1.bf16.msra.mxu0 %v2356
    %3581 = vmatprep.subr.bf16.mxu0 %v2349
    %3582 = vmatpush1.bf16.msra.mxu0 %v2348
    %3583 = vmatprep.subr.bf16.mxu0 %v2341
    %3584 = vmatpush1.bf16.msra.mxu0 %v2340
    %3585 = vmatprep.subr.bf16.mxu0 %v2333
    %3586 = vmatpush1.bf16.msra.mxu0 %v2332
    %3587 = vmatprep.subr.bf16.mxu0 %v2325
    %3588 = vmatpush1.bf16.msra.mxu0 %v2324
    %3589 = vmatprep.subr.bf16.mxu0 %v2445
    %3590 = vmatpush2.bf16.msra.mxu0 %v2444
    %3591 = vmatprep.subr.bf16.mxu0 %v2437
    %3592 = vmatpush2.bf16.msra.mxu0 %v2436
    %3593 = vmatprep.subr.bf16.mxu0 %v2429
    %3594 = vmatpush2.bf16.msra.mxu0 %v2428
    %3595 = vmatprep.subr.bf16.mxu0 %v2421
    %3596 = vmatpush2.bf16.msra.mxu0 %v2420
    %3597 = vmatprep.subr.bf16.mxu0 %v2413
    %3598 = vmatpush2.bf16.msra.mxu0 %v2412
    %3599 = vmatprep.subr.bf16.mxu0 %v2405
    %3600 = vmatpush2.bf16.msra.mxu0 %v2404
    %3601 = vmatprep.subr.bf16.mxu0 %v2397
    %3602 = vmatpush2.bf16.msra.mxu0 %v2396
    %3603 = vmatprep.subr.bf16.mxu0 %v2389
    %3604 = vmatpush2.bf16.msra.mxu0 %v2388
    %3605 = vmatprep.mubr.bf16.mxu0 %v668
    %3606 = vmatmul.mubr.bf16.gmra.mxu0 %v667
    %v3607 = vpop.f32.mrf.mxu0
    %v3608 = vadd.f32 %v3567, %v3607
    %v3609 = vpop.f32.mrf.mxu0
    %v3610 = vadd.f32 %v3569, %v3609
    %v3611 = vpop.f32.mrf.mxu0
    %v3612 = vpop.f32.mrf.mxu0
    %3613 = vdwg.mxu0
    %3614 = vmatprep.subr.bf16.mxu0 %v2509
    %3615 = vmatpush1.bf16.msra.mxu0 %v2508
    %3616 = vmatprep.subr.bf16.mxu0 %v2501
    %3617 = vmatpush1.bf16.msra.mxu0 %v2500
    %3618 = vmatprep.subr.bf16.mxu0 %v2493
    %3619 = vmatpush1.bf16.msra.mxu0 %v2492
    %3620 = vmatprep.subr.bf16.mxu0 %v2485
    %3621 = vmatpush1.bf16.msra.mxu0 %v2484
    %3622 = vmatprep.subr.bf16.mxu0 %v2477
    %3623 = vmatpush1.bf16.msra.mxu0 %v2476
    %3624 = vmatprep.subr.bf16.mxu0 %v2469
    %3625 = vmatpush1.bf16.msra.mxu0 %v2468
    %3626 = vmatprep.subr.bf16.mxu0 %v2461
    %3627 = vmatpush1.bf16.msra.mxu0 %v2460
    %3628 = vmatprep.subr.bf16.mxu0 %v2453
    %3629 = vmatpush1.bf16.msra.mxu0 %v2452
    %3630 = vmatprep.subr.bf16.mxu0 %v2573
    %3631 = vmatpush2.bf16.msra.mxu0 %v2572
    %3632 = vmatprep.subr.bf16.mxu0 %v2565
    %3633 = vmatpush2.bf16.msra.mxu0 %v2564
    %3634 = vmatprep.subr.bf16.mxu0 %v2557
    %3635 = vmatpush2.bf16.msra.mxu0 %v2556
    %3636 = vmatprep.subr.bf16.mxu0 %v2549
    %3637 = vmatpush2.bf16.msra.mxu0 %v2548
    %3638 = vmatprep.subr.bf16.mxu0 %v2541
    %3639 = vmatpush2.bf16.msra.mxu0 %v2540
    %3640 = vmatprep.subr.bf16.mxu0 %v2533
    %3641 = vmatpush2.bf16.msra.mxu0 %v2532
    %3642 = vmatprep.subr.bf16.mxu0 %v2525
    %3643 = vmatpush2.bf16.msra.mxu0 %v2524
    %3644 = vmatprep.subr.bf16.mxu0 %v2517
    %3645 = vmatpush2.bf16.msra.mxu0 %v2516
    %3646 = vmatprep.mubr.bf16.mxu0 %v670
    %3647 = vmatmul.mubr.bf16.gmra.mxu0 %v669
    %v3648 = vpop.f32.mrf.mxu0
    %v3649 = vadd.f32 %v3608, %v3648
    %v3650 = vpop.f32.mrf.mxu0
    %v3651 = vadd.f32 %v3610, %v3650
    %v3652 = vpop.f32.mrf.mxu0
    %v3653 = vpop.f32.mrf.mxu0
    %3654 = vdwg.mxu0
    %3655 = vmatprep.subr.bf16.mxu0 %v2637
    %3656 = vmatpush1.bf16.msra.mxu0 %v2636
    %3657 = vmatprep.subr.bf16.mxu0 %v2629
    %3658 = vmatpush1.bf16.msra.mxu0 %v2628
    %3659 = vmatprep.subr.bf16.mxu0 %v2621
    %3660 = vmatpush1.bf16.msra.mxu0 %v2620
    %3661 = vmatprep.subr.bf16.mxu0 %v2613
    %3662 = vmatpush1.bf16.msra.mxu0 %v2612
    %3663 = vmatprep.subr.bf16.mxu0 %v2605
    %3664 = vmatpush1.bf16.msra.mxu0 %v2604
    %3665 = vmatprep.subr.bf16.mxu0 %v2597
    %3666 = vmatpush1.bf16.msra.mxu0 %v2596
    %3667 = vmatprep.subr.bf16.mxu0 %v2589
    %3668 = vmatpush1.bf16.msra.mxu0 %v2588
    %3669 = vmatprep.subr.bf16.mxu0 %v2581
    %3670 = vmatpush1.bf16.msra.mxu0 %v2580
    %3671 = vmatprep.subr.bf16.mxu0 0
    %3672 = vmatpush2.bf16.msra.mxu0 0
    %3673 = vmatprep.subr.bf16.mxu0 %v2693
    %3674 = vmatpush2.bf16.msra.mxu0 %v2692
    %3675 = vmatprep.subr.bf16.mxu0 %v2685
    %3676 = vmatpush2.bf16.msra.mxu0 %v2684
    %3677 = vmatprep.subr.bf16.mxu0 %v2677
    %3678 = vmatpush2.bf16.msra.mxu0 %v2676
    %3679 = vmatprep.subr.bf16.mxu0 %v2669
    %3680 = vmatpush2.bf16.msra.mxu0 %v2668
    %3681 = vmatprep.subr.bf16.mxu0 %v2661
    %3682 = vmatpush2.bf16.msra.mxu0 %v2660
    %3683 = vmatprep.subr.bf16.mxu0 %v2653
    %3684 = vmatpush2.bf16.msra.mxu0 %v2652
    %3685 = vmatprep.subr.bf16.mxu0 %v2645
    %3686 = vmatpush2.bf16.msra.mxu0 %v2644
    %3687 = vmatprep.mubr.bf16.mxu0 %v3202
    %3688 = vmatmul.mubr.bf16.gmra.mxu0 %v671
    %v3689 = vpop.f32.mrf.mxu0
    %v3690 = vadd.f32 %v3649, %v3689
    %v3691 = vpop.f32.mrf.mxu0
    %v3692 = vadd.f32 %v3651, %v3691
    %v3693 = vpop.f32.mrf.mxu0
    %v3694 = vpop.f32.mrf.mxu0
    %3695 = vdwg.mxu0
    %3696 = vmatprep.subr.bf16.mxu0 %v2255
    %3697 = vmatpush1.bf16.msra.mxu0 %v2254
    %3698 = vmatprep.subr.bf16.mxu0 %v2247
    %3699 = vmatpush1.bf16.msra.mxu0 %v2246
    %3700 = vmatprep.subr.bf16.mxu0 %v2239
    %3701 = vmatpush1.bf16.msra.mxu0 %v2238
    %3702 = vmatprep.subr.bf16.mxu0 %v2231
    %3703 = vmatpush1.bf16.msra.mxu0 %v2230
    %3704 = vmatprep.subr.bf16.mxu0 %v2223
    %3705 = vmatpush1.bf16.msra.mxu0 %v2222
    %3706 = vmatprep.subr.bf16.mxu0 %v2215
    %3707 = vmatpush1.bf16.msra.mxu0 %v2214
    %3708 = vmatprep.subr.bf16.mxu0 %v2207
    %3709 = vmatpush1.bf16.msra.mxu0 %v2206
    %3710 = vmatprep.subr.bf16.mxu0 %v2199
    %3711 = vmatpush1.bf16.msra.mxu0 %v2198
    %3712 = vmatprep.subr.bf16.mxu0 %v2319
    %3713 = vmatpush2.bf16.msra.mxu0 %v2318
    %3714 = vmatprep.subr.bf16.mxu0 %v2311
    %3715 = vmatpush2.bf16.msra.mxu0 %v2310
    %3716 = vmatprep.subr.bf16.mxu0 %v2303
    %3717 = vmatpush2.bf16.msra.mxu0 %v2302
    %3718 = vmatprep.subr.bf16.mxu0 %v2295
    %3719 = vmatpush2.bf16.msra.mxu0 %v2294
    %3720 = vmatprep.subr.bf16.mxu0 %v2287
    %3721 = vmatpush2.bf16.msra.mxu0 %v2286
    %3722 = vmatprep.subr.bf16.mxu0 %v2279
    %3723 = vmatpush2.bf16.msra.mxu0 %v2278
    %3724 = vmatprep.subr.bf16.mxu0 %v2271
    %3725 = vmatpush2.bf16.msra.mxu0 %v2270
    %3726 = vmatprep.subr.bf16.mxu0 %v2263
    %3727 = vmatpush2.bf16.msra.mxu0 %v2262
    %3728 = vmatprep.mubr.bf16.mxu0 %v666
    %3729 = vmatmul.mubr.bf16.gmra.mxu0 %v665
    %v3730 = vpop.f32.mrf.mxu0
    %v3731 = vadd.f32 %v640, %v3730
    %v3732 = vpop.f32.mrf.mxu0
    %v3733 = vadd.f32 %v644, %v3732
    %v3734 = vpop.f32.mrf.mxu0
    %v3735 = vpop.f32.mrf.mxu0
    %3736 = vdwg.mxu0
    %3737 = vmatprep.subr.bf16.mxu0 %v2383
    %3738 = vmatpush1.bf16.msra.mxu0 %v2382
    %3739 = vmatprep.subr.bf16.mxu0 %v2375
    %3740 = vmatpush1.bf16.msra.mxu0 %v2374
    %3741 = vmatprep.subr.bf16.mxu0 %v2367
    %3742 = vmatpush1.bf16.msra.mxu0 %v2366
    %3743 = vmatprep.subr.bf16.mxu0 %v2359
    %3744 = vmatpush1.bf16.msra.mxu0 %v2358
    %3745 = vmatprep.subr.bf16.mxu0 %v2351
    %3746 = vmatpush1.bf16.msra.mxu0 %v2350
    %3747 = vmatprep.subr.bf16.mxu0 %v2343
    %3748 = vmatpush1.bf16.msra.mxu0 %v2342
    %3749 = vmatprep.subr.bf16.mxu0 %v2335
    %3750 = vmatpush1.bf16.msra.mxu0 %v2334
    %3751 = vmatprep.subr.bf16.mxu0 %v2327
    %3752 = vmatpush1.bf16.msra.mxu0 %v2326
    %3753 = vmatprep.subr.bf16.mxu0 %v2447
    %3754 = vmatpush2.bf16.msra.mxu0 %v2446
    %3755 = vmatprep.subr.bf16.mxu0 %v2439
    %3756 = vmatpush2.bf16.msra.mxu0 %v2438
    %3757 = vmatprep.subr.bf16.mxu0 %v2431
    %3758 = vmatpush2.bf16.msra.mxu0 %v2430
    %3759 = vmatprep.subr.bf16.mxu0 %v2423
    %3760 = vmatpush2.bf16.msra.mxu0 %v2422
    %3761 = vmatprep.subr.bf16.mxu0 %v2415
    %3762 = vmatpush2.bf16.msra.mxu0 %v2414
    %3763 = vmatprep.subr.bf16.mxu0 %v2407
    %3764 = vmatpush2.bf16.msra.mxu0 %v2406
    %3765 = vmatprep.subr.bf16.mxu0 %v2399
    %3766 = vmatpush2.bf16.msra.mxu0 %v2398
    %3767 = vmatprep.subr.bf16.mxu0 %v2391
    %3768 = vmatpush2.bf16.msra.mxu0 %v2390
    %3769 = vmatprep.mubr.bf16.mxu0 %v668
    %3770 = vmatmul.mubr.bf16.gmra.mxu0 %v667
    %v3771 = vpop.f32.mrf.mxu0
    %v3772 = vadd.f32 %v3731, %v3771
    %v3773 = vpop.f32.mrf.mxu0
    %v3774 = vadd.f32 %v3733, %v3773
    %v3775 = vpop.f32.mrf.mxu0
    %v3776 = vpop.f32.mrf.mxu0
    %3777 = vdwg.mxu0
    %3778 = vmatprep.subr.bf16.mxu0 %v2511
    %3779 = vmatpush1.bf16.msra.mxu0 %v2510
    %3780 = vmatprep.subr.bf16.mxu0 %v2503
    %3781 = vmatpush1.bf16.msra.mxu0 %v2502
    %3782 = vmatprep.subr.bf16.mxu0 %v2495
    %3783 = vmatpush1.bf16.msra.mxu0 %v2494
    %3784 = vmatprep.subr.bf16.mxu0 %v2487
    %3785 = vmatpush1.bf16.msra.mxu0 %v2486
    %3786 = vmatprep.subr.bf16.mxu0 %v2479
    %3787 = vmatpush1.bf16.msra.mxu0 %v2478
    %3788 = vmatprep.subr.bf16.mxu0 %v2471
    %3789 = vmatpush1.bf16.msra.mxu0 %v2470
    %3790 = vmatprep.subr.bf16.mxu0 %v2463
    %3791 = vmatpush1.bf16.msra.mxu0 %v2462
    %3792 = vmatprep.subr.bf16.mxu0 %v2455
    %3793 = vmatpush1.bf16.msra.mxu0 %v2454
    %3794 = vmatprep.subr.bf16.mxu0 %v2575
    %3795 = vmatpush2.bf16.msra.mxu0 %v2574
    %3796 = vmatprep.subr.bf16.mxu0 %v2567
    %3797 = vmatpush2.bf16.msra.mxu0 %v2566
    %3798 = vmatprep.subr.bf16.mxu0 %v2559
    %3799 = vmatpush2.bf16.msra.mxu0 %v2558
    %3800 = vmatprep.subr.bf16.mxu0 %v2551
    %3801 = vmatpush2.bf16.msra.mxu0 %v2550
    %3802 = vmatprep.subr.bf16.mxu0 %v2543
    %3803 = vmatpush2.bf16.msra.mxu0 %v2542
    %3804 = vmatprep.subr.bf16.mxu0 %v2535
    %3805 = vmatpush2.bf16.msra.mxu0 %v2534
    %3806 = vmatprep.subr.bf16.mxu0 %v2527
    %3807 = vmatpush2.bf16.msra.mxu0 %v2526
    %3808 = vmatprep.subr.bf16.mxu0 %v2519
    %3809 = vmatpush2.bf16.msra.mxu0 %v2518
    %3810 = vmatprep.mubr.bf16.mxu0 %v670
    %3811 = vmatmul.mubr.bf16.gmra.mxu0 %v669
    %v3812 = vpop.f32.mrf.mxu0
    %v3813 = vadd.f32 %v3772, %v3812
    %v3814 = vpop.f32.mrf.mxu0
    %v3815 = vadd.f32 %v3774, %v3814
    %v3816 = vpop.f32.mrf.mxu0
    %v3817 = vpop.f32.mrf.mxu0
    %3818 = vdwg.mxu0
    %3819 = vmatprep.subr.bf16.mxu0 %v2639
    %3820 = vmatpush1.bf16.msra.mxu0 %v2638
    %3821 = vmatprep.subr.bf16.mxu0 %v2631
    %3822 = vmatpush1.bf16.msra.mxu0 %v2630
    %3823 = vmatprep.subr.bf16.mxu0 %v2623
    %3824 = vmatpush1.bf16.msra.mxu0 %v2622
    %3825 = vmatprep.subr.bf16.mxu0 %v2615
    %3826 = vmatpush1.bf16.msra.mxu0 %v2614
    %3827 = vmatprep.subr.bf16.mxu0 %v2607
    %3828 = vmatpush1.bf16.msra.mxu0 %v2606
    %3829 = vmatprep.subr.bf16.mxu0 %v2599
    %3830 = vmatpush1.bf16.msra.mxu0 %v2598
    %3831 = vmatprep.subr.bf16.mxu0 %v2591
    %3832 = vmatpush1.bf16.msra.mxu0 %v2590
    %3833 = vmatprep.subr.bf16.mxu0 %v2583
    %3834 = vmatpush1.bf16.msra.mxu0 %v2582
    %3835 = vmatprep.subr.bf16.mxu0 0
    %3836 = vmatpush2.bf16.msra.mxu0 0
    %3837 = vmatprep.subr.bf16.mxu0 %v2695
    %3838 = vmatpush2.bf16.msra.mxu0 %v2694
    %3839 = vmatprep.subr.bf16.mxu0 %v2687
    %3840 = vmatpush2.bf16.msra.mxu0 %v2686
    %3841 = vmatprep.subr.bf16.mxu0 %v2679
    %3842 = vmatpush2.bf16.msra.mxu0 %v2678
    %3843 = vmatprep.subr.bf16.mxu0 %v2671
    %3844 = vmatpush2.bf16.msra.mxu0 %v2670
    %3845 = vmatprep.subr.bf16.mxu0 %v2663
    %3846 = vmatpush2.bf16.msra.mxu0 %v2662
    %3847 = vmatprep.subr.bf16.mxu0 %v2655
    %3848 = vmatpush2.bf16.msra.mxu0 %v2654
    %3849 = vmatprep.subr.bf16.mxu0 %v2647
    %3850 = vmatpush2.bf16.msra.mxu0 %v2646
    %3851 = vmatprep.mubr.bf16.mxu0 %v3202
    %3852 = vmatmul.mubr.bf16.gmra.mxu0 %v671
    %v3853 = vpop.f32.mrf.mxu0
    %v3854 = vadd.f32 %v3813, %v3853
    %v3855 = vpop.f32.mrf.mxu0
    %v3856 = vadd.f32 %v3815, %v3855
    %v3857 = vpop.f32.mrf.mxu0
    %v3858 = vpop.f32.mrf.mxu0
    %3859 = vdwg.mxu0
    %v3860 = vmax.f32 %v3362, 0.0
    %v3861 = vmax.f32 %v3364, 0.0
    %v3862 = vmax.f32 %v3526, 0.0
    %v3863 = vmax.f32 %v3528, 0.0
    %v3864 = vmax.f32 %v3690, 0.0
    %v3865 = vmax.f32 %v3692, 0.0
    %v3866 = vmax.f32 %v3854, 0.0
    %v3867 = vmax.f32 %v3856, 0.0
    %v3868 = vpack.c.bf16 %v3860, %v3860
    %v3869 = vpack.c.bf16 %v3861, %v3861
    %v3870 = vpack.c.bf16 %v3862, %v3862
    %v3871 = vpack.c.bf16 %v3863, %v3863
    %v3872 = vpack.c.bf16 %v3864, %v3864
    %v3873 = vpack.c.bf16 %v3865, %v3865
    %v3874 = vpack.c.bf16 %v3866, %v3866
    %v3875 = vpack.c.bf16 %v3867, %v3867
    %v3876 = vld [vmem:[#allocation6] sm:$0xff]
    %v3877 = vld [vmem:[#allocation6 + $0x8] sm:$0xff]
    %v3878 = vld [vmem:[#allocation6 + $0x10] sm:$0xff]
    %v3879 = vld [vmem:[#allocation6 + $0x18] sm:$0xff]
    %v3880 = vld [vmem:[#allocation6 + $0x20] sm:$0xff]
    %v3881 = vld [vmem:[#allocation6 + $0x28] sm:$0xff]
    %v3882 = vld [vmem:[#allocation6 + $0x30] sm:$0xff]
    %v3883 = vld [vmem:[#allocation6 + $0x38] sm:$0xff]
    %v3884 = vld [vmem:[#allocation6 + $0x40] sm:$0xff]
    %v3885 = vld [vmem:[#allocation6 + $0x48] sm:$0xff]
    %v3886 = vld [vmem:[#allocation6 + $0x50] sm:$0xff]
    %v3887 = vld [vmem:[#allocation6 + $0x58] sm:$0xff]
    %v3888 = vld [vmem:[#allocation6 + $0x60] sm:$0xff]
    %v3889 = vld [vmem:[#allocation6 + $0x68] sm:$0xff]
    %v3890 = vld [vmem:[#allocation6 + $0x70] sm:$0xff]
    %v3891 = vld [vmem:[#allocation6 + $0x78] sm:$0xff]
    %v3892 = vld [vmem:[#allocation6 + $0x80] sm:$0xff]
    %v3893 = vld [vmem:[#allocation6 + $0x88] sm:$0xff]
    %v3894 = vld [vmem:[#allocation6 + $0x90] sm:$0xff]
    %v3895 = vld [vmem:[#allocation6 + $0x98] sm:$0xff]
    %v3896 = vld [vmem:[#allocation6 + $0xa0] sm:$0xff]
    %v3897 = vld [vmem:[#allocation6 + $0xa8] sm:$0xff]
    %v3898 = vld [vmem:[#allocation6 + $0xb0] sm:$0xff]
    %v3899 = vld [vmem:[#allocation6 + $0xb8] sm:$0xff]
    %v3900 = vld [vmem:[#allocation6 + $0xc0] sm:$0xff]
    %v3901 = vld [vmem:[#allocation6 + $0xc8] sm:$0xff]
    %v3902 = vld [vmem:[#allocation6 + $0xd0] sm:$0xff]
    %v3903 = vld [vmem:[#allocation6 + $0xd8] sm:$0xff]
    %v3904 = vld [vmem:[#allocation6 + $0xe0] sm:$0xff]
    %v3905 = vld [vmem:[#allocation6 + $0xe8] sm:$0xff]
    %v3906 = vld [vmem:[#allocation6 + $0xf0] sm:$0xff]
    %v3907 = vld [vmem:[#allocation6 + $0xf8] sm:$0xff]
    %v3908 = vld [vmem:[#allocation6 + $0x100] sm:$0xff]
    %v3909 = vld [vmem:[#allocation6 + $0x108] sm:$0xff]
    %v3910 = vld [vmem:[#allocation6 + $0x110] sm:$0xff]
    %v3911 = vld [vmem:[#allocation6 + $0x118] sm:$0xff]
    %v3912 = vld [vmem:[#allocation6 + $0x120] sm:$0xff]
    %v3913 = vld [vmem:[#allocation6 + $0x128] sm:$0xff]
    %v3914 = vld [vmem:[#allocation6 + $0x130] sm:$0xff]
    %v3915 = vld [vmem:[#allocation6 + $0x138] sm:$0xff]
    %v3916 = vld [vmem:[#allocation6 + $0x140] sm:$0xff]
    %v3917 = vld [vmem:[#allocation6 + $0x148] sm:$0xff]
    %v3918 = vld [vmem:[#allocation6 + $0x150] sm:$0xff]
    %v3919 = vld [vmem:[#allocation6 + $0x158] sm:$0xff]
    %v3920 = vld [vmem:[#allocation6 + $0x160] sm:$0xff]
    %v3921 = vld [vmem:[#allocation6 + $0x168] sm:$0xff]
    %v3922 = vld [vmem:[#allocation6 + $0x170] sm:$0xff]
    %v3923 = vld [vmem:[#allocation6 + $0x178] sm:$0xff]
    %v3924 = vld [vmem:[#allocation6 + $0x180] sm:$0xff]
    %v3925 = vld [vmem:[#allocation6 + $0x188] sm:$0xff]
    %v3926 = vld [vmem:[#allocation6 + $0x190] sm:$0xff]
    %v3927 = vld [vmem:[#allocation6 + $0x198] sm:$0xff]
    %v3928 = vld [vmem:[#allocation6 + $0x1a0] sm:$0xff]
    %v3929 = vld [vmem:[#allocation6 + $0x1a8] sm:$0xff]
    %v3930 = vld [vmem:[#allocation6 + $0x1b0] sm:$0xff]
    %v3931 = vld [vmem:[#allocation6 + $0x1b8] sm:$0xff]
    %v3932 = vld [vmem:[#allocation6 + $0x1c0] sm:$0xff]
    %v3933 = vld [vmem:[#allocation6 + $0x1c8] sm:$0xff]
    %v3934 = vld [vmem:[#allocation6 + $0x1d0] sm:$0xff]
    %v3935 = vld [vmem:[#allocation6 + $0x1d8] sm:$0xff]
    %v3936 = vld [vmem:[#allocation6 + $0x1e0] sm:$0xff]
    %v3937 = vld [vmem:[#allocation6 + $0x1e8] sm:$0xff]
    %v3938 = vld [vmem:[#allocation6 + $0x1f0] sm:$0xff]
    %v3939 = vld [vmem:[#allocation6 + $0x1f8] sm:$0xff]
    %v3940 = vld [vmem:[#allocation6 + $0x200] sm:$0xff]
    %v3941 = vld [vmem:[#allocation6 + $0x208] sm:$0xff]
    %v3942 = vld [vmem:[#allocation6 + $0x210] sm:$0xff]
    %v3943 = vld [vmem:[#allocation6 + $0x218] sm:$0xff]
    %v3944 = vld [vmem:[#allocation6 + $0x220] sm:$0xff]
    %v3945 = vld [vmem:[#allocation6 + $0x228] sm:$0xff]
    %v3946 = vld [vmem:[#allocation6 + $0x230] sm:$0xff]
    %v3947 = vld [vmem:[#allocation6 + $0x238] sm:$0xff]
    %v3948 = vld [vmem:[#allocation6 + $0x240] sm:$0xff]
    %v3949 = vld [vmem:[#allocation6 + $0x248] sm:$0xff]
    %v3950 = vld [vmem:[#allocation6 + $0x250] sm:$0xff]
    %v3951 = vld [vmem:[#allocation6 + $0x258] sm:$0xff]
    %v3952 = vld [vmem:[#allocation6 + $0x260] sm:$0xff]
    %v3953 = vld [vmem:[#allocation6 + $0x268] sm:$0xff]
    %v3954 = vld [vmem:[#allocation6 + $0x270] sm:$0xff]
    %v3955 = vld [vmem:[#allocation6 + $0x278] sm:$0xff]
    %v3956 = vld [vmem:[#allocation6 + $0x280] sm:$0xff]
    %v3957 = vld [vmem:[#allocation6 + $0x288] sm:$0xff]
    %v3958 = vld [vmem:[#allocation6 + $0x290] sm:$0xff]
    %v3959 = vld [vmem:[#allocation6 + $0x298] sm:$0xff]
    %v3960 = vld [vmem:[#allocation6 + $0x2a0] sm:$0xff]
    %v3961 = vld [vmem:[#allocation6 + $0x2a8] sm:$0xff]
    %v3962 = vld [vmem:[#allocation6 + $0x2b0] sm:$0xff]
    %v3963 = vld [vmem:[#allocation6 + $0x2b8] sm:$0xff]
    %v3964 = vld [vmem:[#allocation6 + $0x2c0] sm:$0xff]
    %v3965 = vld [vmem:[#allocation6 + $0x2c8] sm:$0xff]
    %v3966 = vld [vmem:[#allocation6 + $0x2d0] sm:$0xff]
    %v3967 = vld [vmem:[#allocation6 + $0x2d8] sm:$0xff]
    %v3968 = vld [vmem:[#allocation6 + $0x2e0] sm:$0xff]
    %v3969 = vld [vmem:[#allocation6 + $0x2e8] sm:$0xff]
    %v3970 = vld [vmem:[#allocation6 + $0x2f0] sm:$0xff]
    %v3971 = vld [vmem:[#allocation6 + $0x2f8] sm:$0xff]
    %v3972 = vld [vmem:[#allocation6 + $0x300] sm:$0xff]
    %v3973 = vld [vmem:[#allocation6 + $0x308] sm:$0xff]
    %v3974 = vld [vmem:[#allocation6 + $0x310] sm:$0xff]
    %v3975 = vld [vmem:[#allocation6 + $0x318] sm:$0xff]
    %v3976 = vld [vmem:[#allocation6 + $0x320] sm:$0xff]
    %v3977 = vld [vmem:[#allocation6 + $0x328] sm:$0xff]
    %v3978 = vld [vmem:[#allocation6 + $0x330] sm:$0xff]
    %v3979 = vld [vmem:[#allocation6 + $0x338] sm:$0xff]
    %v3980 = vld [vmem:[#allocation6 + $0x340] sm:$0xff]
    %v3981 = vld [vmem:[#allocation6 + $0x348] sm:$0xff]
    %v3982 = vld [vmem:[#allocation6 + $0x350] sm:$0xff]
    %v3983 = vld [vmem:[#allocation6 + $0x358] sm:$0xff]
    %v3984 = vld [vmem:[#allocation6 + $0x360] sm:$0xff]
    %v3985 = vld [vmem:[#allocation6 + $0x368] sm:$0xff]
    %v3986 = vld [vmem:[#allocation6 + $0x370] sm:$0xff]
    %v3987 = vld [vmem:[#allocation6 + $0x378] sm:$0xff]
    %v3988 = vld [vmem:[#allocation6 + $0x380] sm:$0xff]
    %v3989 = vld [vmem:[#allocation6 + $0x388] sm:$0xff]
    %v3990 = vld [vmem:[#allocation6 + $0x390] sm:$0xff]
    %v3991 = vld [vmem:[#allocation6 + $0x398] sm:$0xff]
    %v3992 = vld [vmem:[#allocation6 + $0x3a0] sm:$0xff]
    %v3993 = vld [vmem:[#allocation6 + $0x3a8] sm:$0xff]
    %v3994 = vld [vmem:[#allocation6 + $0x3b0] sm:$0xff]
    %v3995 = vld [vmem:[#allocation6 + $0x3b8] sm:$0xff]
    %v3996 = vld [vmem:[#allocation6 + $0x3c0] sm:$0xff]
    %v3997 = vld [vmem:[#allocation6 + $0x3c8] sm:$0xff]
    %v3998 = vld [vmem:[#allocation6 + $0x3d0] sm:$0xff]
    %v3999 = vld [vmem:[#allocation6 + $0x3d8] sm:$0xff]
    %v4000 = vld [vmem:[#allocation6 + $0x3e0] sm:$0xff]
    %v4001 = vld [vmem:[#allocation6 + $0x3e8] sm:$0xff]
    %v4002 = vld [vmem:[#allocation6 + $0x3f0] sm:$0xff]
    %v4003 = vld [vmem:[#allocation6 + $0x3f8] sm:$0xff]
    %v4004 = vld [vmem:[#allocation6 + $0x400] sm:$0xff]
    %v4005 = vld [vmem:[#allocation6 + $0x408] sm:$0xff]
    %v4006 = vld [vmem:[#allocation6 + $0x410] sm:$0xff]
    %v4007 = vld [vmem:[#allocation6 + $0x418] sm:$0xff]
    %v4008 = vld [vmem:[#allocation6 + $0x420] sm:$0xff]
    %v4009 = vld [vmem:[#allocation6 + $0x428] sm:$0xff]
    %v4010 = vld [vmem:[#allocation6 + $0x430] sm:$0xff]
    %v4011 = vld [vmem:[#allocation6 + $0x438] sm:$0xff]
    %v4012 = vld [vmem:[#allocation6 + $0x440] sm:$0xff]
    %v4013 = vld [vmem:[#allocation6 + $0x448] sm:$0xff]
    %v4014 = vld [vmem:[#allocation6 + $0x450] sm:$0xff]
    %v4015 = vld [vmem:[#allocation6 + $0x458] sm:$0xff]
    %v4016 = vld [vmem:[#allocation6 + $0x460] sm:$0xff]
    %v4017 = vld [vmem:[#allocation6 + $0x468] sm:$0xff]
    %v4018 = vld [vmem:[#allocation6 + $0x470] sm:$0xff]
    %v4019 = vld [vmem:[#allocation6 + $0x478] sm:$0xff]
    %v4020 = vld [vmem:[#allocation6 + $0x480] sm:$0xff]
    %v4021 = vld [vmem:[#allocation6 + $0x488] sm:$0xff]
    %v4022 = vld [vmem:[#allocation6 + $0x490] sm:$0xff]
    %v4023 = vld [vmem:[#allocation6 + $0x498] sm:$0xff]
    %v4024 = vld [vmem:[#allocation6 + $0x4a0] sm:$0xff]
    %v4025 = vld [vmem:[#allocation6 + $0x4a8] sm:$0xff]
    %v4026 = vld [vmem:[#allocation6 + $0x4b0] sm:$0xff]
    %v4027 = vld [vmem:[#allocation6 + $0x4b8] sm:$0xff]
    %v4028 = vld [vmem:[#allocation6 + $0x4c0] sm:$0xff]
    %v4029 = vld [vmem:[#allocation6 + $0x4c8] sm:$0xff]
    %v4030 = vld [vmem:[#allocation6 + $0x4d0] sm:$0xff]
    %v4031 = vld [vmem:[#allocation6 + $0x4d8] sm:$0xff]
    %v4032 = vld [vmem:[#allocation6 + $0x4e0] sm:$0xff]
    %v4033 = vld [vmem:[#allocation6 + $0x4e8] sm:$0xff]
    %v4034 = vld [vmem:[#allocation6 + $0x4f0] sm:$0xff]
    %v4035 = vld [vmem:[#allocation6 + $0x4f8] sm:$0xff]
    %v4036 = vld [vmem:[#allocation6 + $0x500] sm:$0xff]
    %v4037 = vld [vmem:[#allocation6 + $0x508] sm:$0xff]
    %v4038 = vld [vmem:[#allocation6 + $0x510] sm:$0xff]
    %v4039 = vld [vmem:[#allocation6 + $0x518] sm:$0xff]
    %v4040 = vld [vmem:[#allocation6 + $0x520] sm:$0xff]
    %v4041 = vld [vmem:[#allocation6 + $0x528] sm:$0xff]
    %v4042 = vld [vmem:[#allocation6 + $0x530] sm:$0xff]
    %v4043 = vld [vmem:[#allocation6 + $0x538] sm:$0xff]
    %v4044 = vld [vmem:[#allocation6 + $0x540] sm:$0xff]
    %v4045 = vld [vmem:[#allocation6 + $0x548] sm:$0xff]
    %v4046 = vld [vmem:[#allocation6 + $0x550] sm:$0xff]
    %v4047 = vld [vmem:[#allocation6 + $0x558] sm:$0xff]
    %v4048 = vld [vmem:[#allocation6 + $0x560] sm:$0xff]
    %v4049 = vld [vmem:[#allocation6 + $0x568] sm:$0xff]
    %v4050 = vld [vmem:[#allocation6 + $0x570] sm:$0xff]
    %v4051 = vld [vmem:[#allocation6 + $0x578] sm:$0xff]
    %v4052 = vld [vmem:[#allocation6 + $0x580] sm:$0xff]
    %v4053 = vld [vmem:[#allocation6 + $0x588] sm:$0xff]
    %v4054 = vld [vmem:[#allocation6 + $0x590] sm:$0xff]
    %v4055 = vld [vmem:[#allocation6 + $0x598] sm:$0xff]
    %v4056 = vld [vmem:[#allocation6 + $0x5a0] sm:$0xff]
    %v4057 = vld [vmem:[#allocation6 + $0x5a8] sm:$0xff]
    %v4058 = vld [vmem:[#allocation6 + $0x5b0] sm:$0xff]
    %v4059 = vld [vmem:[#allocation6 + $0x5b8] sm:$0xff]
    %v4060 = vld [vmem:[#allocation6 + $0x5c0] sm:$0xff]
    %v4061 = vld [vmem:[#allocation6 + $0x5c8] sm:$0xff]
    %v4062 = vld [vmem:[#allocation6 + $0x5d0] sm:$0xff]
    %v4063 = vld [vmem:[#allocation6 + $0x5d8] sm:$0xff]
    %v4064 = vld [vmem:[#allocation6 + $0x5e0] sm:$0xff]
    %v4065 = vld [vmem:[#allocation6 + $0x5e8] sm:$0xff]
    %v4066 = vld [vmem:[#allocation6 + $0x5f0] sm:$0xff]
    %v4067 = vld [vmem:[#allocation6 + $0x5f8] sm:$0xff]
    %v4068 = vld [vmem:[#allocation6 + $0x600] sm:$0xff]
    %v4069 = vld [vmem:[#allocation6 + $0x608] sm:$0xff]
    %v4070 = vld [vmem:[#allocation6 + $0x610] sm:$0xff]
    %v4071 = vld [vmem:[#allocation6 + $0x618] sm:$0xff]
    %v4072 = vld [vmem:[#allocation6 + $0x620] sm:$0xff]
    %v4073 = vld [vmem:[#allocation6 + $0x628] sm:$0xff]
    %v4074 = vld [vmem:[#allocation6 + $0x630] sm:$0xff]
    %v4075 = vld [vmem:[#allocation6 + $0x638] sm:$0xff]
    %v4076 = vld [vmem:[#allocation6 + $0x640] sm:$0xff]
    %v4077 = vld [vmem:[#allocation6 + $0x648] sm:$0xff]
    %v4078 = vld [vmem:[#allocation6 + $0x650] sm:$0xff]
    %v4079 = vld [vmem:[#allocation6 + $0x658] sm:$0xff]
    %v4080 = vld [vmem:[#allocation6 + $0x660] sm:$0xff]
    %v4081 = vld [vmem:[#allocation6 + $0x668] sm:$0xff]
    %v4082 = vld [vmem:[#allocation6 + $0x670] sm:$0xff]
    %v4083 = vld [vmem:[#allocation6 + $0x678] sm:$0xff]
    %v4084 = vld [vmem:[#allocation6 + $0x680] sm:$0xff]
    %v4085 = vld [vmem:[#allocation6 + $0x688] sm:$0xff]
    %v4086 = vld [vmem:[#allocation6 + $0x690] sm:$0xff]
    %v4087 = vld [vmem:[#allocation6 + $0x698] sm:$0xff]
    %v4088 = vld [vmem:[#allocation6 + $0x6a0] sm:$0xff]
    %v4089 = vld [vmem:[#allocation6 + $0x6a8] sm:$0xff]
    %v4090 = vld [vmem:[#allocation6 + $0x6b0] sm:$0xff]
    %v4091 = vld [vmem:[#allocation6 + $0x6b8] sm:$0xff]
    %v4092 = vld [vmem:[#allocation6 + $0x6c0] sm:$0xff]
    %v4093 = vld [vmem:[#allocation6 + $0x6c8] sm:$0xff]
    %v4094 = vld [vmem:[#allocation6 + $0x6d0] sm:$0xff]
    %v4095 = vld [vmem:[#allocation6 + $0x6d8] sm:$0xff]
    %v4096 = vld [vmem:[#allocation6 + $0x6e0] sm:$0xff]
    %v4097 = vld [vmem:[#allocation6 + $0x6e8] sm:$0xff]
    %v4098 = vld [vmem:[#allocation6 + $0x6f0] sm:$0xff]
    %v4099 = vld [vmem:[#allocation6 + $0x6f8] sm:$0xff]
    %v4100 = vld [vmem:[#allocation6 + $0x700] sm:$0xff]
    %v4101 = vld [vmem:[#allocation6 + $0x708] sm:$0xff]
    %v4102 = vld [vmem:[#allocation6 + $0x710] sm:$0xff]
    %v4103 = vld [vmem:[#allocation6 + $0x718] sm:$0xff]
    %v4104 = vld [vmem:[#allocation6 + $0x720] sm:$0xff]
    %v4105 = vld [vmem:[#allocation6 + $0x728] sm:$0xff]
    %v4106 = vld [vmem:[#allocation6 + $0x730] sm:$0xff]
    %v4107 = vld [vmem:[#allocation6 + $0x738] sm:$0xff]
    %v4108 = vld [vmem:[#allocation6 + $0x740] sm:$0xff]
    %v4109 = vld [vmem:[#allocation6 + $0x748] sm:$0xff]
    %v4110 = vld [vmem:[#allocation6 + $0x750] sm:$0xff]
    %v4111 = vld [vmem:[#allocation6 + $0x758] sm:$0xff]
    %v4112 = vld [vmem:[#allocation6 + $0x760] sm:$0xff]
    %v4113 = vld [vmem:[#allocation6 + $0x768] sm:$0xff]
    %v4114 = vld [vmem:[#allocation6 + $0x770] sm:$0xff]
    %v4115 = vld [vmem:[#allocation6 + $0x778] sm:$0xff]
    %v4116 = vld [vmem:[#allocation6 + $0x780] sm:$0xff]
    %v4117 = vld [vmem:[#allocation6 + $0x788] sm:$0xff]
    %v4118 = vld [vmem:[#allocation6 + $0x790] sm:$0xff]
    %v4119 = vld [vmem:[#allocation6 + $0x798] sm:$0xff]
    %v4120 = vld [vmem:[#allocation6 + $0x7a0] sm:$0xff]
    %v4121 = vld [vmem:[#allocation6 + $0x7a8] sm:$0xff]
    %v4122 = vld [vmem:[#allocation6 + $0x7b0] sm:$0xff]
    %v4123 = vld [vmem:[#allocation6 + $0x7b8] sm:$0xff]
    %v4124 = vld [vmem:[#allocation6 + $0x7c0] sm:$0xff]
    %v4125 = vld [vmem:[#allocation6 + $0x7c8] sm:$0xff]
    %v4126 = vld [vmem:[#allocation6 + $0x7d0] sm:$0xff]
    %v4127 = vld [vmem:[#allocation6 + $0x7d8] sm:$0xff]
    %v4128 = vld [vmem:[#allocation6 + $0x7e0] sm:$0xff]
    %v4129 = vld [vmem:[#allocation6 + $0x7e8] sm:$0xff]
    %v4130 = vld [vmem:[#allocation6 + $0x7f0] sm:$0xff]
    %v4131 = vld [vmem:[#allocation6 + $0x7f8] sm:$0xff]
    %v4132 = vld [vmem:[#allocation7] sm:$0xf]
    %v4134 = vlaneseq
    %v4135 = vshrl.u32 %v4134, 7
    %v4136 = vsub.s32 0, %v4135
    %v4137 = vrot.slane %v4132, %v4136
    %v4138 = vlaneseq
    %v4139 = vshrl.u32 %v4138, 7
    %v4140 = vsub.s32 1, %v4139
    %v4141 = vrot.slane %v4132, %v4140
    %v4142 = vlaneseq
    %v4143 = vshrl.u32 %v4142, 7
    %v4144 = vsub.s32 2, %v4143
    %v4145 = vrot.slane %v4132, %v4144
    %v4146 = vlaneseq
    %v4147 = vshrl.u32 %v4146, 7
    %v4148 = vsub.s32 3, %v4147
    %v4149 = vrot.slane %v4132, %v4148
    %v4410 = vunpack.c.l.b16 %v3876
    %v4411 = vunpack.c.h.b16 %v3876
    %v4412 = vunpack.c.l.b16 %v3877
    %v4413 = vunpack.c.h.b16 %v3877
    %v4414 = vunpack.c.l.b16 %v3878
    %v4415 = vunpack.c.h.b16 %v3878
    %v4416 = vunpack.c.l.b16 %v3879
    %v4417 = vunpack.c.h.b16 %v3879
    %v4418 = vunpack.c.l.b16 %v3880
    %v4419 = vunpack.c.h.b16 %v3880
    %v4420 = vunpack.c.l.b16 %v3881
    %v4421 = vunpack.c.h.b16 %v3881
    %v4422 = vunpack.c.l.b16 %v3882
    %v4423 = vunpack.c.h.b16 %v3882
    %v4424 = vunpack.c.l.b16 %v3883
    %v4425 = vunpack.c.h.b16 %v3883
    %v4426 = vunpack.c.l.b16 %v3884
    %v4427 = vunpack.c.h.b16 %v3884
    %v4428 = vunpack.c.l.b16 %v3885
    %v4429 = vunpack.c.h.b16 %v3885
    %v4430 = vunpack.c.l.b16 %v3886
    %v4431 = vunpack.c.h.b16 %v3886
    %v4432 = vunpack.c.l.b16 %v3887
    %v4433 = vunpack.c.h.b16 %v3887
    %v4434 = vunpack.c.l.b16 %v3888
    %v4435 = vunpack.c.h.b16 %v3888
    %v4436 = vunpack.c.l.b16 %v3889
    %v4437 = vunpack.c.h.b16 %v3889
    %v4438 = vunpack.c.l.b16 %v3890
    %v4439 = vunpack.c.h.b16 %v3890
    %v4440 = vunpack.c.l.b16 %v3891
    %v4441 = vunpack.c.h.b16 %v3891
    %v4442 = vunpack.c.l.b16 %v3892
    %v4443 = vunpack.c.h.b16 %v3892
    %v4444 = vunpack.c.l.b16 %v3893
    %v4445 = vunpack.c.h.b16 %v3893
    %v4446 = vunpack.c.l.b16 %v3894
    %v4447 = vunpack.c.h.b16 %v3894
    %v4448 = vunpack.c.l.b16 %v3895
    %v4449 = vunpack.c.h.b16 %v3895
    %v4450 = vunpack.c.l.b16 %v3896
    %v4451 = vunpack.c.h.b16 %v3896
    %v4452 = vunpack.c.l.b16 %v3897
    %v4453 = vunpack.c.h.b16 %v3897
    %v4454 = vunpack.c.l.b16 %v3898
    %v4455 = vunpack.c.h.b16 %v3898
    %v4456 = vunpack.c.l.b16 %v3899
    %v4457 = vunpack.c.h.b16 %v3899
    %v4458 = vunpack.c.l.b16 %v3900
    %v4459 = vunpack.c.h.b16 %v3900
    %v4460 = vunpack.c.l.b16 %v3901
    %v4461 = vunpack.c.h.b16 %v3901
    %v4462 = vunpack.c.l.b16 %v3902
    %v4463 = vunpack.c.h.b16 %v3902
    %v4464 = vunpack.c.l.b16 %v3903
    %v4465 = vunpack.c.h.b16 %v3903
    %v4466 = vunpack.c.l.b16 %v3904
    %v4467 = vunpack.c.h.b16 %v3904
    %v4468 = vunpack.c.l.b16 %v3905
    %v4469 = vunpack.c.h.b16 %v3905
    %v4470 = vunpack.c.l.b16 %v3906
    %v4471 = vunpack.c.h.b16 %v3906
    %v4472 = vunpack.c.l.b16 %v3907
    %v4473 = vunpack.c.h.b16 %v3907
    %v4474 = vunpack.c.l.b16 %v3908
    %v4475 = vunpack.c.h.b16 %v3908
    %v4476 = vunpack.c.l.b16 %v3909
    %v4477 = vunpack.c.h.b16 %v3909
    %v4478 = vunpack.c.l.b16 %v3910
    %v4479 = vunpack.c.h.b16 %v3910
    %v4480 = vunpack.c.l.b16 %v3911
    %v4481 = vunpack.c.h.b16 %v3911
    %v4482 = vunpack.c.l.b16 %v3912
    %v4483 = vunpack.c.h.b16 %v3912
    %v4484 = vunpack.c.l.b16 %v3913
    %v4485 = vunpack.c.h.b16 %v3913
    %v4486 = vunpack.c.l.b16 %v3914
    %v4487 = vunpack.c.h.b16 %v3914
    %v4488 = vunpack.c.l.b16 %v3915
    %v4489 = vunpack.c.h.b16 %v3915
    %v4490 = vunpack.c.l.b16 %v3916
    %v4491 = vunpack.c.h.b16 %v3916
    %v4492 = vunpack.c.l.b16 %v3917
    %v4493 = vunpack.c.h.b16 %v3917
    %v4494 = vunpack.c.l.b16 %v3918
    %v4495 = vunpack.c.h.b16 %v3918
    %v4496 = vunpack.c.l.b16 %v3919
    %v4497 = vunpack.c.h.b16 %v3919
    %v4498 = vunpack.c.l.b16 %v3920
    %v4499 = vunpack.c.h.b16 %v3920
    %v4500 = vunpack.c.l.b16 %v3921
    %v4501 = vunpack.c.h.b16 %v3921
    %v4502 = vunpack.c.l.b16 %v3922
    %v4503 = vunpack.c.h.b16 %v3922
    %v4504 = vunpack.c.l.b16 %v3923
    %v4505 = vunpack.c.h.b16 %v3923
    %v4506 = vunpack.c.l.b16 %v3924
    %v4507 = vunpack.c.h.b16 %v3924
    %v4508 = vunpack.c.l.b16 %v3925
    %v4509 = vunpack.c.h.b16 %v3925
    %v4510 = vunpack.c.l.b16 %v3926
    %v4511 = vunpack.c.h.b16 %v3926
    %v4512 = vunpack.c.l.b16 %v3927
    %v4513 = vunpack.c.h.b16 %v3927
    %v4514 = vunpack.c.l.b16 %v3928
    %v4515 = vunpack.c.h.b16 %v3928
    %v4516 = vunpack.c.l.b16 %v3929
    %v4517 = vunpack.c.h.b16 %v3929
    %v4518 = vunpack.c.l.b16 %v3930
    %v4519 = vunpack.c.h.b16 %v3930
    %v4520 = vunpack.c.l.b16 %v3931
    %v4521 = vunpack.c.h.b16 %v3931
    %v4522 = vunpack.c.l.b16 %v3932
    %v4523 = vunpack.c.h.b16 %v3932
    %v4524 = vunpack.c.l.b16 %v3933
    %v4525 = vunpack.c.h.b16 %v3933
    %v4526 = vunpack.c.l.b16 %v3934
    %v4527 = vunpack.c.h.b16 %v3934
    %v4528 = vunpack.c.l.b16 %v3935
    %v4529 = vunpack.c.h.b16 %v3935
    %v4530 = vunpack.c.l.b16 %v3936
    %v4531 = vunpack.c.h.b16 %v3936
    %v4532 = vunpack.c.l.b16 %v3937
    %v4533 = vunpack.c.h.b16 %v3937
    %v4534 = vunpack.c.l.b16 %v3938
    %v4535 = vunpack.c.h.b16 %v3938
    %v4536 = vunpack.c.l.b16 %v3939
    %v4537 = vunpack.c.h.b16 %v3939
    %v4538 = vunpack.c.l.b16 %v3940
    %v4539 = vunpack.c.h.b16 %v3940
    %v4540 = vunpack.c.l.b16 %v3941
    %v4541 = vunpack.c.h.b16 %v3941
    %v4542 = vunpack.c.l.b16 %v3942
    %v4543 = vunpack.c.h.b16 %v3942
    %v4544 = vunpack.c.l.b16 %v3943
    %v4545 = vunpack.c.h.b16 %v3943
    %v4546 = vunpack.c.l.b16 %v3944
    %v4547 = vunpack.c.h.b16 %v3944
    %v4548 = vunpack.c.l.b16 %v3945
    %v4549 = vunpack.c.h.b16 %v3945
    %v4550 = vunpack.c.l.b16 %v3946
    %v4551 = vunpack.c.h.b16 %v3946
    %v4552 = vunpack.c.l.b16 %v3947
    %v4553 = vunpack.c.h.b16 %v3947
    %v4554 = vunpack.c.l.b16 %v3948
    %v4555 = vunpack.c.h.b16 %v3948
    %v4556 = vunpack.c.l.b16 %v3949
    %v4557 = vunpack.c.h.b16 %v3949
    %v4558 = vunpack.c.l.b16 %v3950
    %v4559 = vunpack.c.h.b16 %v3950
    %v4560 = vunpack.c.l.b16 %v3951
    %v4561 = vunpack.c.h.b16 %v3951
    %v4562 = vunpack.c.l.b16 %v3952
    %v4563 = vunpack.c.h.b16 %v3952
    %v4564 = vunpack.c.l.b16 %v3953
    %v4565 = vunpack.c.h.b16 %v3953
    %v4566 = vunpack.c.l.b16 %v3954
    %v4567 = vunpack.c.h.b16 %v3954
    %v4568 = vunpack.c.l.b16 %v3955
    %v4569 = vunpack.c.h.b16 %v3955
    %v4570 = vunpack.c.l.b16 %v3956
    %v4571 = vunpack.c.h.b16 %v3956
    %v4572 = vunpack.c.l.b16 %v3957
    %v4573 = vunpack.c.h.b16 %v3957
    %v4574 = vunpack.c.l.b16 %v3958
    %v4575 = vunpack.c.h.b16 %v3958
    %v4576 = vunpack.c.l.b16 %v3959
    %v4577 = vunpack.c.h.b16 %v3959
    %v4578 = vunpack.c.l.b16 %v3960
    %v4579 = vunpack.c.h.b16 %v3960
    %v4580 = vunpack.c.l.b16 %v3961
    %v4581 = vunpack.c.h.b16 %v3961
    %v4582 = vunpack.c.l.b16 %v3962
    %v4583 = vunpack.c.h.b16 %v3962
    %v4584 = vunpack.c.l.b16 %v3963
    %v4585 = vunpack.c.h.b16 %v3963
    %v4586 = vunpack.c.l.b16 %v3964
    %v4587 = vunpack.c.h.b16 %v3964
    %v4588 = vunpack.c.l.b16 %v3965
    %v4589 = vunpack.c.h.b16 %v3965
    %v4590 = vunpack.c.l.b16 %v3966
    %v4591 = vunpack.c.h.b16 %v3966
    %v4592 = vunpack.c.l.b16 %v3967
    %v4593 = vunpack.c.h.b16 %v3967
    %v4594 = vunpack.c.l.b16 %v3968
    %v4595 = vunpack.c.h.b16 %v3968
    %v4596 = vunpack.c.l.b16 %v3969
    %v4597 = vunpack.c.h.b16 %v3969
    %v4598 = vunpack.c.l.b16 %v3970
    %v4599 = vunpack.c.h.b16 %v3970
    %v4600 = vunpack.c.l.b16 %v3971
    %v4601 = vunpack.c.h.b16 %v3971
    %v4602 = vunpack.c.l.b16 %v3972
    %v4603 = vunpack.c.h.b16 %v3972
    %v4604 = vunpack.c.l.b16 %v3973
    %v4605 = vunpack.c.h.b16 %v3973
    %v4606 = vunpack.c.l.b16 %v3974
    %v4607 = vunpack.c.h.b16 %v3974
    %v4608 = vunpack.c.l.b16 %v3975
    %v4609 = vunpack.c.h.b16 %v3975
    %v4610 = vunpack.c.l.b16 %v3976
    %v4611 = vunpack.c.h.b16 %v3976
    %v4612 = vunpack.c.l.b16 %v3977
    %v4613 = vunpack.c.h.b16 %v3977
    %v4614 = vunpack.c.l.b16 %v3978
    %v4615 = vunpack.c.h.b16 %v3978
    %v4616 = vunpack.c.l.b16 %v3979
    %v4617 = vunpack.c.h.b16 %v3979
    %v4618 = vunpack.c.l.b16 %v3980
    %v4619 = vunpack.c.h.b16 %v3980
    %v4620 = vunpack.c.l.b16 %v3981
    %v4621 = vunpack.c.h.b16 %v3981
    %v4622 = vunpack.c.l.b16 %v3982
    %v4623 = vunpack.c.h.b16 %v3982
    %v4624 = vunpack.c.l.b16 %v3983
    %v4625 = vunpack.c.h.b16 %v3983
    %v4626 = vunpack.c.l.b16 %v3984
    %v4627 = vunpack.c.h.b16 %v3984
    %v4628 = vunpack.c.l.b16 %v3985
    %v4629 = vunpack.c.h.b16 %v3985
    %v4630 = vunpack.c.l.b16 %v3986
    %v4631 = vunpack.c.h.b16 %v3986
    %v4632 = vunpack.c.l.b16 %v3987
    %v4633 = vunpack.c.h.b16 %v3987
    %v4634 = vunpack.c.l.b16 %v3988
    %v4635 = vunpack.c.h.b16 %v3988
    %v4636 = vunpack.c.l.b16 %v3989
    %v4637 = vunpack.c.h.b16 %v3989
    %v4638 = vunpack.c.l.b16 %v3990
    %v4639 = vunpack.c.h.b16 %v3990
    %v4640 = vunpack.c.l.b16 %v3991
    %v4641 = vunpack.c.h.b16 %v3991
    %v4642 = vunpack.c.l.b16 %v3992
    %v4643 = vunpack.c.h.b16 %v3992
    %v4644 = vunpack.c.l.b16 %v3993
    %v4645 = vunpack.c.h.b16 %v3993
    %v4646 = vunpack.c.l.b16 %v3994
    %v4647 = vunpack.c.h.b16 %v3994
    %v4648 = vunpack.c.l.b16 %v3995
    %v4649 = vunpack.c.h.b16 %v3995
    %v4650 = vunpack.c.l.b16 %v3996
    %v4651 = vunpack.c.h.b16 %v3996
    %v4652 = vunpack.c.l.b16 %v3997
    %v4653 = vunpack.c.h.b16 %v3997
    %v4654 = vunpack.c.l.b16 %v3998
    %v4655 = vunpack.c.h.b16 %v3998
    %v4656 = vunpack.c.l.b16 %v3999
    %v4657 = vunpack.c.h.b16 %v3999
    %v4658 = vunpack.c.l.b16 %v4000
    %v4659 = vunpack.c.h.b16 %v4000
    %v4660 = vunpack.c.l.b16 %v4001
    %v4661 = vunpack.c.h.b16 %v4001
    %v4662 = vunpack.c.l.b16 %v4002
    %v4663 = vunpack.c.h.b16 %v4002
    %v4664 = vunpack.c.l.b16 %v4003
    %v4665 = vunpack.c.h.b16 %v4003
    %v4666 = vunpack.c.l.b16 %v4004
    %v4667 = vunpack.c.h.b16 %v4004
    %v4668 = vunpack.c.l.b16 %v4005
    %v4669 = vunpack.c.h.b16 %v4005
    %v4670 = vunpack.c.l.b16 %v4006
    %v4671 = vunpack.c.h.b16 %v4006
    %v4672 = vunpack.c.l.b16 %v4007
    %v4673 = vunpack.c.h.b16 %v4007
    %v4674 = vunpack.c.l.b16 %v4008
    %v4675 = vunpack.c.h.b16 %v4008
    %v4676 = vunpack.c.l.b16 %v4009
    %v4677 = vunpack.c.h.b16 %v4009
    %v4678 = vunpack.c.l.b16 %v4010
    %v4679 = vunpack.c.h.b16 %v4010
    %v4680 = vunpack.c.l.b16 %v4011
    %v4681 = vunpack.c.h.b16 %v4011
    %v4682 = vunpack.c.l.b16 %v4012
    %v4683 = vunpack.c.h.b16 %v4012
    %v4684 = vunpack.c.l.b16 %v4013
    %v4685 = vunpack.c.h.b16 %v4013
    %v4686 = vunpack.c.l.b16 %v4014
    %v4687 = vunpack.c.h.b16 %v4014
    %v4688 = vunpack.c.l.b16 %v4015
    %v4689 = vunpack.c.h.b16 %v4015
    %v4690 = vunpack.c.l.b16 %v4016
    %v4691 = vunpack.c.h.b16 %v4016
    %v4692 = vunpack.c.l.b16 %v4017
    %v4693 = vunpack.c.h.b16 %v4017
    %v4694 = vunpack.c.l.b16 %v4018
    %v4695 = vunpack.c.h.b16 %v4018
    %v4696 = vunpack.c.l.b16 %v4019
    %v4697 = vunpack.c.h.b16 %v4019
    %v4698 = vunpack.c.l.b16 %v4020
    %v4699 = vunpack.c.h.b16 %v4020
    %v4700 = vunpack.c.l.b16 %v4021
    %v4701 = vunpack.c.h.b16 %v4021
    %v4702 = vunpack.c.l.b16 %v4022
    %v4703 = vunpack.c.h.b16 %v4022
    %v4704 = vunpack.c.l.b16 %v4023
    %v4705 = vunpack.c.h.b16 %v4023
    %v4706 = vunpack.c.l.b16 %v4024
    %v4707 = vunpack.c.h.b16 %v4024
    %v4708 = vunpack.c.l.b16 %v4025
    %v4709 = vunpack.c.h.b16 %v4025
    %v4710 = vunpack.c.l.b16 %v4026
    %v4711 = vunpack.c.h.b16 %v4026
    %v4712 = vunpack.c.l.b16 %v4027
    %v4713 = vunpack.c.h.b16 %v4027
    %v4714 = vunpack.c.l.b16 %v4028
    %v4715 = vunpack.c.h.b16 %v4028
    %v4716 = vunpack.c.l.b16 %v4029
    %v4717 = vunpack.c.h.b16 %v4029
    %v4718 = vunpack.c.l.b16 %v4030
    %v4719 = vunpack.c.h.b16 %v4030
    %v4720 = vunpack.c.l.b16 %v4031
    %v4721 = vunpack.c.h.b16 %v4031
    %v4722 = vunpack.c.l.b16 %v4032
    %v4723 = vunpack.c.h.b16 %v4032
    %v4724 = vunpack.c.l.b16 %v4033
    %v4725 = vunpack.c.h.b16 %v4033
    %v4726 = vunpack.c.l.b16 %v4034
    %v4727 = vunpack.c.h.b16 %v4034
    %v4728 = vunpack.c.l.b16 %v4035
    %v4729 = vunpack.c.h.b16 %v4035
    %v4730 = vunpack.c.l.b16 %v4036
    %v4731 = vunpack.c.h.b16 %v4036
    %v4732 = vunpack.c.l.b16 %v4037
    %v4733 = vunpack.c.h.b16 %v4037
    %v4734 = vunpack.c.l.b16 %v4038
    %v4735 = vunpack.c.h.b16 %v4038
    %v4736 = vunpack.c.l.b16 %v4039
    %v4737 = vunpack.c.h.b16 %v4039
    %v4738 = vunpack.c.l.b16 %v4040
    %v4739 = vunpack.c.h.b16 %v4040
    %v4740 = vunpack.c.l.b16 %v4041
    %v4741 = vunpack.c.h.b16 %v4041
    %v4742 = vunpack.c.l.b16 %v4042
    %v4743 = vunpack.c.h.b16 %v4042
    %v4744 = vunpack.c.l.b16 %v4043
    %v4745 = vunpack.c.h.b16 %v4043
    %v4746 = vunpack.c.l.b16 %v4044
    %v4747 = vunpack.c.h.b16 %v4044
    %v4748 = vunpack.c.l.b16 %v4045
    %v4749 = vunpack.c.h.b16 %v4045
    %v4750 = vunpack.c.l.b16 %v4046
    %v4751 = vunpack.c.h.b16 %v4046
    %v4752 = vunpack.c.l.b16 %v4047
    %v4753 = vunpack.c.h.b16 %v4047
    %v4754 = vunpack.c.l.b16 %v4048
    %v4755 = vunpack.c.h.b16 %v4048
    %v4756 = vunpack.c.l.b16 %v4049
    %v4757 = vunpack.c.h.b16 %v4049
    %v4758 = vunpack.c.l.b16 %v4050
    %v4759 = vunpack.c.h.b16 %v4050
    %v4760 = vunpack.c.l.b16 %v4051
    %v4761 = vunpack.c.h.b16 %v4051
    %v4762 = vunpack.c.l.b16 %v4052
    %v4763 = vunpack.c.h.b16 %v4052
    %v4764 = vunpack.c.l.b16 %v4053
    %v4765 = vunpack.c.h.b16 %v4053
    %v4766 = vunpack.c.l.b16 %v4054
    %v4767 = vunpack.c.h.b16 %v4054
    %v4768 = vunpack.c.l.b16 %v4055
    %v4769 = vunpack.c.h.b16 %v4055
    %v4770 = vunpack.c.l.b16 %v4056
    %v4771 = vunpack.c.h.b16 %v4056
    %v4772 = vunpack.c.l.b16 %v4057
    %v4773 = vunpack.c.h.b16 %v4057
    %v4774 = vunpack.c.l.b16 %v4058
    %v4775 = vunpack.c.h.b16 %v4058
    %v4776 = vunpack.c.l.b16 %v4059
    %v4777 = vunpack.c.h.b16 %v4059
    %v4778 = vunpack.c.l.b16 %v4060
    %v4779 = vunpack.c.h.b16 %v4060
    %v4780 = vunpack.c.l.b16 %v4061
    %v4781 = vunpack.c.h.b16 %v4061
    %v4782 = vunpack.c.l.b16 %v4062
    %v4783 = vunpack.c.h.b16 %v4062
    %v4784 = vunpack.c.l.b16 %v4063
    %v4785 = vunpack.c.h.b16 %v4063
    %v4786 = vunpack.c.l.b16 %v4064
    %v4787 = vunpack.c.h.b16 %v4064
    %v4788 = vunpack.c.l.b16 %v4065
    %v4789 = vunpack.c.h.b16 %v4065
    %v4790 = vunpack.c.l.b16 %v4066
    %v4791 = vunpack.c.h.b16 %v4066
    %v4792 = vunpack.c.l.b16 %v4067
    %v4793 = vunpack.c.h.b16 %v4067
    %v4794 = vunpack.c.l.b16 %v4068
    %v4795 = vunpack.c.h.b16 %v4068
    %v4796 = vunpack.c.l.b16 %v4069
    %v4797 = vunpack.c.h.b16 %v4069
    %v4798 = vunpack.c.l.b16 %v4070
    %v4799 = vunpack.c.h.b16 %v4070
    %v4800 = vunpack.c.l.b16 %v4071
    %v4801 = vunpack.c.h.b16 %v4071
    %v4802 = vunpack.c.l.b16 %v4072
    %v4803 = vunpack.c.h.b16 %v4072
    %v4804 = vunpack.c.l.b16 %v4073
    %v4805 = vunpack.c.h.b16 %v4073
    %v4806 = vunpack.c.l.b16 %v4074
    %v4807 = vunpack.c.h.b16 %v4074
    %v4808 = vunpack.c.l.b16 %v4075
    %v4809 = vunpack.c.h.b16 %v4075
    %v4810 = vunpack.c.l.b16 %v4076
    %v4811 = vunpack.c.h.b16 %v4076
    %v4812 = vunpack.c.l.b16 %v4077
    %v4813 = vunpack.c.h.b16 %v4077
    %v4814 = vunpack.c.l.b16 %v4078
    %v4815 = vunpack.c.h.b16 %v4078
    %v4816 = vunpack.c.l.b16 %v4079
    %v4817 = vunpack.c.h.b16 %v4079
    %v4818 = vunpack.c.l.b16 %v4080
    %v4819 = vunpack.c.h.b16 %v4080
    %v4820 = vunpack.c.l.b16 %v4081
    %v4821 = vunpack.c.h.b16 %v4081
    %v4822 = vunpack.c.l.b16 %v4082
    %v4823 = vunpack.c.h.b16 %v4082
    %v4824 = vunpack.c.l.b16 %v4083
    %v4825 = vunpack.c.h.b16 %v4083
    %v4826 = vunpack.c.l.b16 %v4084
    %v4827 = vunpack.c.h.b16 %v4084
    %v4828 = vunpack.c.l.b16 %v4085
    %v4829 = vunpack.c.h.b16 %v4085
    %v4830 = vunpack.c.l.b16 %v4086
    %v4831 = vunpack.c.h.b16 %v4086
    %v4832 = vunpack.c.l.b16 %v4087
    %v4833 = vunpack.c.h.b16 %v4087
    %v4834 = vunpack.c.l.b16 %v4088
    %v4835 = vunpack.c.h.b16 %v4088
    %v4836 = vunpack.c.l.b16 %v4089
    %v4837 = vunpack.c.h.b16 %v4089
    %v4838 = vunpack.c.l.b16 %v4090
    %v4839 = vunpack.c.h.b16 %v4090
    %v4840 = vunpack.c.l.b16 %v4091
    %v4841 = vunpack.c.h.b16 %v4091
    %v4842 = vunpack.c.l.b16 %v4092
    %v4843 = vunpack.c.h.b16 %v4092
    %v4844 = vunpack.c.l.b16 %v4093
    %v4845 = vunpack.c.h.b16 %v4093
    %v4846 = vunpack.c.l.b16 %v4094
    %v4847 = vunpack.c.h.b16 %v4094
    %v4848 = vunpack.c.l.b16 %v4095
    %v4849 = vunpack.c.h.b16 %v4095
    %v4850 = vunpack.c.l.b16 %v4096
    %v4851 = vunpack.c.h.b16 %v4096
    %v4852 = vunpack.c.l.b16 %v4097
    %v4853 = vunpack.c.h.b16 %v4097
    %v4854 = vunpack.c.l.b16 %v4098
    %v4855 = vunpack.c.h.b16 %v4098
    %v4856 = vunpack.c.l.b16 %v4099
    %v4857 = vunpack.c.h.b16 %v4099
    %v4858 = vunpack.c.l.b16 %v4100
    %v4859 = vunpack.c.h.b16 %v4100
    %v4860 = vunpack.c.l.b16 %v4101
    %v4861 = vunpack.c.h.b16 %v4101
    %v4862 = vunpack.c.l.b16 %v4102
    %v4863 = vunpack.c.h.b16 %v4102
    %v4864 = vunpack.c.l.b16 %v4103
    %v4865 = vunpack.c.h.b16 %v4103
    %v4866 = vunpack.c.l.b16 %v4104
    %v4867 = vunpack.c.h.b16 %v4104
    %v4868 = vunpack.c.l.b16 %v4105
    %v4869 = vunpack.c.h.b16 %v4105
    %v4870 = vunpack.c.l.b16 %v4106
    %v4871 = vunpack.c.h.b16 %v4106
    %v4872 = vunpack.c.l.b16 %v4107
    %v4873 = vunpack.c.h.b16 %v4107
    %v4874 = vunpack.c.l.b16 %v4108
    %v4875 = vunpack.c.h.b16 %v4108
    %v4876 = vunpack.c.l.b16 %v4109
    %v4877 = vunpack.c.h.b16 %v4109
    %v4878 = vunpack.c.l.b16 %v4110
    %v4879 = vunpack.c.h.b16 %v4110
    %v4880 = vunpack.c.l.b16 %v4111
    %v4881 = vunpack.c.h.b16 %v4111
    %v4882 = vunpack.c.l.b16 %v4112
    %v4883 = vunpack.c.h.b16 %v4112
    %v4884 = vunpack.c.l.b16 %v4113
    %v4885 = vunpack.c.h.b16 %v4113
    %v4886 = vunpack.c.l.b16 %v4114
    %v4887 = vunpack.c.h.b16 %v4114
    %v4888 = vunpack.c.l.b16 %v4115
    %v4889 = vunpack.c.h.b16 %v4115
    %v4890 = vunpack.c.l.b16 %v4116
    %v4891 = vunpack.c.h.b16 %v4116
    %v4892 = vunpack.c.l.b16 %v4117
    %v4893 = vunpack.c.h.b16 %v4117
    %v4894 = vunpack.c.l.b16 %v4118
    %v4895 = vunpack.c.h.b16 %v4118
    %v4896 = vunpack.c.l.b16 %v4119
    %v4897 = vunpack.c.h.b16 %v4119
    %v4898 = vunpack.c.l.b16 %v4120
    %v4899 = vunpack.c.h.b16 %v4120
    %v4900 = vunpack.c.l.b16 %v4121
    %v4901 = vunpack.c.h.b16 %v4121
    %v4902 = vunpack.c.l.b16 %v4122
    %v4903 = vunpack.c.h.b16 %v4122
    %v4904 = vunpack.c.l.b16 %v4123
    %v4905 = vunpack.c.h.b16 %v4123
    %v4906 = vunpack.c.l.b16 %v4124
    %v4907 = vunpack.c.h.b16 %v4124
    %v4908 = vunpack.c.l.b16 %v4125
    %v4909 = vunpack.c.h.b16 %v4125
    %v4910 = vunpack.c.l.b16 %v4126
    %v4911 = vunpack.c.h.b16 %v4126
    %v4912 = vunpack.c.l.b16 %v4127
    %v4913 = vunpack.c.h.b16 %v4127
    %v4914 = vunpack.c.l.b16 %v4128
    %v4915 = vunpack.c.h.b16 %v4128
    %v4916 = vunpack.c.l.b16 %v4129
    %v4917 = vunpack.c.h.b16 %v4129
    %v4918 = vunpack.c.l.b16 %v4130
    %v4919 = vunpack.c.h.b16 %v4130
    %v4920 = vunpack.c.l.b16 %v4131
    %v4921 = vunpack.c.h.b16 %v4131
    %v4922 = vpack.c.b16 %v4414, %v4410
    %v4923 = vpack.c.b16 %v4415, %v4411
    %v4924 = vpack.c.b16 %v4416, %v4412
    %v4925 = vpack.c.b16 %v4417, %v4413
    %v4926 = vpack.c.b16 %v4422, %v4418
    %v4927 = vpack.c.b16 %v4423, %v4419
    %v4928 = vpack.c.b16 %v4424, %v4420
    %v4929 = vpack.c.b16 %v4425, %v4421
    %v4930 = vpack.c.b16 %v4430, %v4426
    %v4931 = vpack.c.b16 %v4431, %v4427
    %v4932 = vpack.c.b16 %v4432, %v4428
    %v4933 = vpack.c.b16 %v4433, %v4429
    %v4934 = vpack.c.b16 %v4438, %v4434
    %v4935 = vpack.c.b16 %v4439, %v4435
    %v4936 = vpack.c.b16 %v4440, %v4436
    %v4937 = vpack.c.b16 %v4441, %v4437
    %v4938 = vpack.c.b16 %v4446, %v4442
    %v4939 = vpack.c.b16 %v4447, %v4443
    %v4940 = vpack.c.b16 %v4448, %v4444
    %v4941 = vpack.c.b16 %v4449, %v4445
    %v4942 = vpack.c.b16 %v4454, %v4450
    %v4943 = vpack.c.b16 %v4455, %v4451
    %v4944 = vpack.c.b16 %v4456, %v4452
    %v4945 = vpack.c.b16 %v4457, %v4453
    %v4946 = vpack.c.b16 %v4462, %v4458
    %v4947 = vpack.c.b16 %v4463, %v4459
    %v4948 = vpack.c.b16 %v4464, %v4460
    %v4949 = vpack.c.b16 %v4465, %v4461
    %v4950 = vpack.c.b16 %v4470, %v4466
    %v4951 = vpack.c.b16 %v4471, %v4467
    %v4952 = vpack.c.b16 %v4472, %v4468
    %v4953 = vpack.c.b16 %v4473, %v4469
    %v4954 = vpack.c.b16 %v4478, %v4474
    %v4955 = vpack.c.b16 %v4479, %v4475
    %v4956 = vpack.c.b16 %v4480, %v4476
    %v4957 = vpack.c.b16 %v4481, %v4477
    %v4958 = vpack.c.b16 %v4486, %v4482
    %v4959 = vpack.c.b16 %v4487, %v4483
    %v4960 = vpack.c.b16 %v4488, %v4484
    %v4961 = vpack.c.b16 %v4489, %v4485
    %v4962 = vpack.c.b16 %v4494, %v4490
    %v4963 = vpack.c.b16 %v4495, %v4491
    %v4964 = vpack.c.b16 %v4496, %v4492
    %v4965 = vpack.c.b16 %v4497, %v4493
    %v4966 = vpack.c.b16 %v4502, %v4498
    %v4967 = vpack.c.b16 %v4503, %v4499
    %v4968 = vpack.c.b16 %v4504, %v4500
    %v4969 = vpack.c.b16 %v4505, %v4501
    %v4970 = vpack.c.b16 %v4510, %v4506
    %v4971 = vpack.c.b16 %v4511, %v4507
    %v4972 = vpack.c.b16 %v4512, %v4508
    %v4973 = vpack.c.b16 %v4513, %v4509
    %v4974 = vpack.c.b16 %v4518, %v4514
    %v4975 = vpack.c.b16 %v4519, %v4515
    %v4976 = vpack.c.b16 %v4520, %v4516
    %v4977 = vpack.c.b16 %v4521, %v4517
    %v4978 = vpack.c.b16 %v4526, %v4522
    %v4979 = vpack.c.b16 %v4527, %v4523
    %v4980 = vpack.c.b16 %v4528, %v4524
    %v4981 = vpack.c.b16 %v4529, %v4525
    %v4982 = vpack.c.b16 %v4534, %v4530
    %v4983 = vpack.c.b16 %v4535, %v4531
    %v4984 = vpack.c.b16 %v4536, %v4532
    %v4985 = vpack.c.b16 %v4537, %v4533
    %v4986 = vpack.c.b16 %v4542, %v4538
    %v4987 = vpack.c.b16 %v4543, %v4539
    %v4988 = vpack.c.b16 %v4544, %v4540
    %v4989 = vpack.c.b16 %v4545, %v4541
    %v4990 = vpack.c.b16 %v4550, %v4546
    %v4991 = vpack.c.b16 %v4551, %v4547
    %v4992 = vpack.c.b16 %v4552, %v4548
    %v4993 = vpack.c.b16 %v4553, %v4549
    %v4994 = vpack.c.b16 %v4558, %v4554
    %v4995 = vpack.c.b16 %v4559, %v4555
    %v4996 = vpack.c.b16 %v4560, %v4556
    %v4997 = vpack.c.b16 %v4561, %v4557
    %v4998 = vpack.c.b16 %v4566, %v4562
    %v4999 = vpack.c.b16 %v4567, %v4563
    %v5000 = vpack.c.b16 %v4568, %v4564
    %v5001 = vpack.c.b16 %v4569, %v4565
    %v5002 = vpack.c.b16 %v4574, %v4570
    %v5003 = vpack.c.b16 %v4575, %v4571
    %v5004 = vpack.c.b16 %v4576, %v4572
    %v5005 = vpack.c.b16 %v4577, %v4573
    %v5006 = vpack.c.b16 %v4582, %v4578
    %v5007 = vpack.c.b16 %v4583, %v4579
    %v5008 = vpack.c.b16 %v4584, %v4580
    %v5009 = vpack.c.b16 %v4585, %v4581
    %v5010 = vpack.c.b16 %v4590, %v4586
    %v5011 = vpack.c.b16 %v4591, %v4587
    %v5012 = vpack.c.b16 %v4592, %v4588
    %v5013 = vpack.c.b16 %v4593, %v4589
    %v5014 = vpack.c.b16 %v4598, %v4594
    %v5015 = vpack.c.b16 %v4599, %v4595
    %v5016 = vpack.c.b16 %v4600, %v4596
    %v5017 = vpack.c.b16 %v4601, %v4597
    %v5018 = vpack.c.b16 %v4606, %v4602
    %v5019 = vpack.c.b16 %v4607, %v4603
    %v5020 = vpack.c.b16 %v4608, %v4604
    %v5021 = vpack.c.b16 %v4609, %v4605
    %v5022 = vpack.c.b16 %v4614, %v4610
    %v5023 = vpack.c.b16 %v4615, %v4611
    %v5024 = vpack.c.b16 %v4616, %v4612
    %v5025 = vpack.c.b16 %v4617, %v4613
    %v5026 = vpack.c.b16 %v4622, %v4618
    %v5027 = vpack.c.b16 %v4623, %v4619
    %v5028 = vpack.c.b16 %v4624, %v4620
    %v5029 = vpack.c.b16 %v4625, %v4621
    %v5030 = vpack.c.b16 %v4630, %v4626
    %v5031 = vpack.c.b16 %v4631, %v4627
    %v5032 = vpack.c.b16 %v4632, %v4628
    %v5033 = vpack.c.b16 %v4633, %v4629
    %v5034 = vpack.c.b16 %v4638, %v4634
    %v5035 = vpack.c.b16 %v4639, %v4635
    %v5036 = vpack.c.b16 %v4640, %v4636
    %v5037 = vpack.c.b16 %v4641, %v4637
    %v5038 = vpack.c.b16 %v4646, %v4642
    %v5039 = vpack.c.b16 %v4647, %v4643
    %v5040 = vpack.c.b16 %v4648, %v4644
    %v5041 = vpack.c.b16 %v4649, %v4645
    %v5042 = vpack.c.b16 %v4654, %v4650
    %v5043 = vpack.c.b16 %v4655, %v4651
    %v5044 = vpack.c.b16 %v4656, %v4652
    %v5045 = vpack.c.b16 %v4657, %v4653
    %v5046 = vpack.c.b16 %v4662, %v4658
    %v5047 = vpack.c.b16 %v4663, %v4659
    %v5048 = vpack.c.b16 %v4664, %v4660
    %v5049 = vpack.c.b16 %v4665, %v4661
    %v5050 = vpack.c.b16 %v4670, %v4666
    %v5051 = vpack.c.b16 %v4671, %v4667
    %v5052 = vpack.c.b16 %v4672, %v4668
    %v5053 = vpack.c.b16 %v4673, %v4669
    %v5054 = vpack.c.b16 %v4678, %v4674
    %v5055 = vpack.c.b16 %v4679, %v4675
    %v5056 = vpack.c.b16 %v4680, %v4676
    %v5057 = vpack.c.b16 %v4681, %v4677
    %v5058 = vpack.c.b16 %v4686, %v4682
    %v5059 = vpack.c.b16 %v4687, %v4683
    %v5060 = vpack.c.b16 %v4688, %v4684
    %v5061 = vpack.c.b16 %v4689, %v4685
    %v5062 = vpack.c.b16 %v4694, %v4690
    %v5063 = vpack.c.b16 %v4695, %v4691
    %v5064 = vpack.c.b16 %v4696, %v4692
    %v5065 = vpack.c.b16 %v4697, %v4693
    %v5066 = vpack.c.b16 %v4702, %v4698
    %v5067 = vpack.c.b16 %v4703, %v4699
    %v5068 = vpack.c.b16 %v4704, %v4700
    %v5069 = vpack.c.b16 %v4705, %v4701
    %v5070 = vpack.c.b16 %v4710, %v4706
    %v5071 = vpack.c.b16 %v4711, %v4707
    %v5072 = vpack.c.b16 %v4712, %v4708
    %v5073 = vpack.c.b16 %v4713, %v4709
    %v5074 = vpack.c.b16 %v4718, %v4714
    %v5075 = vpack.c.b16 %v4719, %v4715
    %v5076 = vpack.c.b16 %v4720, %v4716
    %v5077 = vpack.c.b16 %v4721, %v4717
    %v5078 = vpack.c.b16 %v4726, %v4722
    %v5079 = vpack.c.b16 %v4727, %v4723
    %v5080 = vpack.c.b16 %v4728, %v4724
    %v5081 = vpack.c.b16 %v4729, %v4725
    %v5082 = vpack.c.b16 %v4734, %v4730
    %v5083 = vpack.c.b16 %v4735, %v4731
    %v5084 = vpack.c.b16 %v4736, %v4732
    %v5085 = vpack.c.b16 %v4737, %v4733
    %v5086 = vpack.c.b16 %v4742, %v4738
    %v5087 = vpack.c.b16 %v4743, %v4739
    %v5088 = vpack.c.b16 %v4744, %v4740
    %v5089 = vpack.c.b16 %v4745, %v4741
    %v5090 = vpack.c.b16 %v4750, %v4746
    %v5091 = vpack.c.b16 %v4751, %v4747
    %v5092 = vpack.c.b16 %v4752, %v4748
    %v5093 = vpack.c.b16 %v4753, %v4749
    %v5094 = vpack.c.b16 %v4758, %v4754
    %v5095 = vpack.c.b16 %v4759, %v4755
    %v5096 = vpack.c.b16 %v4760, %v4756
    %v5097 = vpack.c.b16 %v4761, %v4757
    %v5098 = vpack.c.b16 %v4766, %v4762
    %v5099 = vpack.c.b16 %v4767, %v4763
    %v5100 = vpack.c.b16 %v4768, %v4764
    %v5101 = vpack.c.b16 %v4769, %v4765
    %v5102 = vpack.c.b16 %v4774, %v4770
    %v5103 = vpack.c.b16 %v4775, %v4771
    %v5104 = vpack.c.b16 %v4776, %v4772
    %v5105 = vpack.c.b16 %v4777, %v4773
    %v5106 = vpack.c.b16 %v4782, %v4778
    %v5107 = vpack.c.b16 %v4783, %v4779
    %v5108 = vpack.c.b16 %v4784, %v4780
    %v5109 = vpack.c.b16 %v4785, %v4781
    %v5110 = vpack.c.b16 %v4790, %v4786
    %v5111 = vpack.c.b16 %v4791, %v4787
    %v5112 = vpack.c.b16 %v4792, %v4788
    %v5113 = vpack.c.b16 %v4793, %v4789
    %v5114 = vpack.c.b16 %v4798, %v4794
    %v5115 = vpack.c.b16 %v4799, %v4795
    %v5116 = vpack.c.b16 %v4800, %v4796
    %v5117 = vpack.c.b16 %v4801, %v4797
    %v5118 = vpack.c.b16 %v4806, %v4802
    %v5119 = vpack.c.b16 %v4807, %v4803
    %v5120 = vpack.c.b16 %v4808, %v4804
    %v5121 = vpack.c.b16 %v4809, %v4805
    %v5122 = vpack.c.b16 %v4814, %v4810
    %v5123 = vpack.c.b16 %v4815, %v4811
    %v5124 = vpack.c.b16 %v4816, %v4812
    %v5125 = vpack.c.b16 %v4817, %v4813
    %v5126 = vpack.c.b16 %v4822, %v4818
    %v5127 = vpack.c.b16 %v4823, %v4819
    %v5128 = vpack.c.b16 %v4824, %v4820
    %v5129 = vpack.c.b16 %v4825, %v4821
    %v5130 = vpack.c.b16 %v4830, %v4826
    %v5131 = vpack.c.b16 %v4831, %v4827
    %v5132 = vpack.c.b16 %v4832, %v4828
    %v5133 = vpack.c.b16 %v4833, %v4829
    %v5134 = vpack.c.b16 %v4838, %v4834
    %v5135 = vpack.c.b16 %v4839, %v4835
    %v5136 = vpack.c.b16 %v4840, %v4836
    %v5137 = vpack.c.b16 %v4841, %v4837
    %v5138 = vpack.c.b16 %v4846, %v4842
    %v5139 = vpack.c.b16 %v4847, %v4843
    %v5140 = vpack.c.b16 %v4848, %v4844
    %v5141 = vpack.c.b16 %v4849, %v4845
    %v5142 = vpack.c.b16 %v4854, %v4850
    %v5143 = vpack.c.b16 %v4855, %v4851
    %v5144 = vpack.c.b16 %v4856, %v4852
    %v5145 = vpack.c.b16 %v4857, %v4853
    %v5146 = vpack.c.b16 %v4862, %v4858
    %v5147 = vpack.c.b16 %v4863, %v4859
    %v5148 = vpack.c.b16 %v4864, %v4860
    %v5149 = vpack.c.b16 %v4865, %v4861
    %v5150 = vpack.c.b16 %v4870, %v4866
    %v5151 = vpack.c.b16 %v4871, %v4867
    %v5152 = vpack.c.b16 %v4872, %v4868
    %v5153 = vpack.c.b16 %v4873, %v4869
    %v5154 = vpack.c.b16 %v4878, %v4874
    %v5155 = vpack.c.b16 %v4879, %v4875
    %v5156 = vpack.c.b16 %v4880, %v4876
    %v5157 = vpack.c.b16 %v4881, %v4877
    %v5158 = vpack.c.b16 %v4886, %v4882
    %v5159 = vpack.c.b16 %v4887, %v4883
    %v5160 = vpack.c.b16 %v4888, %v4884
    %v5161 = vpack.c.b16 %v4889, %v4885
    %v5162 = vpack.c.b16 %v4894, %v4890
    %v5163 = vpack.c.b16 %v4895, %v4891
    %v5164 = vpack.c.b16 %v4896, %v4892
    %v5165 = vpack.c.b16 %v4897, %v4893
    %v5166 = vpack.c.b16 %v4902, %v4898
    %v5167 = vpack.c.b16 %v4903, %v4899
    %v5168 = vpack.c.b16 %v4904, %v4900
    %v5169 = vpack.c.b16 %v4905, %v4901
    %v5170 = vpack.c.b16 %v4910, %v4906
    %v5171 = vpack.c.b16 %v4911, %v4907
    %v5172 = vpack.c.b16 %v4912, %v4908
    %v5173 = vpack.c.b16 %v4913, %v4909
    %v5174 = vpack.c.b16 %v4918, %v4914
    %v5175 = vpack.c.b16 %v4919, %v4915
    %v5176 = vpack.c.b16 %v4920, %v4916
    %v5177 = vpack.c.b16 %v4921, %v4917
    %5434 = vmatprep.subr.bf16.mxu0 %v4951
    %5435 = vmatpush1.bf16.msra.mxu0 %v4950
    %5436 = vmatprep.subr.bf16.mxu0 %v4947
    %5437 = vmatpush1.bf16.msra.mxu0 %v4946
    %5438 = vmatprep.subr.bf16.mxu0 %v4943
    %5439 = vmatpush1.bf16.msra.mxu0 %v4942
    %5440 = vmatprep.subr.bf16.mxu0 %v4939
    %5441 = vmatpush1.bf16.msra.mxu0 %v4938
    %5442 = vmatprep.subr.bf16.mxu0 %v4935
    %5443 = vmatpush1.bf16.msra.mxu0 %v4934
    %5444 = vmatprep.subr.bf16.mxu0 %v4931
    %5445 = vmatpush1.bf16.msra.mxu0 %v4930
    %5446 = vmatprep.subr.bf16.mxu0 %v4927
    %5447 = vmatpush1.bf16.msra.mxu0 %v4926
    %5448 = vmatprep.subr.bf16.mxu0 %v4923
    %5449 = vmatpush1.bf16.msra.mxu0 %v4922
    %5450 = vmatprep.subr.bf16.mxu0 %v4983
    %5451 = vmatpush2.bf16.msra.mxu0 %v4982
    %5452 = vmatprep.subr.bf16.mxu0 %v4979
    %5453 = vmatpush2.bf16.msra.mxu0 %v4978
    %5454 = vmatprep.subr.bf16.mxu0 %v4975
    %5455 = vmatpush2.bf16.msra.mxu0 %v4974
    %5456 = vmatprep.subr.bf16.mxu0 %v4971
    %5457 = vmatpush2.bf16.msra.mxu0 %v4970
    %5458 = vmatprep.subr.bf16.mxu0 %v4967
    %5459 = vmatpush2.bf16.msra.mxu0 %v4966
    %5460 = vmatprep.subr.bf16.mxu0 %v4963
    %5461 = vmatpush2.bf16.msra.mxu0 %v4962
    %5462 = vmatprep.subr.bf16.mxu0 %v4959
    %5463 = vmatpush2.bf16.msra.mxu0 %v4958
    %5464 = vmatprep.subr.bf16.mxu0 %v4955
    %5465 = vmatpush2.bf16.msra.mxu0 %v4954
    %5466 = vmatprep.mubr.bf16.mxu0 %v3869
    %5467 = vmatmul.mubr.bf16.gmra.mxu0 %v3868
    %v5468 = vpop.f32.mrf.mxu0
    %v5469 = vadd.f32 %v4137, %v5468
    %v5470 = vpop.f32.mrf.mxu0
    %v5471 = vadd.f32 %v4141, %v5470
    %v5472 = vpop.f32.mrf.mxu0
    %v5473 = vpop.f32.mrf.mxu0
    %5474 = vdwg.mxu0
    %5475 = vmatprep.subr.bf16.mxu0 %v5015
    %5476 = vmatpush1.bf16.msra.mxu0 %v5014
    %5477 = vmatprep.subr.bf16.mxu0 %v5011
    %5478 = vmatpush1.bf16.msra.mxu0 %v5010
    %5479 = vmatprep.subr.bf16.mxu0 %v5007
    %5480 = vmatpush1.bf16.msra.mxu0 %v5006
    %5481 = vmatprep.subr.bf16.mxu0 %v5003
    %5482 = vmatpush1.bf16.msra.mxu0 %v5002
    %5483 = vmatprep.subr.bf16.mxu0 %v4999
    %5484 = vmatpush1.bf16.msra.mxu0 %v4998
    %5485 = vmatprep.subr.bf16.mxu0 %v4995
    %5486 = vmatpush1.bf16.msra.mxu0 %v4994
    %5487 = vmatprep.subr.bf16.mxu0 %v4991
    %5488 = vmatpush1.bf16.msra.mxu0 %v4990
    %5489 = vmatprep.subr.bf16.mxu0 %v4987
    %5490 = vmatpush1.bf16.msra.mxu0 %v4986
    %5491 = vmatprep.subr.bf16.mxu0 %v5047
    %5492 = vmatpush2.bf16.msra.mxu0 %v5046
    %5493 = vmatprep.subr.bf16.mxu0 %v5043
    %5494 = vmatpush2.bf16.msra.mxu0 %v5042
    %5495 = vmatprep.subr.bf16.mxu0 %v5039
    %5496 = vmatpush2.bf16.msra.mxu0 %v5038
    %5497 = vmatprep.subr.bf16.mxu0 %v5035
    %5498 = vmatpush2.bf16.msra.mxu0 %v5034
    %5499 = vmatprep.subr.bf16.mxu0 %v5031
    %5500 = vmatpush2.bf16.msra.mxu0 %v5030
    %5501 = vmatprep.subr.bf16.mxu0 %v5027
    %5502 = vmatpush2.bf16.msra.mxu0 %v5026
    %5503 = vmatprep.subr.bf16.mxu0 %v5023
    %5504 = vmatpush2.bf16.msra.mxu0 %v5022
    %5505 = vmatprep.subr.bf16.mxu0 %v5019
    %5506 = vmatpush2.bf16.msra.mxu0 %v5018
    %5507 = vmatprep.mubr.bf16.mxu0 %v3871
    %5508 = vmatmul.mubr.bf16.gmra.mxu0 %v3870
    %v5509 = vpop.f32.mrf.mxu0
    %v5510 = vadd.f32 %v5469, %v5509
    %v5511 = vpop.f32.mrf.mxu0
    %v5512 = vadd.f32 %v5471, %v5511
    %v5513 = vpop.f32.mrf.mxu0
    %v5514 = vpop.f32.mrf.mxu0
    %5515 = vdwg.mxu0
    %5516 = vmatprep.subr.bf16.mxu0 %v5079
    %5517 = vmatpush1.bf16.msra.mxu0 %v5078
    %5518 = vmatprep.subr.bf16.mxu0 %v5075
    %5519 = vmatpush1.bf16.msra.mxu0 %v5074
    %5520 = vmatprep.subr.bf16.mxu0 %v5071
    %5521 = vmatpush1.bf16.msra.mxu0 %v5070
    %5522 = vmatprep.subr.bf16.mxu0 %v5067
    %5523 = vmatpush1.bf16.msra.mxu0 %v5066
    %5524 = vmatprep.subr.bf16.mxu0 %v5063
    %5525 = vmatpush1.bf16.msra.mxu0 %v5062
    %5526 = vmatprep.subr.bf16.mxu0 %v5059
    %5527 = vmatpush1.bf16.msra.mxu0 %v5058
    %5528 = vmatprep.subr.bf16.mxu0 %v5055
    %5529 = vmatpush1.bf16.msra.mxu0 %v5054
    %5530 = vmatprep.subr.bf16.mxu0 %v5051
    %5531 = vmatpush1.bf16.msra.mxu0 %v5050
    %5532 = vmatprep.subr.bf16.mxu0 %v5111
    %5533 = vmatpush2.bf16.msra.mxu0 %v5110
    %5534 = vmatprep.subr.bf16.mxu0 %v5107
    %5535 = vmatpush2.bf16.msra.mxu0 %v5106
    %5536 = vmatprep.subr.bf16.mxu0 %v5103
    %5537 = vmatpush2.bf16.msra.mxu0 %v5102
    %5538 = vmatprep.subr.bf16.mxu0 %v5099
    %5539 = vmatpush2.bf16.msra.mxu0 %v5098
    %5540 = vmatprep.subr.bf16.mxu0 %v5095
    %5541 = vmatpush2.bf16.msra.mxu0 %v5094
    %5542 = vmatprep.subr.bf16.mxu0 %v5091
    %5543 = vmatpush2.bf16.msra.mxu0 %v5090
    %5544 = vmatprep.subr.bf16.mxu0 %v5087
    %5545 = vmatpush2.bf16.msra.mxu0 %v5086
    %5546 = vmatprep.subr.bf16.mxu0 %v5083
    %5547 = vmatpush2.bf16.msra.mxu0 %v5082
    %5548 = vmatprep.mubr.bf16.mxu0 %v3873
    %5549 = vmatmul.mubr.bf16.gmra.mxu0 %v3872
    %v5550 = vpop.f32.mrf.mxu0
    %v5551 = vadd.f32 %v5510, %v5550
    %v5552 = vpop.f32.mrf.mxu0
    %v5553 = vadd.f32 %v5512, %v5552
    %v5554 = vpop.f32.mrf.mxu0
    %v5555 = vpop.f32.mrf.mxu0
    %5556 = vdwg.mxu0
    %5557 = vmatprep.subr.bf16.mxu0 %v5143
    %5558 = vmatpush1.bf16.msra.mxu0 %v5142
    %5559 = vmatprep.subr.bf16.mxu0 %v5139
    %5560 = vmatpush1.bf16.msra.mxu0 %v5138
    %5561 = vmatprep.subr.bf16.mxu0 %v5135
    %5562 = vmatpush1.bf16.msra.mxu0 %v5134
    %5563 = vmatprep.subr.bf16.mxu0 %v5131
    %5564 = vmatpush1.bf16.msra.mxu0 %v5130
    %5565 = vmatprep.subr.bf16.mxu0 %v5127
    %5566 = vmatpush1.bf16.msra.mxu0 %v5126
    %5567 = vmatprep.subr.bf16.mxu0 %v5123
    %5568 = vmatpush1.bf16.msra.mxu0 %v5122
    %5569 = vmatprep.subr.bf16.mxu0 %v5119
    %5570 = vmatpush1.bf16.msra.mxu0 %v5118
    %5571 = vmatprep.subr.bf16.mxu0 %v5115
    %5572 = vmatpush1.bf16.msra.mxu0 %v5114
    %5573 = vmatprep.subr.bf16.mxu0 %v5175
    %5574 = vmatpush2.bf16.msra.mxu0 %v5174
    %5575 = vmatprep.subr.bf16.mxu0 %v5171
    %5576 = vmatpush2.bf16.msra.mxu0 %v5170
    %5577 = vmatprep.subr.bf16.mxu0 %v5167
    %5578 = vmatpush2.bf16.msra.mxu0 %v5166
    %5579 = vmatprep.subr.bf16.mxu0 %v5163
    %5580 = vmatpush2.bf16.msra.mxu0 %v5162
    %5581 = vmatprep.subr.bf16.mxu0 %v5159
    %5582 = vmatpush2.bf16.msra.mxu0 %v5158
    %5583 = vmatprep.subr.bf16.mxu0 %v5155
    %5584 = vmatpush2.bf16.msra.mxu0 %v5154
    %5585 = vmatprep.subr.bf16.mxu0 %v5151
    %5586 = vmatpush2.bf16.msra.mxu0 %v5150
    %5587 = vmatprep.subr.bf16.mxu0 %v5147
    %5588 = vmatpush2.bf16.msra.mxu0 %v5146
    %5589 = vmatprep.mubr.bf16.mxu0 %v3875
    %5590 = vmatmul.mubr.bf16.gmra.mxu0 %v3874
    %v5591 = vpop.f32.mrf.mxu0
    %v5592 = vadd.f32 %v5551, %v5591
    %v5593 = vpop.f32.mrf.mxu0
    %v5594 = vadd.f32 %v5553, %v5593
    %v5595 = vpop.f32.mrf.mxu0
    %v5596 = vpop.f32.mrf.mxu0
    %5597 = vdwg.mxu0
    %5598 = vmatprep.subr.bf16.mxu0 %v4953
    %5599 = vmatpush1.bf16.msra.mxu0 %v4952
    %5600 = vmatprep.subr.bf16.mxu0 %v4949
    %5601 = vmatpush1.bf16.msra.mxu0 %v4948
    %5602 = vmatprep.subr.bf16.mxu0 %v4945
    %5603 = vmatpush1.bf16.msra.mxu0 %v4944
    %5604 = vmatprep.subr.bf16.mxu0 %v4941
    %5605 = vmatpush1.bf16.msra.mxu0 %v4940
    %5606 = vmatprep.subr.bf16.mxu0 %v4937
    %5607 = vmatpush1.bf16.msra.mxu0 %v4936
    %5608 = vmatprep.subr.bf16.mxu0 %v4933
    %5609 = vmatpush1.bf16.msra.mxu0 %v4932
    %5610 = vmatprep.subr.bf16.mxu0 %v4929
    %5611 = vmatpush1.bf16.msra.mxu0 %v4928
    %5612 = vmatprep.subr.bf16.mxu0 %v4925
    %5613 = vmatpush1.bf16.msra.mxu0 %v4924
    %5614 = vmatprep.subr.bf16.mxu0 %v4985
    %5615 = vmatpush2.bf16.msra.mxu0 %v4984
    %5616 = vmatprep.subr.bf16.mxu0 %v4981
    %5617 = vmatpush2.bf16.msra.mxu0 %v4980
    %5618 = vmatprep.subr.bf16.mxu0 %v4977
    %5619 = vmatpush2.bf16.msra.mxu0 %v4976
    %5620 = vmatprep.subr.bf16.mxu0 %v4973
    %5621 = vmatpush2.bf16.msra.mxu0 %v4972
    %5622 = vmatprep.subr.bf16.mxu0 %v4969
    %5623 = vmatpush2.bf16.msra.mxu0 %v4968
    %5624 = vmatprep.subr.bf16.mxu0 %v4965
    %5625 = vmatpush2.bf16.msra.mxu0 %v4964
    %5626 = vmatprep.subr.bf16.mxu0 %v4961
    %5627 = vmatpush2.bf16.msra.mxu0 %v4960
    %5628 = vmatprep.subr.bf16.mxu0 %v4957
    %5629 = vmatpush2.bf16.msra.mxu0 %v4956
    %5630 = vmatprep.mubr.bf16.mxu0 %v3869
    %5631 = vmatmul.mubr.bf16.gmra.mxu0 %v3868
    %v5632 = vpop.f32.mrf.mxu0
    %v5633 = vadd.f32 %v4145, %v5632
    %v5634 = vpop.f32.mrf.mxu0
    %v5635 = vadd.f32 %v4149, %v5634
    %v5636 = vpop.f32.mrf.mxu0
    %v5637 = vpop.f32.mrf.mxu0
    %5638 = vdwg.mxu0
    %5639 = vmatprep.subr.bf16.mxu0 %v5017
    %5640 = vmatpush1.bf16.msra.mxu0 %v5016
    %5641 = vmatprep.subr.bf16.mxu0 %v5013
    %5642 = vmatpush1.bf16.msra.mxu0 %v5012
    %5643 = vmatprep.subr.bf16.mxu0 %v5009
    %5644 = vmatpush1.bf16.msra.mxu0 %v5008
    %5645 = vmatprep.subr.bf16.mxu0 %v5005
    %5646 = vmatpush1.bf16.msra.mxu0 %v5004
    %5647 = vmatprep.subr.bf16.mxu0 %v5001
    %5648 = vmatpush1.bf16.msra.mxu0 %v5000
    %5649 = vmatprep.subr.bf16.mxu0 %v4997
    %5650 = vmatpush1.bf16.msra.mxu0 %v4996
    %5651 = vmatprep.subr.bf16.mxu0 %v4993
    %5652 = vmatpush1.bf16.msra.mxu0 %v4992
    %5653 = vmatprep.subr.bf16.mxu0 %v4989
    %5654 = vmatpush1.bf16.msra.mxu0 %v4988
    %5655 = vmatprep.subr.bf16.mxu0 %v5049
    %5656 = vmatpush2.bf16.msra.mxu0 %v5048
    %5657 = vmatprep.subr.bf16.mxu0 %v5045
    %5658 = vmatpush2.bf16.msra.mxu0 %v5044
    %5659 = vmatprep.subr.bf16.mxu0 %v5041
    %5660 = vmatpush2.bf16.msra.mxu0 %v5040
    %5661 = vmatprep.subr.bf16.mxu0 %v5037
    %5662 = vmatpush2.bf16.msra.mxu0 %v5036
    %5663 = vmatprep.subr.bf16.mxu0 %v5033
    %5664 = vmatpush2.bf16.msra.mxu0 %v5032
    %5665 = vmatprep.subr.bf16.mxu0 %v5029
    %5666 = vmatpush2.bf16.msra.mxu0 %v5028
    %5667 = vmatprep.subr.bf16.mxu0 %v5025
    %5668 = vmatpush2.bf16.msra.mxu0 %v5024
    %5669 = vmatprep.subr.bf16.mxu0 %v5021
    %5670 = vmatpush2.bf16.msra.mxu0 %v5020
    %5671 = vmatprep.mubr.bf16.mxu0 %v3871
    %5672 = vmatmul.mubr.bf16.gmra.mxu0 %v3870
    %v5673 = vpop.f32.mrf.mxu0
    %v5674 = vadd.f32 %v5633, %v5673
    %v5675 = vpop.f32.mrf.mxu0
    %v5676 = vadd.f32 %v5635, %v5675
    %v5677 = vpop.f32.mrf.mxu0
    %v5678 = vpop.f32.mrf.mxu0
    %5679 = vdwg.mxu0
    %5680 = vmatprep.subr.bf16.mxu0 %v5081
    %5681 = vmatpush1.bf16.msra.mxu0 %v5080
    %5682 = vmatprep.subr.bf16.mxu0 %v5077
    %5683 = vmatpush1.bf16.msra.mxu0 %v5076
    %5684 = vmatprep.subr.bf16.mxu0 %v5073
    %5685 = vmatpush1.bf16.msra.mxu0 %v5072
    %5686 = vmatprep.subr.bf16.mxu0 %v5069
    %5687 = vmatpush1.bf16.msra.mxu0 %v5068
    %5688 = vmatprep.subr.bf16.mxu0 %v5065
    %5689 = vmatpush1.bf16.msra.mxu0 %v5064
    %5690 = vmatprep.subr.bf16.mxu0 %v5061
    %5691 = vmatpush1.bf16.msra.mxu0 %v5060
    %5692 = vmatprep.subr.bf16.mxu0 %v5057
    %5693 = vmatpush1.bf16.msra.mxu0 %v5056
    %5694 = vmatprep.subr.bf16.mxu0 %v5053
    %5695 = vmatpush1.bf16.msra.mxu0 %v5052
    %5696 = vmatprep.subr.bf16.mxu0 %v5113
    %5697 = vmatpush2.bf16.msra.mxu0 %v5112
    %5698 = vmatprep.subr.bf16.mxu0 %v5109
    %5699 = vmatpush2.bf16.msra.mxu0 %v5108
    %5700 = vmatprep.subr.bf16.mxu0 %v5105
    %5701 = vmatpush2.bf16.msra.mxu0 %v5104
    %5702 = vmatprep.subr.bf16.mxu0 %v5101
    %5703 = vmatpush2.bf16.msra.mxu0 %v5100
    %5704 = vmatprep.subr.bf16.mxu0 %v5097
    %5705 = vmatpush2.bf16.msra.mxu0 %v5096
    %5706 = vmatprep.subr.bf16.mxu0 %v5093
    %5707 = vmatpush2.bf16.msra.mxu0 %v5092
    %5708 = vmatprep.subr.bf16.mxu0 %v5089
    %5709 = vmatpush2.bf16.msra.mxu0 %v5088
    %5710 = vmatprep.subr.bf16.mxu0 %v5085
    %5711 = vmatpush2.bf16.msra.mxu0 %v5084
    %5712 = vmatprep.mubr.bf16.mxu0 %v3873
    %5713 = vmatmul.mubr.bf16.gmra.mxu0 %v3872
    %v5714 = vpop.f32.mrf.mxu0
    %v5715 = vadd.f32 %v5674, %v5714
    %v5716 = vpop.f32.mrf.mxu0
    %v5717 = vadd.f32 %v5676, %v5716
    %v5718 = vpop.f32.mrf.mxu0
    %v5719 = vpop.f32.mrf.mxu0
    %5720 = vdwg.mxu0
    %5721 = vmatprep.subr.bf16.mxu0 %v5145
    %5722 = vmatpush1.bf16.msra.mxu0 %v5144
    %5723 = vmatprep.subr.bf16.mxu0 %v5141
    %5724 = vmatpush1.bf16.msra.mxu0 %v5140
    %5725 = vmatprep.subr.bf16.mxu0 %v5137
    %5726 = vmatpush1.bf16.msra.mxu0 %v5136
    %5727 = vmatprep.subr.bf16.mxu0 %v5133
    %5728 = vmatpush1.bf16.msra.mxu0 %v5132
    %5729 = vmatprep.subr.bf16.mxu0 %v5129
    %5730 = vmatpush1.bf16.msra.mxu0 %v5128
    %5731 = vmatprep.subr.bf16.mxu0 %v5125
    %5732 = vmatpush1.bf16.msra.mxu0 %v5124
    %5733 = vmatprep.subr.bf16.mxu0 %v5121
    %5734 = vmatpush1.bf16.msra.mxu0 %v5120
    %5735 = vmatprep.subr.bf16.mxu0 %v5117
    %5736 = vmatpush1.bf16.msra.mxu0 %v5116
    %5737 = vmatprep.subr.bf16.mxu0 %v5177
    %5738 = vmatpush2.bf16.msra.mxu0 %v5176
    %5739 = vmatprep.subr.bf16.mxu0 %v5173
    %5740 = vmatpush2.bf16.msra.mxu0 %v5172
    %5741 = vmatprep.subr.bf16.mxu0 %v5169
    %5742 = vmatpush2.bf16.msra.mxu0 %v5168
    %5743 = vmatprep.subr.bf16.mxu0 %v5165
    %5744 = vmatpush2.bf16.msra.mxu0 %v5164
    %5745 = vmatprep.subr.bf16.mxu0 %v5161
    %5746 = vmatpush2.bf16.msra.mxu0 %v5160
    %5747 = vmatprep.subr.bf16.mxu0 %v5157
    %5748 = vmatpush2.bf16.msra.mxu0 %v5156
    %5749 = vmatprep.subr.bf16.mxu0 %v5153
    %5750 = vmatpush2.bf16.msra.mxu0 %v5152
    %5751 = vmatprep.subr.bf16.mxu0 %v5149
    %5752 = vmatpush2.bf16.msra.mxu0 %v5148
    %5753 = vmatprep.mubr.bf16.mxu0 %v3875
    %5754 = vmatmul.mubr.bf16.gmra.mxu0 %v3874
    %v5755 = vpop.f32.mrf.mxu0
    %v5756 = vadd.f32 %v5715, %v5755
    %v5757 = vpop.f32.mrf.mxu0
    %v5758 = vadd.f32 %v5717, %v5757
    %v5759 = vpop.f32.mrf.mxu0
    %v5760 = vpop.f32.mrf.mxu0
    %5761 = vdwg.mxu0
    %v5762 = vmax.f32 %v5592, 0.0
    %v5763 = vmax.f32 %v5594, 0.0
    %v5764 = vmax.f32 %v5756, 0.0
    %v5765 = vmax.f32 %v5758, 0.0
    %v5766 = vpack.c.bf16 %v5762, %v5762
    %v5767 = vpack.c.bf16 %v5763, %v5763
    %v5768 = vpack.c.bf16 %v5764, %v5764
    %v5769 = vpack.c.bf16 %v5765, %v5765
    %v5770 = vld [vmem:[#allocation9] sm:$0xff]
    %v5771 = vld [vmem:[#allocation9 + $0x8] sm:$0xff]
    %v5772 = vld [vmem:[#allocation9 + $0x10] sm:$0xff]
    %v5773 = vld [vmem:[#allocation9 + $0x18] sm:$0xff]
    %v5774 = vld [vmem:[#allocation9 + $0x20] sm:$0xff]
    %v5775 = vld [vmem:[#allocation9 + $0x28] sm:$0xff]
    %v5776 = vld [vmem:[#allocation9 + $0x30] sm:$0xff]
    %v5777 = vld [vmem:[#allocation9 + $0x38] sm:$0xff]
    %v5778 = vld [vmem:[#allocation9 + $0x40] sm:$0xff]
    %v5779 = vld [vmem:[#allocation9 + $0x48] sm:$0xff]
    %v5780 = vld [vmem:[#allocation9 + $0x50] sm:$0xff]
    %v5781 = vld [vmem:[#allocation9 + $0x58] sm:$0xff]
    %v5782 = vld [vmem:[#allocation9 + $0x60] sm:$0xff]
    %v5783 = vld [vmem:[#allocation9 + $0x68] sm:$0xff]
    %v5784 = vld [vmem:[#allocation9 + $0x70] sm:$0xff]
    %v5785 = vld [vmem:[#allocation9 + $0x78] sm:$0xff]
    %v5786 = vld [vmem:[#allocation9 + $0x80] sm:$0xff]
    %v5787 = vld [vmem:[#allocation9 + $0x88] sm:$0xff]
    %v5788 = vld [vmem:[#allocation9 + $0x90] sm:$0xff]
    %v5789 = vld [vmem:[#allocation9 + $0x98] sm:$0xff]
    %v5790 = vld [vmem:[#allocation9 + $0xa0] sm:$0xff]
    %v5791 = vld [vmem:[#allocation9 + $0xa8] sm:$0xff]
    %v5792 = vld [vmem:[#allocation9 + $0xb0] sm:$0xff]
    %v5793 = vld [vmem:[#allocation9 + $0xb8] sm:$0xff]
    %v5794 = vld [vmem:[#allocation9 + $0xc0] sm:$0xff]
    %v5795 = vld [vmem:[#allocation9 + $0xc8] sm:$0xff]
    %v5796 = vld [vmem:[#allocation9 + $0xd0] sm:$0xff]
    %v5797 = vld [vmem:[#allocation9 + $0xd8] sm:$0xff]
    %v5798 = vld [vmem:[#allocation9 + $0xe0] sm:$0xff]
    %v5799 = vld [vmem:[#allocation9 + $0xe8] sm:$0xff]
    %v5800 = vld [vmem:[#allocation9 + $0xf0] sm:$0xff]
    %v5801 = vld [vmem:[#allocation9 + $0xf8] sm:$0xff]
    %v5802 = vld [vmem:[#allocation9 + $0x100] sm:$0xff]
    %v5803 = vld [vmem:[#allocation9 + $0x108] sm:$0xff]
    %v5804 = vld [vmem:[#allocation9 + $0x110] sm:$0xff]
    %v5805 = vld [vmem:[#allocation9 + $0x118] sm:$0xff]
    %v5806 = vld [vmem:[#allocation9 + $0x120] sm:$0xff]
    %v5807 = vld [vmem:[#allocation9 + $0x128] sm:$0xff]
    %v5808 = vld [vmem:[#allocation9 + $0x130] sm:$0xff]
    %v5809 = vld [vmem:[#allocation9 + $0x138] sm:$0xff]
    %v5810 = vld [vmem:[#allocation9 + $0x140] sm:$0xff]
    %v5811 = vld [vmem:[#allocation9 + $0x148] sm:$0xff]
    %v5812 = vld [vmem:[#allocation9 + $0x150] sm:$0xff]
    %v5813 = vld [vmem:[#allocation9 + $0x158] sm:$0xff]
    %v5814 = vld [vmem:[#allocation9 + $0x160] sm:$0xff]
    %v5815 = vld [vmem:[#allocation9 + $0x168] sm:$0xff]
    %v5816 = vld [vmem:[#allocation9 + $0x170] sm:$0xff]
    %v5817 = vld [vmem:[#allocation9 + $0x178] sm:$0xff]
    %v5818 = vld [vmem:[#allocation9 + $0x180] sm:$0xff]
    %v5819 = vld [vmem:[#allocation9 + $0x188] sm:$0xff]
    %v5820 = vld [vmem:[#allocation9 + $0x190] sm:$0xff]
    %v5821 = vld [vmem:[#allocation9 + $0x198] sm:$0xff]
    %v5822 = vld [vmem:[#allocation9 + $0x1a0] sm:$0xff]
    %v5823 = vld [vmem:[#allocation9 + $0x1a8] sm:$0xff]
    %v5824 = vld [vmem:[#allocation9 + $0x1b0] sm:$0xff]
    %v5825 = vld [vmem:[#allocation9 + $0x1b8] sm:$0xff]
    %v5826 = vld [vmem:[#allocation9 + $0x1c0] sm:$0xff]
    %v5827 = vld [vmem:[#allocation9 + $0x1c8] sm:$0xff]
    %v5828 = vld [vmem:[#allocation9 + $0x1d0] sm:$0xff]
    %v5829 = vld [vmem:[#allocation9 + $0x1d8] sm:$0xff]
    %v5830 = vld [vmem:[#allocation9 + $0x1e0] sm:$0xff]
    %v5831 = vld [vmem:[#allocation9 + $0x1e8] sm:$0xff]
    %v5832 = vld [vmem:[#allocation9 + $0x1f0] sm:$0xff]
    %v5833 = vld [vmem:[#allocation9 + $0x1f8] sm:$0xff]
    %v5834 = vld [vmem:[#allocation10] sm:$0x3]
    %v5836 = vlaneseq
    %v5837 = vshrl.u32 %v5836, 7
    %v5838 = vsub.s32 0, %v5837
    %v5839 = vrot.slane %v5834, %v5838
    %v5840 = vlaneseq
    %v5841 = vshrl.u32 %v5840, 7
    %v5842 = vsub.s32 1, %v5841
    %v5843 = vrot.slane %v5834, %v5842
    %v5910 = vunpack.c.l.b16 %v5770
    %v5911 = vunpack.c.h.b16 %v5770
    %v5912 = vunpack.c.l.b16 %v5771
    %v5913 = vunpack.c.h.b16 %v5771
    %v5914 = vunpack.c.l.b16 %v5772
    %v5915 = vunpack.c.h.b16 %v5772
    %v5916 = vunpack.c.l.b16 %v5773
    %v5917 = vunpack.c.h.b16 %v5773
    %v5918 = vunpack.c.l.b16 %v5774
    %v5919 = vunpack.c.h.b16 %v5774
    %v5920 = vunpack.c.l.b16 %v5775
    %v5921 = vunpack.c.h.b16 %v5775
    %v5922 = vunpack.c.l.b16 %v5776
    %v5923 = vunpack.c.h.b16 %v5776
    %v5924 = vunpack.c.l.b16 %v5777
    %v5925 = vunpack.c.h.b16 %v5777
    %v5926 = vunpack.c.l.b16 %v5778
    %v5927 = vunpack.c.h.b16 %v5778
    %v5928 = vunpack.c.l.b16 %v5779
    %v5929 = vunpack.c.h.b16 %v5779
    %v5930 = vunpack.c.l.b16 %v5780
    %v5931 = vunpack.c.h.b16 %v5780
    %v5932 = vunpack.c.l.b16 %v5781
    %v5933 = vunpack.c.h.b16 %v5781
    %v5934 = vunpack.c.l.b16 %v5782
    %v5935 = vunpack.c.h.b16 %v5782
    %v5936 = vunpack.c.l.b16 %v5783
    %v5937 = vunpack.c.h.b16 %v5783
    %v5938 = vunpack.c.l.b16 %v5784
    %v5939 = vunpack.c.h.b16 %v5784
    %v5940 = vunpack.c.l.b16 %v5785
    %v5941 = vunpack.c.h.b16 %v5785
    %v5942 = vunpack.c.l.b16 %v5786
    %v5943 = vunpack.c.h.b16 %v5786
    %v5944 = vunpack.c.l.b16 %v5787
    %v5945 = vunpack.c.h.b16 %v5787
    %v5946 = vunpack.c.l.b16 %v5788
    %v5947 = vunpack.c.h.b16 %v5788
    %v5948 = vunpack.c.l.b16 %v5789
    %v5949 = vunpack.c.h.b16 %v5789
    %v5950 = vunpack.c.l.b16 %v5790
    %v5951 = vunpack.c.h.b16 %v5790
    %v5952 = vunpack.c.l.b16 %v5791
    %v5953 = vunpack.c.h.b16 %v5791
    %v5954 = vunpack.c.l.b16 %v5792
    %v5955 = vunpack.c.h.b16 %v5792
    %v5956 = vunpack.c.l.b16 %v5793
    %v5957 = vunpack.c.h.b16 %v5793
    %v5958 = vunpack.c.l.b16 %v5794
    %v5959 = vunpack.c.h.b16 %v5794
    %v5960 = vunpack.c.l.b16 %v5795
    %v5961 = vunpack.c.h.b16 %v5795
    %v5962 = vunpack.c.l.b16 %v5796
    %v5963 = vunpack.c.h.b16 %v5796
    %v5964 = vunpack.c.l.b16 %v5797
    %v5965 = vunpack.c.h.b16 %v5797
    %v5966 = vunpack.c.l.b16 %v5798
    %v5967 = vunpack.c.h.b16 %v5798
    %v5968 = vunpack.c.l.b16 %v5799
    %v5969 = vunpack.c.h.b16 %v5799
    %v5970 = vunpack.c.l.b16 %v5800
    %v5971 = vunpack.c.h.b16 %v5800
    %v5972 = vunpack.c.l.b16 %v5801
    %v5973 = vunpack.c.h.b16 %v5801
    %v5974 = vunpack.c.l.b16 %v5802
    %v5975 = vunpack.c.h.b16 %v5802
    %v5976 = vunpack.c.l.b16 %v5803
    %v5977 = vunpack.c.h.b16 %v5803
    %v5978 = vunpack.c.l.b16 %v5804
    %v5979 = vunpack.c.h.b16 %v5804
    %v5980 = vunpack.c.l.b16 %v5805
    %v5981 = vunpack.c.h.b16 %v5805
    %v5982 = vunpack.c.l.b16 %v5806
    %v5983 = vunpack.c.h.b16 %v5806
    %v5984 = vunpack.c.l.b16 %v5807
    %v5985 = vunpack.c.h.b16 %v5807
    %v5986 = vunpack.c.l.b16 %v5808
    %v5987 = vunpack.c.h.b16 %v5808
    %v5988 = vunpack.c.l.b16 %v5809
    %v5989 = vunpack.c.h.b16 %v5809
    %v5990 = vunpack.c.l.b16 %v5810
    %v5991 = vunpack.c.h.b16 %v5810
    %v5992 = vunpack.c.l.b16 %v5811
    %v5993 = vunpack.c.h.b16 %v5811
    %v5994 = vunpack.c.l.b16 %v5812
    %v5995 = vunpack.c.h.b16 %v5812
    %v5996 = vunpack.c.l.b16 %v5813
    %v5997 = vunpack.c.h.b16 %v5813
    %v5998 = vunpack.c.l.b16 %v5814
    %v5999 = vunpack.c.h.b16 %v5814
    %v6000 = vunpack.c.l.b16 %v5815
    %v6001 = vunpack.c.h.b16 %v5815
    %v6002 = vunpack.c.l.b16 %v5816
    %v6003 = vunpack.c.h.b16 %v5816
    %v6004 = vunpack.c.l.b16 %v5817
    %v6005 = vunpack.c.h.b16 %v5817
    %v6006 = vunpack.c.l.b16 %v5818
    %v6007 = vunpack.c.h.b16 %v5818
    %v6008 = vunpack.c.l.b16 %v5819
    %v6009 = vunpack.c.h.b16 %v5819
    %v6010 = vunpack.c.l.b16 %v5820
    %v6011 = vunpack.c.h.b16 %v5820
    %v6012 = vunpack.c.l.b16 %v5821
    %v6013 = vunpack.c.h.b16 %v5821
    %v6014 = vunpack.c.l.b16 %v5822
    %v6015 = vunpack.c.h.b16 %v5822
    %v6016 = vunpack.c.l.b16 %v5823
    %v6017 = vunpack.c.h.b16 %v5823
    %v6018 = vunpack.c.l.b16 %v5824
    %v6019 = vunpack.c.h.b16 %v5824
    %v6020 = vunpack.c.l.b16 %v5825
    %v6021 = vunpack.c.h.b16 %v5825
    %v6022 = vunpack.c.l.b16 %v5826
    %v6023 = vunpack.c.h.b16 %v5826
    %v6024 = vunpack.c.l.b16 %v5827
    %v6025 = vunpack.c.h.b16 %v5827
    %v6026 = vunpack.c.l.b16 %v5828
    %v6027 = vunpack.c.h.b16 %v5828
    %v6028 = vunpack.c.l.b16 %v5829
    %v6029 = vunpack.c.h.b16 %v5829
    %v6030 = vunpack.c.l.b16 %v5830
    %v6031 = vunpack.c.h.b16 %v5830
    %v6032 = vunpack.c.l.b16 %v5831
    %v6033 = vunpack.c.h.b16 %v5831
    %v6034 = vunpack.c.l.b16 %v5832
    %v6035 = vunpack.c.h.b16 %v5832
    %v6036 = vunpack.c.l.b16 %v5833
    %v6037 = vunpack.c.h.b16 %v5833
    %v6038 = vpack.c.b16 %v5912, %v5910
    %v6039 = vpack.c.b16 %v5913, %v5911
    %v6040 = vpack.c.b16 %v5916, %v5914
    %v6041 = vpack.c.b16 %v5917, %v5915
    %v6042 = vpack.c.b16 %v5920, %v5918
    %v6043 = vpack.c.b16 %v5921, %v5919
    %v6044 = vpack.c.b16 %v5924, %v5922
    %v6045 = vpack.c.b16 %v5925, %v5923
    %v6046 = vpack.c.b16 %v5928, %v5926
    %v6047 = vpack.c.b16 %v5929, %v5927
    %v6048 = vpack.c.b16 %v5932, %v5930
    %v6049 = vpack.c.b16 %v5933, %v5931
    %v6050 = vpack.c.b16 %v5936, %v5934
    %v6051 = vpack.c.b16 %v5937, %v5935
    %v6052 = vpack.c.b16 %v5940, %v5938
    %v6053 = vpack.c.b16 %v5941, %v5939
    %v6054 = vpack.c.b16 %v5944, %v5942
    %v6055 = vpack.c.b16 %v5945, %v5943
    %v6056 = vpack.c.b16 %v5948, %v5946
    %v6057 = vpack.c.b16 %v5949, %v5947
    %v6058 = vpack.c.b16 %v5952, %v5950
    %v6059 = vpack.c.b16 %v5953, %v5951
    %v6060 = vpack.c.b16 %v5956, %v5954
    %v6061 = vpack.c.b16 %v5957, %v5955
    %v6062 = vpack.c.b16 %v5960, %v5958
    %v6063 = vpack.c.b16 %v5961, %v5959
    %v6064 = vpack.c.b16 %v5964, %v5962
    %v6065 = vpack.c.b16 %v5965, %v5963
    %v6066 = vpack.c.b16 %v5968, %v5966
    %v6067 = vpack.c.b16 %v5969, %v5967
    %v6068 = vpack.c.b16 %v5972, %v5970
    %v6069 = vpack.c.b16 %v5973, %v5971
    %v6070 = vpack.c.b16 %v5976, %v5974
    %v6071 = vpack.c.b16 %v5977, %v5975
    %v6072 = vpack.c.b16 %v5980, %v5978
    %v6073 = vpack.c.b16 %v5981, %v5979
    %v6074 = vpack.c.b16 %v5984, %v5982
    %v6075 = vpack.c.b16 %v5985, %v5983
    %v6076 = vpack.c.b16 %v5988, %v5986
    %v6077 = vpack.c.b16 %v5989, %v5987
    %v6078 = vpack.c.b16 %v5992, %v5990
    %v6079 = vpack.c.b16 %v5993, %v5991
    %v6080 = vpack.c.b16 %v5996, %v5994
    %v6081 = vpack.c.b16 %v5997, %v5995
    %v6082 = vpack.c.b16 %v6000, %v5998
    %v6083 = vpack.c.b16 %v6001, %v5999
    %v6084 = vpack.c.b16 %v6004, %v6002
    %v6085 = vpack.c.b16 %v6005, %v6003
    %v6086 = vpack.c.b16 %v6008, %v6006
    %v6087 = vpack.c.b16 %v6009, %v6007
    %v6088 = vpack.c.b16 %v6012, %v6010
    %v6089 = vpack.c.b16 %v6013, %v6011
    %v6090 = vpack.c.b16 %v6016, %v6014
    %v6091 = vpack.c.b16 %v6017, %v6015
    %v6092 = vpack.c.b16 %v6020, %v6018
    %v6093 = vpack.c.b16 %v6021, %v6019
    %v6094 = vpack.c.b16 %v6024, %v6022
    %v6095 = vpack.c.b16 %v6025, %v6023
    %v6096 = vpack.c.b16 %v6028, %v6026
    %v6097 = vpack.c.b16 %v6029, %v6027
    %v6098 = vpack.c.b16 %v6032, %v6030
    %v6099 = vpack.c.b16 %v6033, %v6031
    %v6100 = vpack.c.b16 %v6036, %v6034
    %v6101 = vpack.c.b16 %v6037, %v6035
    %6166 = vmatprep.subr.bf16.mxu0 %v6053
    %6167 = vmatpush1.bf16.msra.mxu0 %v6052
    %6168 = vmatprep.subr.bf16.mxu0 %v6051
    %6169 = vmatpush1.bf16.msra.mxu0 %v6050
    %6170 = vmatprep.subr.bf16.mxu0 %v6049
    %6171 = vmatpush1.bf16.msra.mxu0 %v6048
    %6172 = vmatprep.subr.bf16.mxu0 %v6047
    %6173 = vmatpush1.bf16.msra.mxu0 %v6046
    %6174 = vmatprep.subr.bf16.mxu0 %v6045
    %6175 = vmatpush1.bf16.msra.mxu0 %v6044
    %6176 = vmatprep.subr.bf16.mxu0 %v6043
    %6177 = vmatpush1.bf16.msra.mxu0 %v6042
    %6178 = vmatprep.subr.bf16.mxu0 %v6041
    %6179 = vmatpush1.bf16.msra.mxu0 %v6040
    %6180 = vmatprep.subr.bf16.mxu0 %v6039
    %6181 = vmatpush1.bf16.msra.mxu0 %v6038
    %6182 = vmatprep.subr.bf16.mxu0 %v6069
    %6183 = vmatpush2.bf16.msra.mxu0 %v6068
    %6184 = vmatprep.subr.bf16.mxu0 %v6067
    %6185 = vmatpush2.bf16.msra.mxu0 %v6066
    %6186 = vmatprep.subr.bf16.mxu0 %v6065
    %6187 = vmatpush2.bf16.msra.mxu0 %v6064
    %6188 = vmatprep.subr.bf16.mxu0 %v6063
    %6189 = vmatpush2.bf16.msra.mxu0 %v6062
    %6190 = vmatprep.subr.bf16.mxu0 %v6061
    %6191 = vmatpush2.bf16.msra.mxu0 %v6060
    %6192 = vmatprep.subr.bf16.mxu0 %v6059
    %6193 = vmatpush2.bf16.msra.mxu0 %v6058
    %6194 = vmatprep.subr.bf16.mxu0 %v6057
    %6195 = vmatpush2.bf16.msra.mxu0 %v6056
    %6196 = vmatprep.subr.bf16.mxu0 %v6055
    %6197 = vmatpush2.bf16.msra.mxu0 %v6054
    %6198 = vmatprep.mubr.bf16.mxu0 %v5767
    %6199 = vmatmul.mubr.bf16.gmra.mxu0 %v5766
    %v6200 = vpop.f32.mrf.mxu0
    %v6201 = vadd.f32 %v5839, %v6200
    %v6202 = vpop.f32.mrf.mxu0
    %v6203 = vadd.f32 %v5843, %v6202
    %v6204 = vpop.f32.mrf.mxu0
    %v6205 = vpop.f32.mrf.mxu0
    %6206 = vdwg.mxu0
    %6207 = vmatprep.subr.bf16.mxu0 %v6085
    %6208 = vmatpush1.bf16.msra.mxu0 %v6084
    %6209 = vmatprep.subr.bf16.mxu0 %v6083
    %6210 = vmatpush1.bf16.msra.mxu0 %v6082
    %6211 = vmatprep.subr.bf16.mxu0 %v6081
    %6212 = vmatpush1.bf16.msra.mxu0 %v6080
    %6213 = vmatprep.subr.bf16.mxu0 %v6079
    %6214 = vmatpush1.bf16.msra.mxu0 %v6078
    %6215 = vmatprep.subr.bf16.mxu0 %v6077
    %6216 = vmatpush1.bf16.msra.mxu0 %v6076
    %6217 = vmatprep.subr.bf16.mxu0 %v6075
    %6218 = vmatpush1.bf16.msra.mxu0 %v6074
    %6219 = vmatprep.subr.bf16.mxu0 %v6073
    %6220 = vmatpush1.bf16.msra.mxu0 %v6072
    %6221 = vmatprep.subr.bf16.mxu0 %v6071
    %6222 = vmatpush1.bf16.msra.mxu0 %v6070
    %6223 = vmatprep.subr.bf16.mxu0 %v6101
    %6224 = vmatpush2.bf16.msra.mxu0 %v6100
    %6225 = vmatprep.subr.bf16.mxu0 %v6099
    %6226 = vmatpush2.bf16.msra.mxu0 %v6098
    %6227 = vmatprep.subr.bf16.mxu0 %v6097
    %6228 = vmatpush2.bf16.msra.mxu0 %v6096
    %6229 = vmatprep.subr.bf16.mxu0 %v6095
    %6230 = vmatpush2.bf16.msra.mxu0 %v6094
    %6231 = vmatprep.subr.bf16.mxu0 %v6093
    %6232 = vmatpush2.bf16.msra.mxu0 %v6092
    %6233 = vmatprep.subr.bf16.mxu0 %v6091
    %6234 = vmatpush2.bf16.msra.mxu0 %v6090
    %6235 = vmatprep.subr.bf16.mxu0 %v6089
    %6236 = vmatpush2.bf16.msra.mxu0 %v6088
    %6237 = vmatprep.subr.bf16.mxu0 %v6087
    %6238 = vmatpush2.bf16.msra.mxu0 %v6086
    %6239 = vmatprep.mubr.bf16.mxu0 %v5769
    %6240 = vmatmul.mubr.bf16.gmra.mxu0 %v5768
    %v6241 = vpop.f32.mrf.mxu0
    %v6242 = vadd.f32 %v6201, %v6241
    %v6243 = vpop.f32.mrf.mxu0
    %v6244 = vadd.f32 %v6203, %v6243
    %v6245 = vpop.f32.mrf.mxu0
    %v6246 = vpop.f32.mrf.mxu0
    %6247 = vdwg.mxu0
    %6248 = vst [vmem:[%s7] sm:$0xff] %v6242
    %6249 = vst [vmem:[%s7 + $0x8] sm:$0xff] %v6244
    // Predicated region
    $region54: #{mlp_forward.1} parent=1 // pred_check
      _
    $region55: #{mlp_forward.1} parent=1 // pred_check_branch
      %6251 = sbr.rel (0) target = $region57
    $region56: #{mlp_forward.1} parent=1 // pred_region
      _
    $region57: #{mlp_forward.1} parent=1 // pred_fallthru
      _
    // Predicated region
    $region58: #{mlp_forward.1} parent=1 // pred_check
      _
    $region59: #{mlp_forward.1} parent=1 // pred_check_branch
      %6253 = sbr.rel (0) target = $region61
    $region60: #{mlp_forward.1} parent=1 // pred_region
      _
    $region61: #{mlp_forward.1} parent=1 // pred_fallthru
      _
    %6254 = vsyncpa [#allocation3], 1
    %6255 = vsyncpa [#allocation5], 1
    %6256 = vsyncpa [#allocation8], 1
    %6257 = vsyncpa [#allocation11], 1

</llo_original>
